<compile_context>
chip_gen: v6e
topology: v6e:2x2x1
jax: 0.10.0
libtpu: 0.0.40
codegen_flags: <defaults>
</compile_context>

<pallas_src>
import functools
import math

import jax
import jax.numpy as jnp
from jax import lax
from jax.experimental import pallas as pl
from jax.experimental.pallas import tpu as pltpu


# ----------------------------------------------------------------------------
# small in-kernel helper
# ----------------------------------------------------------------------------
def _ln(x, g, b, eps=1e-5):
    mu = jnp.mean(x, axis=-1, keepdims=True)
    var = jnp.mean(jnp.square(x - mu), axis=-1, keepdims=True)
    return (x - mu) * lax.rsqrt(var + eps) * g + b


# ----------------------------------------------------------------------------
# the fused Decision-Transformer kernel: grid = (n_layer,)
# ----------------------------------------------------------------------------
def _dt_kernel(cat_ref, t_ref, wemb_ref, bemb_ref, lneg_ref, lneb_ref,
               wpe_ref, bias_ref,
               ln1g_ref, ln1b_ref, wqkv_ref, bqkv_ref, wo_ref, bo_ref,
               ln2g_ref, ln2b_ref, wfc_ref, bfc_ref, wpr_ref, bpr_ref,
               lnfg_ref, lnfb_ref, wh2_ref, wh1_ref, bh_ref,
               o_ref, x_sc, att_sc,
               *, n_head, seq_len, batch, a_start, a_end):
    layer = pl.program_id(0)
    n_layer = pl.num_programs(0)
    B = batch
    S = seq_len
    T = 3 * S
    H = x_sc.shape[1]
    hd = H // n_head
    scale = 1.0 / math.sqrt(hd)
    bf16 = jnp.bfloat16

    # ---- layer 0: fused embedding front-end (runs once for the whole batch)
    #      [rtg|state|action] @ block-diag W -> 3 streams, +t_emb, embed LN,
    #      + (permuted) positional embedding, written stream-major per batch.
    @pl.when(layer == 0)
    def _():
        for b in range(B):                                   # static, small
            y = jnp.dot(cat_ref[b].astype(bf16), wemb_ref[...],
                        preferred_element_type=jnp.float32) + bemb_ref[...]
            tb = t_ref[b]                                    # (S, H) f32
            for j in range(3):                               # return|state|action
                yj = _ln(y[:, j * H:(j + 1) * H] + tb,
                         lneg_ref[...], lneb_ref[...])
                yj = yj + wpe_ref[j * S:(j + 1) * S, :]      # GPT wpe (permuted)
                x_sc[b * T + j * S:b * T + (j + 1) * S, :] = yj

    # ---- one transformer block per grid step (weights streamed once/layer) --
    x = x_sc[...]                                            # (B*T, H) f32

    # pre-LN fused-QKV causal self-attention; fat-M projection for all batches
    h1 = _ln(x, ln1g_ref[0], ln1b_ref[0]).astype(bf16)
    qkv = jnp.dot(h1, wqkv_ref[0],
                  preferred_element_type=jnp.float32) + bqkv_ref[0]
    bias = bias_ref[...]                                     # (T, T) additive mask
    for b in range(B):                                       # scores are per
        r0 = b * T                                           # (batch, head)
        for hh in range(n_head):
            lo = hh * hd
            q = qkv[r0:r0 + T, lo:lo + hd].astype(bf16)
            k = qkv[r0:r0 + T, H + lo:H + lo + hd].astype(bf16)
            v = qkv[r0:r0 + T, 2 * H + lo:2 * H + lo + hd].astype(bf16)
            s = lax.dot_general(q, k, (((1,), (1,)), ((), ())),
                                preferred_element_type=jnp.float32) * scale
            s = s + bias
            s = s - jnp.max(s, axis=-1, keepdims=True)
            p = jnp.exp(s)
            p = p * pl.reciprocal(jnp.sum(p, axis=-1, keepdims=True),
                                  approx=True)
            att_sc[r0:r0 + T, lo:lo + hd] = jnp.dot(
                p.astype(bf16), v,
                preferred_element_type=jnp.float32).astype(att_sc.dtype)
    att = jnp.dot(att_sc[...], wo_ref[0],
                  preferred_element_type=jnp.float32) + bo_ref[0]
    x = x + att

    # pre-LN GELU MLP (fat M)
    h2 = _ln(x, ln2g_ref[0], ln2b_ref[0]).astype(bf16)
    m = jnp.dot(h2, wfc_ref[0], preferred_element_type=jnp.float32) + bfc_ref[0]
    m = jax.nn.gelu(m, approximate=True)                     # tanh GELU (minGPT)
    m = jnp.dot(m.astype(bf16), wpr_ref[0],
                preferred_element_type=jnp.float32) + bpr_ref[0]
    x = x + m
    x_sc[...] = x

    # ---- last layer: final LayerNorm + fused prediction heads ---------------
    #      stream-major layout -> state / action tokens are contiguous slices.
    @pl.when(layer == n_layer - 1)
    def _():
        P = o_ref.shape[2]
        col = lax.broadcasted_iota(jnp.int32, (S, P), 1)
        tanh_cols = (col >= a_start) & (col < a_end)         # action_tanh=True
        for b in range(B):
            r0 = b * T
            s_tok = _ln(x[r0 + S:r0 + 2 * S, :],
                        lnfg_ref[...], lnfb_ref[...]).astype(bf16)
            a_tok = _ln(x[r0 + 2 * S:r0 + 3 * S, :],
                        lnfg_ref[...], lnfb_ref[...]).astype(bf16)
            y = jnp.dot(a_tok, wh2_ref[...], preferred_element_type=jnp.float32)
            y = y + jnp.dot(s_tok, wh1_ref[...],
                            preferred_element_type=jnp.float32)
            y = y + bh_ref[...]
            y = jnp.where(tanh_cols, jnp.tanh(y), y)
            o_ref[b] = y.astype(o_ref.dtype)


# ----------------------------------------------------------------------------
# Parameter construction (module-style) + packing into kernel-friendly layout
# ----------------------------------------------------------------------------
def init_params(key, *, state_dim, act_dim, hidden_size, max_ep_len,
                n_layer, n_head, block_size):
    H = hidden_size
    ks = iter(jax.random.split(key, 64))

    def w(shape, scale=0.02):
        return jax.random.normal(next(ks), shape, jnp.float32) * scale

    def lin(k_in, k_out):
        return w((k_in, k_out)), jnp.zeros((k_out,), jnp.float32)

    params = {}
    params["embed_timestep"] = w((max_ep_len, H))
    params["embed_return_w"], params["embed_return_b"] = lin(1, H)
    params["embed_state_w"], params["embed_state_b"] = lin(state_dim, H)
    params["embed_action_w"], params["embed_action_b"] = lin(act_dim, H)
    params["embed_ln_g"] = jnp.ones((H,), jnp.float32)
    params["embed_ln_b"] = jnp.zeros((H,), jnp.float32)
    params["wpe"] = w((block_size, H))
    blocks = []
    for _ in range(n_layer):
        blk = {
            "ln1_g": jnp.ones((H,), jnp.float32),
            "ln1_b": jnp.zeros((H,), jnp.float32),
            "ln2_g": jnp.ones((H,), jnp.float32),
            "ln2_b": jnp.zeros((H,), jnp.float32),
        }
        blk["wq"], blk["bq"] = lin(H, H)
        blk["wk"], blk["bk"] = lin(H, H)
        blk["wv"], blk["bv"] = lin(H, H)
        blk["wo"], blk["bo"] = lin(H, H)
        blk["wfc"], blk["bfc"] = lin(H, 4 * H)
        blk["wpr"], blk["bpr"] = lin(4 * H, H)
        blocks.append(blk)
    params["blocks"] = blocks
    params["ln_f_g"] = jnp.ones((H,), jnp.float32)
    params["ln_f_b"] = jnp.zeros((H,), jnp.float32)
    params["predict_state_w"], params["predict_state_b"] = lin(H, state_dim)
    params["predict_action_w"], params["predict_action_b"] = lin(H, act_dim)
    params["predict_return_w"], params["predict_return_b"] = lin(H, 1)
    return params


def pack_params(params, *, hidden_size, state_dim, act_dim, seq_len):
    H = hidden_size
    S = seq_len
    T = 3 * S
    bf16 = jnp.bfloat16
    blocks = params["blocks"]
    pk = {}

    # -- embedding front-end (block-diagonal [rtg|state|action] -> 3H) -------
    K = 1 + state_dim + act_dim
    we = jnp.zeros((K, 3 * H), jnp.float32)
    we = we.at[0:1, 0:H].set(params["embed_return_w"])
    we = we.at[1:1 + state_dim, H:2 * H].set(params["embed_state_w"])
    we = we.at[1 + state_dim:, 2 * H:3 * H].set(params["embed_action_w"])
    pk["w_emb"] = we.astype(bf16)
    pk["b_emb"] = jnp.concatenate(
        [params["embed_return_b"], params["embed_state_b"],
         params["embed_action_b"]]).reshape(1, 3 * H)
    pk["ln_e_g"] = params["embed_ln_g"].reshape(1, H)
    pk["ln_e_b"] = params["embed_ln_b"].reshape(1, H)
    pk["embed_timestep"] = params["embed_timestep"]

    # -- stream-major token ordering ([return|state|action] blocks per batch):
    #    stream-major row r = j*S + t corresponds to interleaved GPT position
    #    pos[r] = 3*t + j.  Permuting wpe and the causal mask by pos[] makes
    #    the transformer math identical to running on the interleaved seq.
    pos = (3 * jnp.arange(S)[None, :] + jnp.arange(3)[:, None]).reshape(-1)
    pk["wpe_sm"] = params["wpe"][pos]                                 # (T, H)
    causal = pos[:, None] >= pos[None, :]
    pk["attn_bias"] = jnp.where(causal, 0.0, -1e9).astype(jnp.float32)  # (T, T)

    # -- transformer blocks stacked along a leading layer axis ----------------
    def stack(name):
        return jnp.stack([blk[name] for blk in blocks])

    pk["ln1_g"] = stack("ln1_g")[:, None, :]
    pk["ln1_b"] = stack("ln1_b")[:, None, :]
    pk["ln2_g"] = stack("ln2_g")[:, None, :]
    pk["ln2_b"] = stack("ln2_b")[:, None, :]
    pk["w_qkv"] = jnp.stack(
        [jnp.concatenate([blk["wq"], blk["wk"], blk["wv"]], axis=1)
         for blk in blocks]).astype(bf16)                    # (L, H, 3H)
    pk["b_qkv"] = jnp.stack(
        [jnp.concatenate([blk["bq"], blk["bk"], blk["bv"]])
         for blk in blocks])[:, None, :]                     # (L, 1, 3H)
    pk["w_o"] = stack("wo").astype(bf16)
    pk["b_o"] = stack("bo")[:, None, :]
    pk["w_fc"] = stack("wfc").astype(bf16)
    pk["b_fc"] = stack("bfc")[:, None, :]
    pk["w_pr"] = stack("wpr").astype(bf16)
    pk["b_pr"] = stack("bpr")[:, None, :]
    pk["ln_f_g"] = params["ln_f_g"].reshape(1, H)
    pk["ln_f_b"] = params["ln_f_b"].reshape(1, H)

    # -- fused prediction heads, padded to a lane-dense 128-wide output slab --
    P = ((1 + state_dim + act_dim + 127) // 128) * 128
    a0 = 1 + state_dim
    w2 = jnp.zeros((H, P), jnp.float32)                      # from action tokens
    w2 = w2.at[:, 0:1].set(params["predict_return_w"])
    w2 = w2.at[:, 1:1 + state_dim].set(params["predict_state_w"])
    w1 = jnp.zeros((H, P), jnp.float32)                      # from state tokens
    w1 = w1.at[:, a0:a0 + act_dim].set(params["predict_action_w"])
    bh = jnp.zeros((P,), jnp.float32)
    bh = bh.at[0:1].set(params["predict_return_b"])
    bh = bh.at[1:1 + state_dim].set(params["predict_state_b"])
    bh = bh.at[a0:a0 + act_dim].set(params["predict_action_b"])
    pk["w_head_tok2"] = w2.astype(bf16)
    pk["w_head_tok1"] = w1.astype(bf16)
    pk["b_head"] = bh.reshape(1, P)
    return pk


# ----------------------------------------------------------------------------
# Forward pass: one fused Pallas kernel + tiny XLA glue (gather / concat / slice)
# ----------------------------------------------------------------------------
def decision_transformer_forward(packed, states, actions, returns_to_go,
                                 timesteps, *, hidden_size, n_head,
                                 state_dim, act_dim):
    # TODO(synk): the optional attention_mask accepted by the PyTorch module is
    # built but never passed into its GPT call, so it is (faithfully) ignored.
    B, S, Ds = states.shape
    Da = actions.shape[-1]
    H = hidden_size
    T = 3 * S
    K = 1 + Ds + Da
    P = packed["w_head_tok2"].shape[1]
    L = packed["w_qkv"].shape[0]
    a0 = 1 + Ds

    # tiny glue kept in XLA: timestep-embedding gather + feature concat
    t_emb = jnp.take(packed["embed_timestep"], timesteps, axis=0)   # (B, S, H)
    cat_in = jnp.concatenate([returns_to_go, states, actions], axis=-1)

    def wmap3(l):                 # per-layer weights: stream layer l
        return (l, 0, 0)

    def c2(l):                    # resident constants
        return (0, 0)

    def c3(l):
        return (0, 0, 0)

    in_specs = [
        pl.BlockSpec((B, S, K), c3),          # cat_in
        pl.BlockSpec((B, S, H), c3),          # t_emb
        pl.BlockSpec((K, 3 * H), c2),         # w_emb
        pl.BlockSpec((1, 3 * H), c2),         # b_emb
        pl.BlockSpec((1, H), c2),             # ln_e_g
        pl.BlockSpec((1, H), c2),             # ln_e_b
        pl.BlockSpec((T, H), c2),             # wpe (stream-major permuted)
        pl.BlockSpec((T, T), c2),             # causal additive bias (permuted)
        pl.BlockSpec((1, 1, H), wmap3),       # ln1_g
        pl.BlockSpec((1, 1, H), wmap3),       # ln1_b
        pl.BlockSpec((1, H, 3 * H), wmap3),   # w_qkv
        pl.BlockSpec((1, 1, 3 * H), wmap3),   # b_qkv
        pl.BlockSpec((1, H, H), wmap3),       # w_o
        pl.BlockSpec((1, 1, H), wmap3),       # b_o
        pl.BlockSpec((1, 1, H), wmap3),       # ln2_g
        pl.BlockSpec((1, 1, H), wmap3),       # ln2_b
        pl.BlockSpec((1, H, 4 * H), wmap3),   # w_fc
        pl.BlockSpec((1, 1, 4 * H), wmap3),   # b_fc
        pl.BlockSpec((1, 4 * H, H), wmap3),   # w_pr
        pl.BlockSpec((1, 1, H), wmap3),       # b_pr
        pl.BlockSpec((1, H), c2),             # ln_f_g
        pl.BlockSpec((1, H), c2),             # ln_f_b
        pl.BlockSpec((H, P), c2),             # w_head_tok2 (action tokens)
        pl.BlockSpec((H, P), c2),             # w_head_tok1 (state tokens)
        pl.BlockSpec((1, P), c2),             # b_head
    ]

    # VMEM budget from the actual block set (feedback: re-derive for v7x's
    # 64 MiB).  Dominant term: double-buffered per-layer bf16 weights.
    per_layer = 24 * H * H + 4 * 13 * H                       # bytes / layer
    resident = (6 * B * T * H                                 # x_sc f32 + att bf16
                + 4 * (B * S * (K + H) + T * H + T * T + B * S * P)
                + 2 * 2 * H * P)
    vmem_limit = int(min(64 * 2 ** 20,
                         max(2 * per_layer + resident + 4 * 2 ** 20,
                             16 * 2 ** 20)))

    y = pl.pallas_call(
        functools.partial(_dt_kernel, n_head=n_head, seq_len=S, batch=B,
                          a_start=a0, a_end=a0 + Da),
        out_shape=jax.ShapeDtypeStruct((B, S, P), jnp.float32),
        grid=(L,),
        in_specs=in_specs,
        out_specs=pl.BlockSpec((B, S, P), c3),
        scratch_shapes=[pltpu.VMEM((B * T, H), jnp.float32),    # resident acts
                        pltpu.VMEM((B * T, H), jnp.bfloat16)],  # attention PV
        compiler_params=pltpu.CompilerParams(
            dimension_semantics=("arbitrary",),   # layer axis carries state
            vmem_limit_bytes=vmem_limit),
    )(cat_in, t_emb, packed["w_emb"], packed["b_emb"], packed["ln_e_g"],
      packed["ln_e_b"], packed["wpe_sm"], packed["attn_bias"],
      packed["ln1_g"], packed["ln1_b"], packed["w_qkv"], packed["b_qkv"],
      packed["w_o"], packed["b_o"], packed["ln2_g"], packed["ln2_b"],
      packed["w_fc"], packed["b_fc"], packed["w_pr"], packed["b_pr"],
      packed["ln_f_g"], packed["ln_f_b"], packed["w_head_tok2"],
      packed["w_head_tok1"], packed["b_head"])

    return_preds = y[:, :, 0:1]
    state_preds = y[:, :, 1:1 + Ds]
    action_preds = y[:, :, a0:a0 + Da]
    return state_preds, action_preds, return_preds


# ----------------------------------------------------------------------------
# Pure-JAX reference (interleaved ordering, faithful to the PyTorch module)
# ----------------------------------------------------------------------------
def _reference_forward(params, states, actions, returns_to_go, timesteps,
                       *, hidden_size, n_head):
    def ln(x, g, b, eps=1e-5):
        mu = x.mean(-1, keepdims=True)
        var = ((x - mu) ** 2).mean(-1, keepdims=True)
        return (x - mu) / jnp.sqrt(var + eps) * g + b

    B, S, _ = states.shape
    H = hidden_size
    T = 3 * S
    hd = H // n_head
    t = params["embed_timestep"][timesteps]
    r_e = returns_to_go @ params["embed_return_w"] + params["embed_return_b"] + t
    s_e = states @ params["embed_state_w"] + params["embed_state_b"] + t
    a_e = actions @ params["embed_action_w"] + params["embed_action_b"] + t
    x = jnp.stack([r_e, s_e, a_e], axis=1).transpose(0, 2, 1, 3).reshape(B, T, H)
    x = ln(x, params["embed_ln_g"], params["embed_ln_b"])
    x = x + params["wpe"][:T]
    causal = jnp.tril(jnp.ones((T, T), bool))
    for blk in params["blocks"]:
        h = ln(x, blk["ln1_g"], blk["ln1_b"])
        q = (h @ blk["wq"] + blk["bq"]).reshape(B, T, n_head, hd).transpose(0, 2, 1, 3)
        k = (h @ blk["wk"] + blk["bk"]).reshape(B, T, n_head, hd).transpose(0, 2, 1, 3)
        v = (h @ blk["wv"] + blk["bv"]).reshape(B, T, n_head, hd).transpose(0, 2, 1, 3)
        s = jnp.einsum("bhqd,bhkd->bhqk", q, k) / math.sqrt(hd)
        s = jnp.where(causal, s, -1e9)
        p = jax.nn.softmax(s, axis=-1)
        o = jnp.einsum("bhqk,bhkd->bhqd", p, v).transpose(0, 2, 1, 3).reshape(B, T, H)
        x = x + o @ blk["wo"] + blk["bo"]
        h2 = ln(x, blk["ln2_g"], blk["ln2_b"])
        m = jax.nn.gelu(h2 @ blk["wfc"] + blk["bfc"], approximate=True)
        x = x + m @ blk["wpr"] + blk["bpr"]
    x = ln(x, params["ln_f_g"], params["ln_f_b"])
    x = x.reshape(B, S, 3, H).transpose(0, 2, 1, 3)
    return_preds = x[:, 2] @ params["predict_return_w"] + params["predict_return_b"]
    state_preds = x[:, 2] @ params["predict_state_w"] + params["predict_state_b"]
    action_preds = jnp.tanh(
        x[:, 1] @ params["predict_action_w"] + params["predict_action_b"])
    return state_preds, action_preds, return_preds


# ----------------------------------------------------------------------------
if __name__ == "__main__":
    B, S = 2, 8
    state_dim, act_dim, hidden = 8, 4, 32
    n_layer, n_head = 2, 4
    max_ep_len = 128
    block_size = 32   # GPT context length >= 3 * S

    key = jax.random.PRNGKey(0)
    kp, ks, ka, kr, kt = jax.random.split(key, 5)

    params = init_params(kp, state_dim=state_dim, act_dim=act_dim,
                         hidden_size=hidden, max_ep_len=max_ep_len,
                         n_layer=n_layer, n_head=n_head, block_size=block_size)
    packed = pack_params(params, hidden_size=hidden, state_dim=state_dim,
                         act_dim=act_dim, seq_len=S)

    states = jax.random.normal(ks, (B, S, state_dim), jnp.float32)
    actions = jax.random.normal(ka, (B, S, act_dim), jnp.float32)
    returns_to_go = jax.random.normal(kr, (B, S, 1), jnp.float32)
    timesteps = jax.random.randint(kt, (B, S), 0, max_ep_len, jnp.int32)

    fwd = jax.jit(functools.partial(decision_transformer_forward,
                                    hidden_size=hidden, n_head=n_head,
                                    state_dim=state_dim, act_dim=act_dim))
    state_preds, action_preds, return_preds = fwd(
        packed, states, actions, returns_to_go, timesteps)
    jax.block_until_ready((state_preds, action_preds, return_preds))

    assert state_preds.shape == (B, S, state_dim)
    assert action_preds.shape == (B, S, act_dim)
    assert return_preds.shape == (B, S, 1)
    assert bool(jnp.all(jnp.isfinite(state_preds)))
    assert bool(jnp.all(jnp.isfinite(action_preds)))
    assert bool(jnp.all(jnp.isfinite(return_preds)))

    # numerical check vs. the f32 pure-JAX reference (bf16 MXU tolerance)
    ref_s, ref_a, ref_r = _reference_forward(
        params, states, actions, returns_to_go, timesteps,
        hidden_size=hidden, n_head=n_head)
    assert bool(jnp.allclose(state_preds, ref_s, atol=5e-2, rtol=5e-2))
    assert bool(jnp.allclose(action_preds, ref_a, atol=5e-2, rtol=5e-2))
    assert bool(jnp.allclose(return_preds, ref_r, atol=5e-2, rtol=5e-2))

    print("KERNEL_OK")
</pallas_src>

<mosaic_0001>
module attributes {stable_mosaic.version = 11 : i64} {
  func.func @_dt_kernel(%arg0: i32, %arg1: memref<2x8x13xf32, #tpu.memory_space<vmem>>, %arg2: memref<2x8x32xf32, #tpu.memory_space<vmem>>, %arg3: memref<13x96xbf16, #tpu.memory_space<vmem>>, %arg4: memref<1x96xf32, #tpu.memory_space<vmem>>, %arg5: memref<1x32xf32, #tpu.memory_space<vmem>>, %arg6: memref<1x32xf32, #tpu.memory_space<vmem>>, %arg7: memref<24x32xf32, #tpu.memory_space<vmem>>, %arg8: memref<24x24xf32, #tpu.memory_space<vmem>>, %arg9: memref<1x1x32xf32, #tpu.memory_space<vmem>>, %arg10: memref<1x1x32xf32, #tpu.memory_space<vmem>>, %arg11: memref<1x32x96xbf16, #tpu.memory_space<vmem>>, %arg12: memref<1x1x96xf32, #tpu.memory_space<vmem>>, %arg13: memref<1x32x32xbf16, #tpu.memory_space<vmem>>, %arg14: memref<1x1x32xf32, #tpu.memory_space<vmem>>, %arg15: memref<1x1x32xf32, #tpu.memory_space<vmem>>, %arg16: memref<1x1x32xf32, #tpu.memory_space<vmem>>, %arg17: memref<1x32x128xbf16, #tpu.memory_space<vmem>>, %arg18: memref<1x1x128xf32, #tpu.memory_space<vmem>>, %arg19: memref<1x128x32xbf16, #tpu.memory_space<vmem>>, %arg20: memref<1x1x32xf32, #tpu.memory_space<vmem>>, %arg21: memref<1x32xf32, #tpu.memory_space<vmem>>, %arg22: memref<1x32xf32, #tpu.memory_space<vmem>>, %arg23: memref<32x128xbf16, #tpu.memory_space<vmem>>, %arg24: memref<32x128xbf16, #tpu.memory_space<vmem>>, %arg25: memref<1x128xf32, #tpu.memory_space<vmem>>, %arg26: memref<2x8x128xf32, #tpu.memory_space<vmem>>, %arg27: memref<48x32xf32, #tpu.memory_space<vmem>>, %arg28: memref<48x32xbf16, #tpu.memory_space<vmem>>) attributes {dimension_semantics = [#tpu.dimension_semantics<arbitrary>], iteration_bounds = array<i64: 2>, scalar_prefetch = 0 : i64, scratch_operands = 2 : i64, tpu.core_type = #tpu.core_type<tc>, window_params = [{pipeline_mode = #tpu.pipeline_mode<synchronous>, transform_indices = @transform_0, window_bounds = array<i64: 2, 8, 13>}, {pipeline_mode = #tpu.pipeline_mode<synchronous>, transform_indices = @transform_1, window_bounds = array<i64: 2, 8, 32>}, {pipeline_mode = #tpu.pipeline_mode<synchronous>, transform_indices = @transform_2, window_bounds = array<i64: 13, 96>}, {pipeline_mode = #tpu.pipeline_mode<synchronous>, transform_indices = @transform_3, window_bounds = array<i64: 1, 96>}, {pipeline_mode = #tpu.pipeline_mode<synchronous>, transform_indices = @transform_4, window_bounds = array<i64: 1, 32>}, {pipeline_mode = #tpu.pipeline_mode<synchronous>, transform_indices = @transform_5, window_bounds = array<i64: 1, 32>}, {pipeline_mode = #tpu.pipeline_mode<synchronous>, transform_indices = @transform_6, window_bounds = array<i64: 24, 32>}, {pipeline_mode = #tpu.pipeline_mode<synchronous>, transform_indices = @transform_7, window_bounds = array<i64: 24, 24>}, {transform_indices = @transform_8, window_bounds = array<i64: 1, 1, 32>}, {transform_indices = @transform_9, window_bounds = array<i64: 1, 1, 32>}, {transform_indices = @transform_10, window_bounds = array<i64: 1, 32, 96>}, {transform_indices = @transform_11, window_bounds = array<i64: 1, 1, 96>}, {transform_indices = @transform_12, window_bounds = array<i64: 1, 32, 32>}, {transform_indices = @transform_13, window_bounds = array<i64: 1, 1, 32>}, {transform_indices = @transform_14, window_bounds = array<i64: 1, 1, 32>}, {transform_indices = @transform_15, window_bounds = array<i64: 1, 1, 32>}, {transform_indices = @transform_16, window_bounds = array<i64: 1, 32, 128>}, {transform_indices = @transform_17, window_bounds = array<i64: 1, 1, 128>}, {transform_indices = @transform_18, window_bounds = array<i64: 1, 128, 32>}, {transform_indices = @transform_19, window_bounds = array<i64: 1, 1, 32>}, {pipeline_mode = #tpu.pipeline_mode<synchronous>, transform_indices = @transform_20, window_bounds = array<i64: 1, 32>}, {pipeline_mode = #tpu.pipeline_mode<synchronous>, transform_indices = @transform_21, window_bounds = array<i64: 1, 32>}, {pipeline_mode = #tpu.pipeline_mode<synchronous>, transform_indices = @transform_22, window_bounds = array<i64: 32, 128>}, {pipeline_mode = #tpu.pipeline_mode<synchronous>, transform_indices = @transform_23, window_bounds = array<i64: 32, 128>}, {pipeline_mode = #tpu.pipeline_mode<synchronous>, transform_indices = @transform_24, window_bounds = array<i64: 1, 128>}, {pipeline_mode = #tpu.pipeline_mode<synchronous>, transform_indices = @transform_25, window_bounds = array<i64: 2, 8, 128>}]} {
    %c0_i32 = arith.constant 0 : i32
    %0 = arith.cmpi eq, %arg0, %c0_i32 : i32
    %1 = arith.extui %0 : i1 to i32
    %c0_i32_0 = arith.constant 0 : i32
    %2 = arith.cmpi ne, %1, %c0_i32_0 : i32
    scf.if %2 {
      %c0_115 = arith.constant 0 : index
      %c0_116 = arith.constant 0 : index
      %c0_117 = arith.constant 0 : index
      %300 = vector.load %arg1[%c0_115, %c0_116, %c0_117] : memref<2x8x13xf32, #tpu.memory_space<vmem>>, vector<1x8x13xf32>
      %301 = vector.shape_cast %300 : vector<1x8x13xf32> to vector<8x13xf32>
      %302 = arith.truncf %301 : vector<8x13xf32> to vector<8x13xbf16>
      %c0_118 = arith.constant 0 : index
      %c0_119 = arith.constant 0 : index
      %303 = vector.load %arg3[%c0_118, %c0_119] : memref<13x96xbf16, #tpu.memory_space<vmem>>, vector<13x96xbf16>
      %cst_120 = arith.constant dense<0.000000e+00> : vector<8x96xf32>
      %304 = tpu.matmul %302, %303, %cst_120 {dimension_numbers = #tpu.dot_dimension_numbers<[1], [0], [0], [1], [0, 0, 1, 1], [], []>} : vector<8x13xbf16>, vector<13x96xbf16>, vector<8x96xf32> -> vector<8x96xf32>
      %c0_121 = arith.constant 0 : index
      %c0_122 = arith.constant 0 : index
      %305 = vector.load %arg4[%c0_121, %c0_122] : memref<1x96xf32, #tpu.memory_space<vmem>>, vector<1x96xf32>
      %306 = vector.broadcast %305 : vector<1x96xf32> to vector<8x96xf32>
      %307 = arith.addf %304, %306 : vector<8x96xf32>
      %c0_123 = arith.constant 0 : index
      %c0_124 = arith.constant 0 : index
      %c0_125 = arith.constant 0 : index
      %308 = vector.load %arg2[%c0_123, %c0_124, %c0_125] : memref<2x8x32xf32, #tpu.memory_space<vmem>>, vector<1x8x32xf32>
      %309 = vector.shape_cast %308 : vector<1x8x32xf32> to vector<8x32xf32>
      %310 = vector.extract_strided_slice %307 {offsets = [0, 0], sizes = [8, 32], strides = [1, 1]} : vector<8x96xf32> to vector<8x32xf32>
      %311 = arith.addf %310, %309 : vector<8x32xf32>
      %c0_126 = arith.constant 0 : index
      %c0_127 = arith.constant 0 : index
      %312 = vector.load %arg5[%c0_126, %c0_127] : memref<1x32xf32, #tpu.memory_space<vmem>>, vector<1x32xf32>
      %c0_128 = arith.constant 0 : index
      %c0_129 = arith.constant 0 : index
      %313 = vector.load %arg6[%c0_128, %c0_129] : memref<1x32xf32, #tpu.memory_space<vmem>>, vector<1x32xf32>
      %cst_130 = arith.constant dense<0.000000e+00> : vector<8xf32>
      %314 = vector.multi_reduction <add>, %311, %cst_130 [1] : vector<8x32xf32> to vector<8xf32>
      %315 = vector.shape_cast %314 : vector<8xf32> to vector<8x1xf32>
      %cst_131 = arith.constant 3.200000e+01 : f32
      %316 = vector.broadcast %cst_131 : f32 to vector<8x1xf32>
      %317 = arith.divf %315, %316 : vector<8x1xf32>
      %318 = vector.broadcast %317 : vector<8x1xf32> to vector<8x32xf32>
      %319 = arith.subf %311, %318 : vector<8x32xf32>
      %320 = arith.mulf %319, %319 : vector<8x32xf32>
      %cst_132 = arith.constant dense<0.000000e+00> : vector<8xf32>
      %321 = vector.multi_reduction <add>, %320, %cst_132 [1] : vector<8x32xf32> to vector<8xf32>
      %322 = vector.shape_cast %321 : vector<8xf32> to vector<8x1xf32>
      %cst_133 = arith.constant 3.200000e+01 : f32
      %323 = vector.broadcast %cst_133 : f32 to vector<8x1xf32>
      %324 = arith.divf %322, %323 : vector<8x1xf32>
      %325 = vector.broadcast %317 : vector<8x1xf32> to vector<8x32xf32>
      %326 = arith.subf %311, %325 : vector<8x32xf32>
      %cst_134 = arith.constant 9.99999974E-6 : f32
      %327 = vector.broadcast %cst_134 : f32 to vector<8x1xf32>
      %328 = arith.addf %324, %327 : vector<8x1xf32>
      %329 = math.rsqrt %328 : vector<8x1xf32>
      %330 = vector.broadcast %329 : vector<8x1xf32> to vector<8x32xf32>
      %331 = arith.mulf %326, %330 : vector<8x32xf32>
      %332 = vector.broadcast %312 : vector<1x32xf32> to vector<8x32xf32>
      %333 = arith.mulf %331, %332 : vector<8x32xf32>
      %334 = vector.broadcast %313 : vector<1x32xf32> to vector<8x32xf32>
      %335 = arith.addf %333, %334 : vector<8x32xf32>
      %c0_135 = arith.constant 0 : index
      %c0_136 = arith.constant 0 : index
      %336 = vector.load %arg7[%c0_135, %c0_136] : memref<24x32xf32, #tpu.memory_space<vmem>>, vector<8x32xf32>
      %337 = arith.addf %335, %336 : vector<8x32xf32>
      %c0_137 = arith.constant 0 : index
      %c0_138 = arith.constant 0 : index
      %338 = vector.load %arg27[%c0_137, %c0_138] : memref<48x32xf32, #tpu.memory_space<vmem>>, vector<8x32xf32>
      tpu.vector_store %arg27[%c0_137, %c0_138], %337 {strides = array<i32>} : memref<48x32xf32, #tpu.memory_space<vmem>>, vector<8x32xf32>,
      %339 = vector.extract_strided_slice %307 {offsets = [0, 32], sizes = [8, 32], strides = [1, 1]} : vector<8x96xf32> to vector<8x32xf32>
      %340 = arith.addf %339, %309 : vector<8x32xf32>
      %c0_139 = arith.constant 0 : index
      %c0_140 = arith.constant 0 : index
      %341 = vector.load %arg5[%c0_139, %c0_140] : memref<1x32xf32, #tpu.memory_space<vmem>>, vector<1x32xf32>
      %c0_141 = arith.constant 0 : index
      %c0_142 = arith.constant 0 : index
      %342 = vector.load %arg6[%c0_141, %c0_142] : memref<1x32xf32, #tpu.memory_space<vmem>>, vector<1x32xf32>
      %cst_143 = arith.constant dense<0.000000e+00> : vector<8xf32>
      %343 = vector.multi_reduction <add>, %340, %cst_143 [1] : vector<8x32xf32> to vector<8xf32>
      %344 = vector.shape_cast %343 : vector<8xf32> to vector<8x1xf32>
      %cst_144 = arith.constant 3.200000e+01 : f32
      %345 = vector.broadcast %cst_144 : f32 to vector<8x1xf32>
      %346 = arith.divf %344, %345 : vector<8x1xf32>
      %347 = vector.broadcast %346 : vector<8x1xf32> to vector<8x32xf32>
      %348 = arith.subf %340, %347 : vector<8x32xf32>
      %349 = arith.mulf %348, %348 : vector<8x32xf32>
      %cst_145 = arith.constant dense<0.000000e+00> : vector<8xf32>
      %350 = vector.multi_reduction <add>, %349, %cst_145 [1] : vector<8x32xf32> to vector<8xf32>
      %351 = vector.shape_cast %350 : vector<8xf32> to vector<8x1xf32>
      %cst_146 = arith.constant 3.200000e+01 : f32
      %352 = vector.broadcast %cst_146 : f32 to vector<8x1xf32>
      %353 = arith.divf %351, %352 : vector<8x1xf32>
      %354 = vector.broadcast %346 : vector<8x1xf32> to vector<8x32xf32>
      %355 = arith.subf %340, %354 : vector<8x32xf32>
      %cst_147 = arith.constant 9.99999974E-6 : f32
      %356 = vector.broadcast %cst_147 : f32 to vector<8x1xf32>
      %357 = arith.addf %353, %356 : vector<8x1xf32>
      %358 = math.rsqrt %357 : vector<8x1xf32>
      %359 = vector.broadcast %358 : vector<8x1xf32> to vector<8x32xf32>
      %360 = arith.mulf %355, %359 : vector<8x32xf32>
      %361 = vector.broadcast %341 : vector<1x32xf32> to vector<8x32xf32>
      %362 = arith.mulf %360, %361 : vector<8x32xf32>
      %363 = vector.broadcast %342 : vector<1x32xf32> to vector<8x32xf32>
      %364 = arith.addf %362, %363 : vector<8x32xf32>
      %c8_148 = arith.constant 8 : index
      %c0_149 = arith.constant 0 : index
      %365 = vector.load %arg7[%c8_148, %c0_149] : memref<24x32xf32, #tpu.memory_space<vmem>>, vector<8x32xf32>
      %366 = arith.addf %364, %365 : vector<8x32xf32>
      %c8_150 = arith.constant 8 : index
      %c0_151 = arith.constant 0 : index
      %367 = vector.load %arg27[%c8_150, %c0_151] : memref<48x32xf32, #tpu.memory_space<vmem>>, vector<8x32xf32>
      tpu.vector_store %arg27[%c8_150, %c0_151], %366 {strides = array<i32>} : memref<48x32xf32, #tpu.memory_space<vmem>>, vector<8x32xf32>,
      %368 = vector.extract_strided_slice %307 {offsets = [0, 64], sizes = [8, 32], strides = [1, 1]} : vector<8x96xf32> to vector<8x32xf32>
      %369 = arith.addf %368, %309 : vector<8x32xf32>
      %c0_152 = arith.constant 0 : index
      %c0_153 = arith.constant 0 : index
      %370 = vector.load %arg5[%c0_152, %c0_153] : memref<1x32xf32, #tpu.memory_space<vmem>>, vector<1x32xf32>
      %c0_154 = arith.constant 0 : index
      %c0_155 = arith.constant 0 : index
      %371 = vector.load %arg6[%c0_154, %c0_155] : memref<1x32xf32, #tpu.memory_space<vmem>>, vector<1x32xf32>
      %cst_156 = arith.constant dense<0.000000e+00> : vector<8xf32>
      %372 = vector.multi_reduction <add>, %369, %cst_156 [1] : vector<8x32xf32> to vector<8xf32>
      %373 = vector.shape_cast %372 : vector<8xf32> to vector<8x1xf32>
      %cst_157 = arith.constant 3.200000e+01 : f32
      %374 = vector.broadcast %cst_157 : f32 to vector<8x1xf32>
      %375 = arith.divf %373, %374 : vector<8x1xf32>
      %376 = vector.broadcast %375 : vector<8x1xf32> to vector<8x32xf32>
      %377 = arith.subf %369, %376 : vector<8x32xf32>
      %378 = arith.mulf %377, %377 : vector<8x32xf32>
      %cst_158 = arith.constant dense<0.000000e+00> : vector<8xf32>
      %379 = vector.multi_reduction <add>, %378, %cst_158 [1] : vector<8x32xf32> to vector<8xf32>
      %380 = vector.shape_cast %379 : vector<8xf32> to vector<8x1xf32>
      %cst_159 = arith.constant 3.200000e+01 : f32
      %381 = vector.broadcast %cst_159 : f32 to vector<8x1xf32>
      %382 = arith.divf %380, %381 : vector<8x1xf32>
      %383 = vector.broadcast %375 : vector<8x1xf32> to vector<8x32xf32>
      %384 = arith.subf %369, %383 : vector<8x32xf32>
      %cst_160 = arith.constant 9.99999974E-6 : f32
      %385 = vector.broadcast %cst_160 : f32 to vector<8x1xf32>
      %386 = arith.addf %382, %385 : vector<8x1xf32>
      %387 = math.rsqrt %386 : vector<8x1xf32>
      %388 = vector.broadcast %387 : vector<8x1xf32> to vector<8x32xf32>
      %389 = arith.mulf %384, %388 : vector<8x32xf32>
      %390 = vector.broadcast %370 : vector<1x32xf32> to vector<8x32xf32>
      %391 = arith.mulf %389, %390 : vector<8x32xf32>
      %392 = vector.broadcast %371 : vector<1x32xf32> to vector<8x32xf32>
      %393 = arith.addf %391, %392 : vector<8x32xf32>
      %c16_161 = arith.constant 16 : index
      %c0_162 = arith.constant 0 : index
      %394 = vector.load %arg7[%c16_161, %c0_162] : memref<24x32xf32, #tpu.memory_space<vmem>>, vector<8x32xf32>
      %395 = arith.addf %393, %394 : vector<8x32xf32>
      %c16_163 = arith.constant 16 : index
      %c0_164 = arith.constant 0 : index
      %396 = vector.load %arg27[%c16_163, %c0_164] : memref<48x32xf32, #tpu.memory_space<vmem>>, vector<8x32xf32>
      tpu.vector_store %arg27[%c16_163, %c0_164], %395 {strides = array<i32>} : memref<48x32xf32, #tpu.memory_space<vmem>>, vector<8x32xf32>,
      %c1 = arith.constant 1 : index
      %c0_165 = arith.constant 0 : index
      %c0_166 = arith.constant 0 : index
      %397 = vector.load %arg1[%c1, %c0_165, %c0_166] : memref<2x8x13xf32, #tpu.memory_space<vmem>>, vector<1x8x13xf32>
      %398 = vector.shape_cast %397 : vector<1x8x13xf32> to vector<8x13xf32>
      %399 = arith.truncf %398 : vector<8x13xf32> to vector<8x13xbf16>
      %c0_167 = arith.constant 0 : index
      %c0_168 = arith.constant 0 : index
      %400 = vector.load %arg3[%c0_167, %c0_168] : memref<13x96xbf16, #tpu.memory_space<vmem>>, vector<13x96xbf16>
      %cst_169 = arith.constant dense<0.000000e+00> : vector<8x96xf32>
      %401 = tpu.matmul %399, %400, %cst_169 {dimension_numbers = #tpu.dot_dimension_numbers<[1], [0], [0], [1], [0, 0, 1, 1], [], []>} : vector<8x13xbf16>, vector<13x96xbf16>, vector<8x96xf32> -> vector<8x96xf32>
      %c0_170 = arith.constant 0 : index
      %c0_171 = arith.constant 0 : index
      %402 = vector.load %arg4[%c0_170, %c0_171] : memref<1x96xf32, #tpu.memory_space<vmem>>, vector<1x96xf32>
      %403 = vector.broadcast %402 : vector<1x96xf32> to vector<8x96xf32>
      %404 = arith.addf %401, %403 : vector<8x96xf32>
      %c1_172 = arith.constant 1 : index
      %c0_173 = arith.constant 0 : index
      %c0_174 = arith.constant 0 : index
      %405 = vector.load %arg2[%c1_172, %c0_173, %c0_174] : memref<2x8x32xf32, #tpu.memory_space<vmem>>, vector<1x8x32xf32>
      %406 = vector.shape_cast %405 : vector<1x8x32xf32> to vector<8x32xf32>
      %407 = vector.extract_strided_slice %404 {offsets = [0, 0], sizes = [8, 32], strides = [1, 1]} : vector<8x96xf32> to vector<8x32xf32>
      %408 = arith.addf %407, %406 : vector<8x32xf32>
      %c0_175 = arith.constant 0 : index
      %c0_176 = arith.constant 0 : index
      %409 = vector.load %arg5[%c0_175, %c0_176] : memref<1x32xf32, #tpu.memory_space<vmem>>, vector<1x32xf32>
      %c0_177 = arith.constant 0 : index
      %c0_178 = arith.constant 0 : index
      %410 = vector.load %arg6[%c0_177, %c0_178] : memref<1x32xf32, #tpu.memory_space<vmem>>, vector<1x32xf32>
      %cst_179 = arith.constant dense<0.000000e+00> : vector<8xf32>
      %411 = vector.multi_reduction <add>, %408, %cst_179 [1] : vector<8x32xf32> to vector<8xf32>
      %412 = vector.shape_cast %411 : vector<8xf32> to vector<8x1xf32>
      %cst_180 = arith.constant 3.200000e+01 : f32
      %413 = vector.broadcast %cst_180 : f32 to vector<8x1xf32>
      %414 = arith.divf %412, %413 : vector<8x1xf32>
      %415 = vector.broadcast %414 : vector<8x1xf32> to vector<8x32xf32>
      %416 = arith.subf %408, %415 : vector<8x32xf32>
      %417 = arith.mulf %416, %416 : vector<8x32xf32>
      %cst_181 = arith.constant dense<0.000000e+00> : vector<8xf32>
      %418 = vector.multi_reduction <add>, %417, %cst_181 [1] : vector<8x32xf32> to vector<8xf32>
      %419 = vector.shape_cast %418 : vector<8xf32> to vector<8x1xf32>
      %cst_182 = arith.constant 3.200000e+01 : f32
      %420 = vector.broadcast %cst_182 : f32 to vector<8x1xf32>
      %421 = arith.divf %419, %420 : vector<8x1xf32>
      %422 = vector.broadcast %414 : vector<8x1xf32> to vector<8x32xf32>
      %423 = arith.subf %408, %422 : vector<8x32xf32>
      %cst_183 = arith.constant 9.99999974E-6 : f32
      %424 = vector.broadcast %cst_183 : f32 to vector<8x1xf32>
      %425 = arith.addf %421, %424 : vector<8x1xf32>
      %426 = math.rsqrt %425 : vector<8x1xf32>
      %427 = vector.broadcast %426 : vector<8x1xf32> to vector<8x32xf32>
      %428 = arith.mulf %423, %427 : vector<8x32xf32>
      %429 = vector.broadcast %409 : vector<1x32xf32> to vector<8x32xf32>
      %430 = arith.mulf %428, %429 : vector<8x32xf32>
      %431 = vector.broadcast %410 : vector<1x32xf32> to vector<8x32xf32>
      %432 = arith.addf %430, %431 : vector<8x32xf32>
      %c0_184 = arith.constant 0 : index
      %c0_185 = arith.constant 0 : index
      %433 = vector.load %arg7[%c0_184, %c0_185] : memref<24x32xf32, #tpu.memory_space<vmem>>, vector<8x32xf32>
      %434 = arith.addf %432, %433 : vector<8x32xf32>
      %c24_186 = arith.constant 24 : index
      %c0_187 = arith.constant 0 : index
      %435 = vector.load %arg27[%c24_186, %c0_187] : memref<48x32xf32, #tpu.memory_space<vmem>>, vector<8x32xf32>
      tpu.vector_store %arg27[%c24_186, %c0_187], %434 {strides = array<i32>} : memref<48x32xf32, #tpu.memory_space<vmem>>, vector<8x32xf32>,
      %436 = vector.extract_strided_slice %404 {offsets = [0, 32], sizes = [8, 32], strides = [1, 1]} : vector<8x96xf32> to vector<8x32xf32>
      %437 = arith.addf %436, %406 : vector<8x32xf32>
      %c0_188 = arith.constant 0 : index
      %c0_189 = arith.constant 0 : index
      %438 = vector.load %arg5[%c0_188, %c0_189] : memref<1x32xf32, #tpu.memory_space<vmem>>, vector<1x32xf32>
      %c0_190 = arith.constant 0 : index
      %c0_191 = arith.constant 0 : index
      %439 = vector.load %arg6[%c0_190, %c0_191] : memref<1x32xf32, #tpu.memory_space<vmem>>, vector<1x32xf32>
      %cst_192 = arith.constant dense<0.000000e+00> : vector<8xf32>
      %440 = vector.multi_reduction <add>, %437, %cst_192 [1] : vector<8x32xf32> to vector<8xf32>
      %441 = vector.shape_cast %440 : vector<8xf32> to vector<8x1xf32>
      %cst_193 = arith.constant 3.200000e+01 : f32
      %442 = vector.broadcast %cst_193 : f32 to vector<8x1xf32>
      %443 = arith.divf %441, %442 : vector<8x1xf32>
      %444 = vector.broadcast %443 : vector<8x1xf32> to vector<8x32xf32>
      %445 = arith.subf %437, %444 : vector<8x32xf32>
      %446 = arith.mulf %445, %445 : vector<8x32xf32>
      %cst_194 = arith.constant dense<0.000000e+00> : vector<8xf32>
      %447 = vector.multi_reduction <add>, %446, %cst_194 [1] : vector<8x32xf32> to vector<8xf32>
      %448 = vector.shape_cast %447 : vector<8xf32> to vector<8x1xf32>
      %cst_195 = arith.constant 3.200000e+01 : f32
      %449 = vector.broadcast %cst_195 : f32 to vector<8x1xf32>
      %450 = arith.divf %448, %449 : vector<8x1xf32>
      %451 = vector.broadcast %443 : vector<8x1xf32> to vector<8x32xf32>
      %452 = arith.subf %437, %451 : vector<8x32xf32>
      %cst_196 = arith.constant 9.99999974E-6 : f32
      %453 = vector.broadcast %cst_196 : f32 to vector<8x1xf32>
      %454 = arith.addf %450, %453 : vector<8x1xf32>
      %455 = math.rsqrt %454 : vector<8x1xf32>
      %456 = vector.broadcast %455 : vector<8x1xf32> to vector<8x32xf32>
      %457 = arith.mulf %452, %456 : vector<8x32xf32>
      %458 = vector.broadcast %438 : vector<1x32xf32> to vector<8x32xf32>
      %459 = arith.mulf %457, %458 : vector<8x32xf32>
      %460 = vector.broadcast %439 : vector<1x32xf32> to vector<8x32xf32>
      %461 = arith.addf %459, %460 : vector<8x32xf32>
      %c8_197 = arith.constant 8 : index
      %c0_198 = arith.constant 0 : index
      %462 = vector.load %arg7[%c8_197, %c0_198] : memref<24x32xf32, #tpu.memory_space<vmem>>, vector<8x32xf32>
      %463 = arith.addf %461, %462 : vector<8x32xf32>
      %c32 = arith.constant 32 : index
      %c0_199 = arith.constant 0 : index
      %464 = vector.load %arg27[%c32, %c0_199] : memref<48x32xf32, #tpu.memory_space<vmem>>, vector<8x32xf32>
      tpu.vector_store %arg27[%c32, %c0_199], %463 {strides = array<i32>} : memref<48x32xf32, #tpu.memory_space<vmem>>, vector<8x32xf32>,
      %465 = vector.extract_strided_slice %404 {offsets = [0, 64], sizes = [8, 32], strides = [1, 1]} : vector<8x96xf32> to vector<8x32xf32>
      %466 = arith.addf %465, %406 : vector<8x32xf32>
      %c0_200 = arith.constant 0 : index
      %c0_201 = arith.constant 0 : index
      %467 = vector.load %arg5[%c0_200, %c0_201] : memref<1x32xf32, #tpu.memory_space<vmem>>, vector<1x32xf32>
      %c0_202 = arith.constant 0 : index
      %c0_203 = arith.constant 0 : index
      %468 = vector.load %arg6[%c0_202, %c0_203] : memref<1x32xf32, #tpu.memory_space<vmem>>, vector<1x32xf32>
      %cst_204 = arith.constant dense<0.000000e+00> : vector<8xf32>
      %469 = vector.multi_reduction <add>, %466, %cst_204 [1] : vector<8x32xf32> to vector<8xf32>
      %470 = vector.shape_cast %469 : vector<8xf32> to vector<8x1xf32>
      %cst_205 = arith.constant 3.200000e+01 : f32
      %471 = vector.broadcast %cst_205 : f32 to vector<8x1xf32>
      %472 = arith.divf %470, %471 : vector<8x1xf32>
      %473 = vector.broadcast %472 : vector<8x1xf32> to vector<8x32xf32>
      %474 = arith.subf %466, %473 : vector<8x32xf32>
      %475 = arith.mulf %474, %474 : vector<8x32xf32>
      %cst_206 = arith.constant dense<0.000000e+00> : vector<8xf32>
      %476 = vector.multi_reduction <add>, %475, %cst_206 [1] : vector<8x32xf32> to vector<8xf32>
      %477 = vector.shape_cast %476 : vector<8xf32> to vector<8x1xf32>
      %cst_207 = arith.constant 3.200000e+01 : f32
      %478 = vector.broadcast %cst_207 : f32 to vector<8x1xf32>
      %479 = arith.divf %477, %478 : vector<8x1xf32>
      %480 = vector.broadcast %472 : vector<8x1xf32> to vector<8x32xf32>
      %481 = arith.subf %466, %480 : vector<8x32xf32>
      %cst_208 = arith.constant 9.99999974E-6 : f32
      %482 = vector.broadcast %cst_208 : f32 to vector<8x1xf32>
      %483 = arith.addf %479, %482 : vector<8x1xf32>
      %484 = math.rsqrt %483 : vector<8x1xf32>
      %485 = vector.broadcast %484 : vector<8x1xf32> to vector<8x32xf32>
      %486 = arith.mulf %481, %485 : vector<8x32xf32>
      %487 = vector.broadcast %467 : vector<1x32xf32> to vector<8x32xf32>
      %488 = arith.mulf %486, %487 : vector<8x32xf32>
      %489 = vector.broadcast %468 : vector<1x32xf32> to vector<8x32xf32>
      %490 = arith.addf %488, %489 : vector<8x32xf32>
      %c16_209 = arith.constant 16 : index
      %c0_210 = arith.constant 0 : index
      %491 = vector.load %arg7[%c16_209, %c0_210] : memref<24x32xf32, #tpu.memory_space<vmem>>, vector<8x32xf32>
      %492 = arith.addf %490, %491 : vector<8x32xf32>
      %c40 = arith.constant 40 : index
      %c0_211 = arith.constant 0 : index
      %493 = vector.load %arg27[%c40, %c0_211] : memref<48x32xf32, #tpu.memory_space<vmem>>, vector<8x32xf32>
      tpu.vector_store %arg27[%c40, %c0_211], %492 {strides = array<i32>} : memref<48x32xf32, #tpu.memory_space<vmem>>, vector<8x32xf32>,
    } else {
    }
    %c0 = arith.constant 0 : index
    %c0_1 = arith.constant 0 : index
    %3 = vector.load %arg27[%c0, %c0_1] : memref<48x32xf32, #tpu.memory_space<vmem>>, vector<48x32xf32>
    %c0_2 = arith.constant 0 : index
    %c0_3 = arith.constant 0 : index
    %c0_4 = arith.constant 0 : index
    %4 = vector.load %arg9[%c0_2, %c0_3, %c0_4] : memref<1x1x32xf32, #tpu.memory_space<vmem>>, vector<1x1x32xf32>
    %5 = vector.shape_cast %4 : vector<1x1x32xf32> to vector<1x32xf32>
    %c0_5 = arith.constant 0 : index
    %c0_6 = arith.constant 0 : index
    %c0_7 = arith.constant 0 : index
    %6 = vector.load %arg10[%c0_5, %c0_6, %c0_7] : memref<1x1x32xf32, #tpu.memory_space<vmem>>, vector<1x1x32xf32>
    %7 = vector.shape_cast %6 : vector<1x1x32xf32> to vector<1x32xf32>
    %cst = arith.constant dense<0.000000e+00> : vector<48xf32>
    %8 = vector.multi_reduction <add>, %3, %cst [1] : vector<48x32xf32> to vector<48xf32>
    %9 = vector.shape_cast %8 : vector<48xf32> to vector<48x1xf32>
    %cst_8 = arith.constant 3.200000e+01 : f32
    %10 = vector.broadcast %cst_8 : f32 to vector<48x1xf32>
    %11 = arith.divf %9, %10 : vector<48x1xf32>
    %12 = vector.broadcast %11 : vector<48x1xf32> to vector<48x32xf32>
    %13 = arith.subf %3, %12 : vector<48x32xf32>
    %14 = arith.mulf %13, %13 : vector<48x32xf32>
    %cst_9 = arith.constant dense<0.000000e+00> : vector<48xf32>
    %15 = vector.multi_reduction <add>, %14, %cst_9 [1] : vector<48x32xf32> to vector<48xf32>
    %16 = vector.shape_cast %15 : vector<48xf32> to vector<48x1xf32>
    %cst_10 = arith.constant 3.200000e+01 : f32
    %17 = vector.broadcast %cst_10 : f32 to vector<48x1xf32>
    %18 = arith.divf %16, %17 : vector<48x1xf32>
    %19 = vector.broadcast %11 : vector<48x1xf32> to vector<48x32xf32>
    %20 = arith.subf %3, %19 : vector<48x32xf32>
    %cst_11 = arith.constant 9.99999974E-6 : f32
    %21 = vector.broadcast %cst_11 : f32 to vector<48x1xf32>
    %22 = arith.addf %18, %21 : vector<48x1xf32>
    %23 = math.rsqrt %22 : vector<48x1xf32>
    %24 = vector.broadcast %23 : vector<48x1xf32> to vector<48x32xf32>
    %25 = arith.mulf %20, %24 : vector<48x32xf32>
    %26 = vector.broadcast %5 : vector<1x32xf32> to vector<48x32xf32>
    %27 = arith.mulf %25, %26 : vector<48x32xf32>
    %28 = vector.broadcast %7 : vector<1x32xf32> to vector<48x32xf32>
    %29 = arith.addf %27, %28 : vector<48x32xf32>
    %30 = arith.truncf %29 : vector<48x32xf32> to vector<48x32xbf16>
    %c0_12 = arith.constant 0 : index
    %c0_13 = arith.constant 0 : index
    %c0_14 = arith.constant 0 : index
    %31 = vector.load %arg11[%c0_12, %c0_13, %c0_14] : memref<1x32x96xbf16, #tpu.memory_space<vmem>>, vector<1x32x96xbf16>
    %32 = vector.shape_cast %31 : vector<1x32x96xbf16> to vector<32x96xbf16>
    %cst_15 = arith.constant dense<0.000000e+00> : vector<48x96xf32>
    %33 = tpu.matmul %30, %32, %cst_15 {dimension_numbers = #tpu.dot_dimension_numbers<[1], [0], [0], [1], [0, 0, 1, 1], [], []>} : vector<48x32xbf16>, vector<32x96xbf16>, vector<48x96xf32> -> vector<48x96xf32>
    %c0_16 = arith.constant 0 : index
    %c0_17 = arith.constant 0 : index
    %c0_18 = arith.constant 0 : index
    %34 = vector.load %arg12[%c0_16, %c0_17, %c0_18] : memref<1x1x96xf32, #tpu.memory_space<vmem>>, vector<1x1x96xf32>
    %35 = vector.shape_cast %34 : vector<1x1x96xf32> to vector<1x96xf32>
    %36 = vector.broadcast %35 : vector<1x96xf32> to vector<48x96xf32>
    %37 = arith.addf %33, %36 : vector<48x96xf32>
    %c0_19 = arith.constant 0 : index
    %c0_20 = arith.constant 0 : index
    %38 = vector.load %arg8[%c0_19, %c0_20] : memref<24x24xf32, #tpu.memory_space<vmem>>, vector<24x24xf32>
    %39 = vector.extract_strided_slice %37 {offsets = [0, 0], sizes = [24, 8], strides = [1, 1]} : vector<48x96xf32> to vector<24x8xf32>
    %40 = arith.truncf %39 : vector<24x8xf32> to vector<24x8xbf16>
    %41 = vector.extract_strided_slice %37 {offsets = [0, 32], sizes = [24, 8], strides = [1, 1]} : vector<48x96xf32> to vector<24x8xf32>
    %42 = arith.truncf %41 : vector<24x8xf32> to vector<24x8xbf16>
    %43 = vector.extract_strided_slice %37 {offsets = [0, 64], sizes = [24, 8], strides = [1, 1]} : vector<48x96xf32> to vector<24x8xf32>
    %44 = arith.truncf %43 : vector<24x8xf32> to vector<24x8xbf16>
    %cst_21 = arith.constant dense<0.000000e+00> : vector<24x24xf32>
    %45 = tpu.matmul %40, %42, %cst_21 {dimension_numbers = #tpu.dot_dimension_numbers<[1], [1], [0], [0], [0, 0, 1, 0], [], []>} : vector<24x8xbf16>, vector<24x8xbf16>, vector<24x24xf32> -> vector<24x24xf32>
    %cst_22 = arith.constant 0.353553385 : f32
    %46 = vector.broadcast %cst_22 : f32 to vector<24x24xf32>
    %47 = arith.mulf %45, %46 : vector<24x24xf32>
    %48 = arith.addf %47, %38 : vector<24x24xf32>
    %cst_23 = arith.constant dense<0xFF800000> : vector<24xf32>
    %49 = vector.multi_reduction <maximumf>, %48, %cst_23 [1] : vector<24x24xf32> to vector<24xf32>
    %50 = vector.shape_cast %49 : vector<24xf32> to vector<24x1xf32>
    %51 = vector.broadcast %50 : vector<24x1xf32> to vector<24x24xf32>
    %52 = arith.subf %48, %51 : vector<24x24xf32>
    %53 = math.exp %52 : vector<24x24xf32>
    %cst_24 = arith.constant dense<0.000000e+00> : vector<24xf32>
    %54 = vector.multi_reduction <add>, %53, %cst_24 [1] : vector<24x24xf32> to vector<24xf32>
    %55 = vector.shape_cast %54 : vector<24xf32> to vector<24x1xf32>
    %56 = tpu.reciprocal %55 {approx = true} : vector<24x1xf32> -> vector<24x1xf32>
    %57 = vector.broadcast %56 : vector<24x1xf32> to vector<24x24xf32>
    %58 = arith.mulf %53, %57 : vector<24x24xf32>
    %59 = arith.truncf %58 : vector<24x24xf32> to vector<24x24xbf16>
    %cst_25 = arith.constant dense<0.000000e+00> : vector<24x8xf32>
    %60 = tpu.matmul %59, %44, %cst_25 {dimension_numbers = #tpu.dot_dimension_numbers<[1], [0], [0], [1], [0, 0, 1, 1], [], []>} : vector<24x24xbf16>, vector<24x8xbf16>, vector<24x8xf32> -> vector<24x8xf32>
    %61 = arith.truncf %60 : vector<24x8xf32> to vector<24x8xbf16>
    %c0_26 = arith.constant 0 : index
    %c0_27 = arith.constant 0 : index
    %62 = vector.load %arg28[%c0_26, %c0_27] : memref<48x32xbf16, #tpu.memory_space<vmem>>, vector<24x8xbf16>
    tpu.vector_store %arg28[%c0_26, %c0_27], %61 {strides = array<i32>} : memref<48x32xbf16, #tpu.memory_space<vmem>>, vector<24x8xbf16>,
    %63 = vector.extract_strided_slice %37 {offsets = [0, 8], sizes = [24, 8], strides = [1, 1]} : vector<48x96xf32> to vector<24x8xf32>
    %64 = arith.truncf %63 : vector<24x8xf32> to vector<24x8xbf16>
    %65 = vector.extract_strided_slice %37 {offsets = [0, 40], sizes = [24, 8], strides = [1, 1]} : vector<48x96xf32> to vector<24x8xf32>
    %66 = arith.truncf %65 : vector<24x8xf32> to vector<24x8xbf16>
    %67 = vector.extract_strided_slice %37 {offsets = [0, 72], sizes = [24, 8], strides = [1, 1]} : vector<48x96xf32> to vector<24x8xf32>
    %68 = arith.truncf %67 : vector<24x8xf32> to vector<24x8xbf16>
    %cst_28 = arith.constant dense<0.000000e+00> : vector<24x24xf32>
    %69 = tpu.matmul %64, %66, %cst_28 {dimension_numbers = #tpu.dot_dimension_numbers<[1], [1], [0], [0], [0, 0, 1, 0], [], []>} : vector<24x8xbf16>, vector<24x8xbf16>, vector<24x24xf32> -> vector<24x24xf32>
    %cst_29 = arith.constant 0.353553385 : f32
    %70 = vector.broadcast %cst_29 : f32 to vector<24x24xf32>
    %71 = arith.mulf %69, %70 : vector<24x24xf32>
    %72 = arith.addf %71, %38 : vector<24x24xf32>
    %cst_30 = arith.constant dense<0xFF800000> : vector<24xf32>
    %73 = vector.multi_reduction <maximumf>, %72, %cst_30 [1] : vector<24x24xf32> to vector<24xf32>
    %74 = vector.shape_cast %73 : vector<24xf32> to vector<24x1xf32>
    %75 = vector.broadcast %74 : vector<24x1xf32> to vector<24x24xf32>
    %76 = arith.subf %72, %75 : vector<24x24xf32>
    %77 = math.exp %76 : vector<24x24xf32>
    %cst_31 = arith.constant dense<0.000000e+00> : vector<24xf32>
    %78 = vector.multi_reduction <add>, %77, %cst_31 [1] : vector<24x24xf32> to vector<24xf32>
    %79 = vector.shape_cast %78 : vector<24xf32> to vector<24x1xf32>
    %80 = tpu.reciprocal %79 {approx = true} : vector<24x1xf32> -> vector<24x1xf32>
    %81 = vector.broadcast %80 : vector<24x1xf32> to vector<24x24xf32>
    %82 = arith.mulf %77, %81 : vector<24x24xf32>
    %83 = arith.truncf %82 : vector<24x24xf32> to vector<24x24xbf16>
    %cst_32 = arith.constant dense<0.000000e+00> : vector<24x8xf32>
    %84 = tpu.matmul %83, %68, %cst_32 {dimension_numbers = #tpu.dot_dimension_numbers<[1], [0], [0], [1], [0, 0, 1, 1], [], []>} : vector<24x24xbf16>, vector<24x8xbf16>, vector<24x8xf32> -> vector<24x8xf32>
    %85 = arith.truncf %84 : vector<24x8xf32> to vector<24x8xbf16>
    %c0_33 = arith.constant 0 : index
    %c8 = arith.constant 8 : index
    %86 = vector.load %arg28[%c0_33, %c8] : memref<48x32xbf16, #tpu.memory_space<vmem>>, vector<24x8xbf16>
    tpu.vector_store %arg28[%c0_33, %c8], %85 {strides = array<i32>} : memref<48x32xbf16, #tpu.memory_space<vmem>>, vector<24x8xbf16>,
    %87 = vector.extract_strided_slice %37 {offsets = [0, 16], sizes = [24, 8], strides = [1, 1]} : vector<48x96xf32> to vector<24x8xf32>
    %88 = arith.truncf %87 : vector<24x8xf32> to vector<24x8xbf16>
    %89 = vector.extract_strided_slice %37 {offsets = [0, 48], sizes = [24, 8], strides = [1, 1]} : vector<48x96xf32> to vector<24x8xf32>
    %90 = arith.truncf %89 : vector<24x8xf32> to vector<24x8xbf16>
    %91 = vector.extract_strided_slice %37 {offsets = [0, 80], sizes = [24, 8], strides = [1, 1]} : vector<48x96xf32> to vector<24x8xf32>
    %92 = arith.truncf %91 : vector<24x8xf32> to vector<24x8xbf16>
    %cst_34 = arith.constant dense<0.000000e+00> : vector<24x24xf32>
    %93 = tpu.matmul %88, %90, %cst_34 {dimension_numbers = #tpu.dot_dimension_numbers<[1], [1], [0], [0], [0, 0, 1, 0], [], []>} : vector<24x8xbf16>, vector<24x8xbf16>, vector<24x24xf32> -> vector<24x24xf32>
    %cst_35 = arith.constant 0.353553385 : f32
    %94 = vector.broadcast %cst_35 : f32 to vector<24x24xf32>
    %95 = arith.mulf %93, %94 : vector<24x24xf32>
    %96 = arith.addf %95, %38 : vector<24x24xf32>
    %cst_36 = arith.constant dense<0xFF800000> : vector<24xf32>
    %97 = vector.multi_reduction <maximumf>, %96, %cst_36 [1] : vector<24x24xf32> to vector<24xf32>
    %98 = vector.shape_cast %97 : vector<24xf32> to vector<24x1xf32>
    %99 = vector.broadcast %98 : vector<24x1xf32> to vector<24x24xf32>
    %100 = arith.subf %96, %99 : vector<24x24xf32>
    %101 = math.exp %100 : vector<24x24xf32>
    %cst_37 = arith.constant dense<0.000000e+00> : vector<24xf32>
    %102 = vector.multi_reduction <add>, %101, %cst_37 [1] : vector<24x24xf32> to vector<24xf32>
    %103 = vector.shape_cast %102 : vector<24xf32> to vector<24x1xf32>
    %104 = tpu.reciprocal %103 {approx = true} : vector<24x1xf32> -> vector<24x1xf32>
    %105 = vector.broadcast %104 : vector<24x1xf32> to vector<24x24xf32>
    %106 = arith.mulf %101, %105 : vector<24x24xf32>
    %107 = arith.truncf %106 : vector<24x24xf32> to vector<24x24xbf16>
    %cst_38 = arith.constant dense<0.000000e+00> : vector<24x8xf32>
    %108 = tpu.matmul %107, %92, %cst_38 {dimension_numbers = #tpu.dot_dimension_numbers<[1], [0], [0], [1], [0, 0, 1, 1], [], []>} : vector<24x24xbf16>, vector<24x8xbf16>, vector<24x8xf32> -> vector<24x8xf32>
    %109 = arith.truncf %108 : vector<24x8xf32> to vector<24x8xbf16>
    %c0_39 = arith.constant 0 : index
    %c16 = arith.constant 16 : index
    %110 = vector.load %arg28[%c0_39, %c16] : memref<48x32xbf16, #tpu.memory_space<vmem>>, vector<24x8xbf16>
    tpu.vector_store %arg28[%c0_39, %c16], %109 {strides = array<i32>} : memref<48x32xbf16, #tpu.memory_space<vmem>>, vector<24x8xbf16>,
    %111 = vector.extract_strided_slice %37 {offsets = [0, 24], sizes = [24, 8], strides = [1, 1]} : vector<48x96xf32> to vector<24x8xf32>
    %112 = arith.truncf %111 : vector<24x8xf32> to vector<24x8xbf16>
    %113 = vector.extract_strided_slice %37 {offsets = [0, 56], sizes = [24, 8], strides = [1, 1]} : vector<48x96xf32> to vector<24x8xf32>
    %114 = arith.truncf %113 : vector<24x8xf32> to vector<24x8xbf16>
    %115 = vector.extract_strided_slice %37 {offsets = [0, 88], sizes = [24, 8], strides = [1, 1]} : vector<48x96xf32> to vector<24x8xf32>
    %116 = arith.truncf %115 : vector<24x8xf32> to vector<24x8xbf16>
    %cst_40 = arith.constant dense<0.000000e+00> : vector<24x24xf32>
    %117 = tpu.matmul %112, %114, %cst_40 {dimension_numbers = #tpu.dot_dimension_numbers<[1], [1], [0], [0], [0, 0, 1, 0], [], []>} : vector<24x8xbf16>, vector<24x8xbf16>, vector<24x24xf32> -> vector<24x24xf32>
    %cst_41 = arith.constant 0.353553385 : f32
    %118 = vector.broadcast %cst_41 : f32 to vector<24x24xf32>
    %119 = arith.mulf %117, %118 : vector<24x24xf32>
    %120 = arith.addf %119, %38 : vector<24x24xf32>
    %cst_42 = arith.constant dense<0xFF800000> : vector<24xf32>
    %121 = vector.multi_reduction <maximumf>, %120, %cst_42 [1] : vector<24x24xf32> to vector<24xf32>
    %122 = vector.shape_cast %121 : vector<24xf32> to vector<24x1xf32>
    %123 = vector.broadcast %122 : vector<24x1xf32> to vector<24x24xf32>
    %124 = arith.subf %120, %123 : vector<24x24xf32>
    %125 = math.exp %124 : vector<24x24xf32>
    %cst_43 = arith.constant dense<0.000000e+00> : vector<24xf32>
    %126 = vector.multi_reduction <add>, %125, %cst_43 [1] : vector<24x24xf32> to vector<24xf32>
    %127 = vector.shape_cast %126 : vector<24xf32> to vector<24x1xf32>
    %128 = tpu.reciprocal %127 {approx = true} : vector<24x1xf32> -> vector<24x1xf32>
    %129 = vector.broadcast %128 : vector<24x1xf32> to vector<24x24xf32>
    %130 = arith.mulf %125, %129 : vector<24x24xf32>
    %131 = arith.truncf %130 : vector<24x24xf32> to vector<24x24xbf16>
    %cst_44 = arith.constant dense<0.000000e+00> : vector<24x8xf32>
    %132 = tpu.matmul %131, %116, %cst_44 {dimension_numbers = #tpu.dot_dimension_numbers<[1], [0], [0], [1], [0, 0, 1, 1], [], []>} : vector<24x24xbf16>, vector<24x8xbf16>, vector<24x8xf32> -> vector<24x8xf32>
    %133 = arith.truncf %132 : vector<24x8xf32> to vector<24x8xbf16>
    %c0_45 = arith.constant 0 : index
    %c24 = arith.constant 24 : index
    %134 = vector.load %arg28[%c0_45, %c24] : memref<48x32xbf16, #tpu.memory_space<vmem>>, vector<24x8xbf16>
    tpu.vector_store %arg28[%c0_45, %c24], %133 {strides = array<i32>} : memref<48x32xbf16, #tpu.memory_space<vmem>>, vector<24x8xbf16>,
    %135 = vector.extract_strided_slice %37 {offsets = [24, 0], sizes = [24, 8], strides = [1, 1]} : vector<48x96xf32> to vector<24x8xf32>
    %136 = arith.truncf %135 : vector<24x8xf32> to vector<24x8xbf16>
    %137 = vector.extract_strided_slice %37 {offsets = [24, 32], sizes = [24, 8], strides = [1, 1]} : vector<48x96xf32> to vector<24x8xf32>
    %138 = arith.truncf %137 : vector<24x8xf32> to vector<24x8xbf16>
    %139 = vector.extract_strided_slice %37 {offsets = [24, 64], sizes = [24, 8], strides = [1, 1]} : vector<48x96xf32> to vector<24x8xf32>
    %140 = arith.truncf %139 : vector<24x8xf32> to vector<24x8xbf16>
    %cst_46 = arith.constant dense<0.000000e+00> : vector<24x24xf32>
    %141 = tpu.matmul %136, %138, %cst_46 {dimension_numbers = #tpu.dot_dimension_numbers<[1], [1], [0], [0], [0, 0, 1, 0], [], []>} : vector<24x8xbf16>, vector<24x8xbf16>, vector<24x24xf32> -> vector<24x24xf32>
    %cst_47 = arith.constant 0.353553385 : f32
    %142 = vector.broadcast %cst_47 : f32 to vector<24x24xf32>
    %143 = arith.mulf %141, %142 : vector<24x24xf32>
    %144 = arith.addf %143, %38 : vector<24x24xf32>
    %cst_48 = arith.constant dense<0xFF800000> : vector<24xf32>
    %145 = vector.multi_reduction <maximumf>, %144, %cst_48 [1] : vector<24x24xf32> to vector<24xf32>
    %146 = vector.shape_cast %145 : vector<24xf32> to vector<24x1xf32>
    %147 = vector.broadcast %146 : vector<24x1xf32> to vector<24x24xf32>
    %148 = arith.subf %144, %147 : vector<24x24xf32>
    %149 = math.exp %148 : vector<24x24xf32>
    %cst_49 = arith.constant dense<0.000000e+00> : vector<24xf32>
    %150 = vector.multi_reduction <add>, %149, %cst_49 [1] : vector<24x24xf32> to vector<24xf32>
    %151 = vector.shape_cast %150 : vector<24xf32> to vector<24x1xf32>
    %152 = tpu.reciprocal %151 {approx = true} : vector<24x1xf32> -> vector<24x1xf32>
    %153 = vector.broadcast %152 : vector<24x1xf32> to vector<24x24xf32>
    %154 = arith.mulf %149, %153 : vector<24x24xf32>
    %155 = arith.truncf %154 : vector<24x24xf32> to vector<24x24xbf16>
    %cst_50 = arith.constant dense<0.000000e+00> : vector<24x8xf32>
    %156 = tpu.matmul %155, %140, %cst_50 {dimension_numbers = #tpu.dot_dimension_numbers<[1], [0], [0], [1], [0, 0, 1, 1], [], []>} : vector<24x24xbf16>, vector<24x8xbf16>, vector<24x8xf32> -> vector<24x8xf32>
    %157 = arith.truncf %156 : vector<24x8xf32> to vector<24x8xbf16>
    %c24_51 = arith.constant 24 : index
    %c0_52 = arith.constant 0 : index
    %158 = vector.load %arg28[%c24_51, %c0_52] : memref<48x32xbf16, #tpu.memory_space<vmem>>, vector<24x8xbf16>
    tpu.vector_store %arg28[%c24_51, %c0_52], %157 {strides = array<i32>} : memref<48x32xbf16, #tpu.memory_space<vmem>>, vector<24x8xbf16>,
    %159 = vector.extract_strided_slice %37 {offsets = [24, 8], sizes = [24, 8], strides = [1, 1]} : vector<48x96xf32> to vector<24x8xf32>
    %160 = arith.truncf %159 : vector<24x8xf32> to vector<24x8xbf16>
    %161 = vector.extract_strided_slice %37 {offsets = [24, 40], sizes = [24, 8], strides = [1, 1]} : vector<48x96xf32> to vector<24x8xf32>
    %162 = arith.truncf %161 : vector<24x8xf32> to vector<24x8xbf16>
    %163 = vector.extract_strided_slice %37 {offsets = [24, 72], sizes = [24, 8], strides = [1, 1]} : vector<48x96xf32> to vector<24x8xf32>
    %164 = arith.truncf %163 : vector<24x8xf32> to vector<24x8xbf16>
    %cst_53 = arith.constant dense<0.000000e+00> : vector<24x24xf32>
    %165 = tpu.matmul %160, %162, %cst_53 {dimension_numbers = #tpu.dot_dimension_numbers<[1], [1], [0], [0], [0, 0, 1, 0], [], []>} : vector<24x8xbf16>, vector<24x8xbf16>, vector<24x24xf32> -> vector<24x24xf32>
    %cst_54 = arith.constant 0.353553385 : f32
    %166 = vector.broadcast %cst_54 : f32 to vector<24x24xf32>
    %167 = arith.mulf %165, %166 : vector<24x24xf32>
    %168 = arith.addf %167, %38 : vector<24x24xf32>
    %cst_55 = arith.constant dense<0xFF800000> : vector<24xf32>
    %169 = vector.multi_reduction <maximumf>, %168, %cst_55 [1] : vector<24x24xf32> to vector<24xf32>
    %170 = vector.shape_cast %169 : vector<24xf32> to vector<24x1xf32>
    %171 = vector.broadcast %170 : vector<24x1xf32> to vector<24x24xf32>
    %172 = arith.subf %168, %171 : vector<24x24xf32>
    %173 = math.exp %172 : vector<24x24xf32>
    %cst_56 = arith.constant dense<0.000000e+00> : vector<24xf32>
    %174 = vector.multi_reduction <add>, %173, %cst_56 [1] : vector<24x24xf32> to vector<24xf32>
    %175 = vector.shape_cast %174 : vector<24xf32> to vector<24x1xf32>
    %176 = tpu.reciprocal %175 {approx = true} : vector<24x1xf32> -> vector<24x1xf32>
    %177 = vector.broadcast %176 : vector<24x1xf32> to vector<24x24xf32>
    %178 = arith.mulf %173, %177 : vector<24x24xf32>
    %179 = arith.truncf %178 : vector<24x24xf32> to vector<24x24xbf16>
    %cst_57 = arith.constant dense<0.000000e+00> : vector<24x8xf32>
    %180 = tpu.matmul %179, %164, %cst_57 {dimension_numbers = #tpu.dot_dimension_numbers<[1], [0], [0], [1], [0, 0, 1, 1], [], []>} : vector<24x24xbf16>, vector<24x8xbf16>, vector<24x8xf32> -> vector<24x8xf32>
    %181 = arith.truncf %180 : vector<24x8xf32> to vector<24x8xbf16>
    %c24_58 = arith.constant 24 : index
    %c8_59 = arith.constant 8 : index
    %182 = vector.load %arg28[%c24_58, %c8_59] : memref<48x32xbf16, #tpu.memory_space<vmem>>, vector<24x8xbf16>
    tpu.vector_store %arg28[%c24_58, %c8_59], %181 {strides = array<i32>} : memref<48x32xbf16, #tpu.memory_space<vmem>>, vector<24x8xbf16>,
    %183 = vector.extract_strided_slice %37 {offsets = [24, 16], sizes = [24, 8], strides = [1, 1]} : vector<48x96xf32> to vector<24x8xf32>
    %184 = arith.truncf %183 : vector<24x8xf32> to vector<24x8xbf16>
    %185 = vector.extract_strided_slice %37 {offsets = [24, 48], sizes = [24, 8], strides = [1, 1]} : vector<48x96xf32> to vector<24x8xf32>
    %186 = arith.truncf %185 : vector<24x8xf32> to vector<24x8xbf16>
    %187 = vector.extract_strided_slice %37 {offsets = [24, 80], sizes = [24, 8], strides = [1, 1]} : vector<48x96xf32> to vector<24x8xf32>
    %188 = arith.truncf %187 : vector<24x8xf32> to vector<24x8xbf16>
    %cst_60 = arith.constant dense<0.000000e+00> : vector<24x24xf32>
    %189 = tpu.matmul %184, %186, %cst_60 {dimension_numbers = #tpu.dot_dimension_numbers<[1], [1], [0], [0], [0, 0, 1, 0], [], []>} : vector<24x8xbf16>, vector<24x8xbf16>, vector<24x24xf32> -> vector<24x24xf32>
    %cst_61 = arith.constant 0.353553385 : f32
    %190 = vector.broadcast %cst_61 : f32 to vector<24x24xf32>
    %191 = arith.mulf %189, %190 : vector<24x24xf32>
    %192 = arith.addf %191, %38 : vector<24x24xf32>
    %cst_62 = arith.constant dense<0xFF800000> : vector<24xf32>
    %193 = vector.multi_reduction <maximumf>, %192, %cst_62 [1] : vector<24x24xf32> to vector<24xf32>
    %194 = vector.shape_cast %193 : vector<24xf32> to vector<24x1xf32>
    %195 = vector.broadcast %194 : vector<24x1xf32> to vector<24x24xf32>
    %196 = arith.subf %192, %195 : vector<24x24xf32>
    %197 = math.exp %196 : vector<24x24xf32>
    %cst_63 = arith.constant dense<0.000000e+00> : vector<24xf32>
    %198 = vector.multi_reduction <add>, %197, %cst_63 [1] : vector<24x24xf32> to vector<24xf32>
    %199 = vector.shape_cast %198 : vector<24xf32> to vector<24x1xf32>
    %200 = tpu.reciprocal %199 {approx = true} : vector<24x1xf32> -> vector<24x1xf32>
    %201 = vector.broadcast %200 : vector<24x1xf32> to vector<24x24xf32>
    %202 = arith.mulf %197, %201 : vector<24x24xf32>
    %203 = arith.truncf %202 : vector<24x24xf32> to vector<24x24xbf16>
    %cst_64 = arith.constant dense<0.000000e+00> : vector<24x8xf32>
    %204 = tpu.matmul %203, %188, %cst_64 {dimension_numbers = #tpu.dot_dimension_numbers<[1], [0], [0], [1], [0, 0, 1, 1], [], []>} : vector<24x24xbf16>, vector<24x8xbf16>, vector<24x8xf32> -> vector<24x8xf32>
    %205 = arith.truncf %204 : vector<24x8xf32> to vector<24x8xbf16>
    %c24_65 = arith.constant 24 : index
    %c16_66 = arith.constant 16 : index
    %206 = vector.load %arg28[%c24_65, %c16_66] : memref<48x32xbf16, #tpu.memory_space<vmem>>, vector<24x8xbf16>
    tpu.vector_store %arg28[%c24_65, %c16_66], %205 {strides = array<i32>} : memref<48x32xbf16, #tpu.memory_space<vmem>>, vector<24x8xbf16>,
    %207 = vector.extract_strided_slice %37 {offsets = [24, 24], sizes = [24, 8], strides = [1, 1]} : vector<48x96xf32> to vector<24x8xf32>
    %208 = arith.truncf %207 : vector<24x8xf32> to vector<24x8xbf16>
    %209 = vector.extract_strided_slice %37 {offsets = [24, 56], sizes = [24, 8], strides = [1, 1]} : vector<48x96xf32> to vector<24x8xf32>
    %210 = arith.truncf %209 : vector<24x8xf32> to vector<24x8xbf16>
    %211 = vector.extract_strided_slice %37 {offsets = [24, 88], sizes = [24, 8], strides = [1, 1]} : vector<48x96xf32> to vector<24x8xf32>
    %212 = arith.truncf %211 : vector<24x8xf32> to vector<24x8xbf16>
    %cst_67 = arith.constant dense<0.000000e+00> : vector<24x24xf32>
    %213 = tpu.matmul %208, %210, %cst_67 {dimension_numbers = #tpu.dot_dimension_numbers<[1], [1], [0], [0], [0, 0, 1, 0], [], []>} : vector<24x8xbf16>, vector<24x8xbf16>, vector<24x24xf32> -> vector<24x24xf32>
    %cst_68 = arith.constant 0.353553385 : f32
    %214 = vector.broadcast %cst_68 : f32 to vector<24x24xf32>
    %215 = arith.mulf %213, %214 : vector<24x24xf32>
    %216 = arith.addf %215, %38 : vector<24x24xf32>
    %cst_69 = arith.constant dense<0xFF800000> : vector<24xf32>
    %217 = vector.multi_reduction <maximumf>, %216, %cst_69 [1] : vector<24x24xf32> to vector<24xf32>
    %218 = vector.shape_cast %217 : vector<24xf32> to vector<24x1xf32>
    %219 = vector.broadcast %218 : vector<24x1xf32> to vector<24x24xf32>
    %220 = arith.subf %216, %219 : vector<24x24xf32>
    %221 = math.exp %220 : vector<24x24xf32>
    %cst_70 = arith.constant dense<0.000000e+00> : vector<24xf32>
    %222 = vector.multi_reduction <add>, %221, %cst_70 [1] : vector<24x24xf32> to vector<24xf32>
    %223 = vector.shape_cast %222 : vector<24xf32> to vector<24x1xf32>
    %224 = tpu.reciprocal %223 {approx = true} : vector<24x1xf32> -> vector<24x1xf32>
    %225 = vector.broadcast %224 : vector<24x1xf32> to vector<24x24xf32>
    %226 = arith.mulf %221, %225 : vector<24x24xf32>
    %227 = arith.truncf %226 : vector<24x24xf32> to vector<24x24xbf16>
    %cst_71 = arith.constant dense<0.000000e+00> : vector<24x8xf32>
    %228 = tpu.matmul %227, %212, %cst_71 {dimension_numbers = #tpu.dot_dimension_numbers<[1], [0], [0], [1], [0, 0, 1, 1], [], []>} : vector<24x24xbf16>, vector<24x8xbf16>, vector<24x8xf32> -> vector<24x8xf32>
    %229 = arith.truncf %228 : vector<24x8xf32> to vector<24x8xbf16>
    %c24_72 = arith.constant 24 : index
    %c24_73 = arith.constant 24 : index
    %230 = vector.load %arg28[%c24_72, %c24_73] : memref<48x32xbf16, #tpu.memory_space<vmem>>, vector<24x8xbf16>
    tpu.vector_store %arg28[%c24_72, %c24_73], %229 {strides = array<i32>} : memref<48x32xbf16, #tpu.memory_space<vmem>>, vector<24x8xbf16>,
    %c0_74 = arith.constant 0 : index
    %c0_75 = arith.constant 0 : index
    %231 = vector.load %arg28[%c0_74, %c0_75] : memref<48x32xbf16, #tpu.memory_space<vmem>>, vector<48x32xbf16>
    %c0_76 = arith.constant 0 : index
    %c0_77 = arith.constant 0 : index
    %c0_78 = arith.constant 0 : index
    %232 = vector.load %arg13[%c0_76, %c0_77, %c0_78] : memref<1x32x32xbf16, #tpu.memory_space<vmem>>, vector<1x32x32xbf16>
    %233 = vector.shape_cast %232 : vector<1x32x32xbf16> to vector<32x32xbf16>
    %cst_79 = arith.constant dense<0.000000e+00> : vector<48x32xf32>
    %234 = tpu.matmul %231, %233, %cst_79 {dimension_numbers = #tpu.dot_dimension_numbers<[1], [0], [0], [1], [0, 0, 1, 1], [], []>} : vector<48x32xbf16>, vector<32x32xbf16>, vector<48x32xf32> -> vector<48x32xf32>
    %c0_80 = arith.constant 0 : index
    %c0_81 = arith.constant 0 : index
    %c0_82 = arith.constant 0 : index
    %235 = vector.load %arg14[%c0_80, %c0_81, %c0_82] : memref<1x1x32xf32, #tpu.memory_space<vmem>>, vector<1x1x32xf32>
    %236 = vector.shape_cast %235 : vector<1x1x32xf32> to vector<1x32xf32>
    %237 = vector.broadcast %236 : vector<1x32xf32> to vector<48x32xf32>
    %238 = arith.addf %234, %237 : vector<48x32xf32>
    %239 = arith.addf %3, %238 : vector<48x32xf32>
    %c0_83 = arith.constant 0 : index
    %c0_84 = arith.constant 0 : index
    %c0_85 = arith.constant 0 : index
    %240 = vector.load %arg15[%c0_83, %c0_84, %c0_85] : memref<1x1x32xf32, #tpu.memory_space<vmem>>, vector<1x1x32xf32>
    %241 = vector.shape_cast %240 : vector<1x1x32xf32> to vector<1x32xf32>
    %c0_86 = arith.constant 0 : index
    %c0_87 = arith.constant 0 : index
    %c0_88 = arith.constant 0 : index
    %242 = vector.load %arg16[%c0_86, %c0_87, %c0_88] : memref<1x1x32xf32, #tpu.memory_space<vmem>>, vector<1x1x32xf32>
    %243 = vector.shape_cast %242 : vector<1x1x32xf32> to vector<1x32xf32>
    %cst_89 = arith.constant dense<0.000000e+00> : vector<48xf32>
    %244 = vector.multi_reduction <add>, %239, %cst_89 [1] : vector<48x32xf32> to vector<48xf32>
    %245 = vector.shape_cast %244 : vector<48xf32> to vector<48x1xf32>
    %cst_90 = arith.constant 3.200000e+01 : f32
    %246 = vector.broadcast %cst_90 : f32 to vector<48x1xf32>
    %247 = arith.divf %245, %246 : vector<48x1xf32>
    %248 = vector.broadcast %247 : vector<48x1xf32> to vector<48x32xf32>
    %249 = arith.subf %239, %248 : vector<48x32xf32>
    %250 = arith.mulf %249, %249 : vector<48x32xf32>
    %cst_91 = arith.constant dense<0.000000e+00> : vector<48xf32>
    %251 = vector.multi_reduction <add>, %250, %cst_91 [1] : vector<48x32xf32> to vector<48xf32>
    %252 = vector.shape_cast %251 : vector<48xf32> to vector<48x1xf32>
    %cst_92 = arith.constant 3.200000e+01 : f32
    %253 = vector.broadcast %cst_92 : f32 to vector<48x1xf32>
    %254 = arith.divf %252, %253 : vector<48x1xf32>
    %255 = vector.broadcast %247 : vector<48x1xf32> to vector<48x32xf32>
    %256 = arith.subf %239, %255 : vector<48x32xf32>
    %cst_93 = arith.constant 9.99999974E-6 : f32
    %257 = vector.broadcast %cst_93 : f32 to vector<48x1xf32>
    %258 = arith.addf %254, %257 : vector<48x1xf32>
    %259 = math.rsqrt %258 : vector<48x1xf32>
    %260 = vector.broadcast %259 : vector<48x1xf32> to vector<48x32xf32>
    %261 = arith.mulf %256, %260 : vector<48x32xf32>
    %262 = vector.broadcast %241 : vector<1x32xf32> to vector<48x32xf32>
    %263 = arith.mulf %261, %262 : vector<48x32xf32>
    %264 = vector.broadcast %243 : vector<1x32xf32> to vector<48x32xf32>
    %265 = arith.addf %263, %264 : vector<48x32xf32>
    %266 = arith.truncf %265 : vector<48x32xf32> to vector<48x32xbf16>
    %c0_94 = arith.constant 0 : index
    %c0_95 = arith.constant 0 : index
    %c0_96 = arith.constant 0 : index
    %267 = vector.load %arg17[%c0_94, %c0_95, %c0_96] : memref<1x32x128xbf16, #tpu.memory_space<vmem>>, vector<1x32x128xbf16>
    %268 = vector.shape_cast %267 : vector<1x32x128xbf16> to vector<32x128xbf16>
    %cst_97 = arith.constant dense<0.000000e+00> : vector<48x128xf32>
    %269 = tpu.matmul %266, %268, %cst_97 {dimension_numbers = #tpu.dot_dimension_numbers<[1], [0], [0], [1], [0, 0, 1, 1], [], []>} : vector<48x32xbf16>, vector<32x128xbf16>, vector<48x128xf32> -> vector<48x128xf32>
    %c0_98 = arith.constant 0 : index
    %c0_99 = arith.constant 0 : index
    %c0_100 = arith.constant 0 : index
    %270 = vector.load %arg18[%c0_98, %c0_99, %c0_100] : memref<1x1x128xf32, #tpu.memory_space<vmem>>, vector<1x1x128xf32>
    %271 = vector.shape_cast %270 : vector<1x1x128xf32> to vector<1x128xf32>
    %272 = vector.broadcast %271 : vector<1x128xf32> to vector<48x128xf32>
    %273 = arith.addf %269, %272 : vector<48x128xf32>
    %274 = arith.mulf %273, %273 : vector<48x128xf32>
    %275 = arith.mulf %273, %274 : vector<48x128xf32>
    %cst_101 = arith.constant 4.471500e-02 : f32
    %276 = vector.broadcast %cst_101 : f32 to vector<48x128xf32>
    %277 = arith.mulf %276, %275 : vector<48x128xf32>
    %278 = arith.addf %273, %277 : vector<48x128xf32>
    %cst_102 = arith.constant 0.797884583 : f32
    %279 = vector.broadcast %cst_102 : f32 to vector<48x128xf32>
    %280 = arith.mulf %279, %278 : vector<48x128xf32>
    %281 = math.tanh %280 : vector<48x128xf32>
    %cst_103 = arith.constant 1.000000e+00 : f32
    %282 = vector.broadcast %cst_103 : f32 to vector<48x128xf32>
    %283 = arith.addf %282, %281 : vector<48x128xf32>
    %cst_104 = arith.constant 5.000000e-01 : f32
    %284 = vector.broadcast %cst_104 : f32 to vector<48x128xf32>
    %285 = arith.mulf %284, %283 : vector<48x128xf32>
    %286 = arith.mulf %273, %285 : vector<48x128xf32>
    %287 = arith.truncf %286 : vector<48x128xf32> to vector<48x128xbf16>
    %c0_105 = arith.constant 0 : index
    %c0_106 = arith.constant 0 : index
    %c0_107 = arith.constant 0 : index
    %288 = vector.load %arg19[%c0_105, %c0_106, %c0_107] : memref<1x128x32xbf16, #tpu.memory_space<vmem>>, vector<1x128x32xbf16>
    %289 = vector.shape_cast %288 : vector<1x128x32xbf16> to vector<128x32xbf16>
    %cst_108 = arith.constant dense<0.000000e+00> : vector<48x32xf32>
    %290 = tpu.matmul %287, %289, %cst_108 {dimension_numbers = #tpu.dot_dimension_numbers<[1], [0], [0], [1], [0, 0, 1, 1], [], []>} : vector<48x128xbf16>, vector<128x32xbf16>, vector<48x32xf32> -> vector<48x32xf32>
    %c0_109 = arith.constant 0 : index
    %c0_110 = arith.constant 0 : index
    %c0_111 = arith.constant 0 : index
    %291 = vector.load %arg20[%c0_109, %c0_110, %c0_111] : memref<1x1x32xf32, #tpu.memory_space<vmem>>, vector<1x1x32xf32>
    %292 = vector.shape_cast %291 : vector<1x1x32xf32> to vector<1x32xf32>
    %293 = vector.broadcast %292 : vector<1x32xf32> to vector<48x32xf32>
    %294 = arith.addf %290, %293 : vector<48x32xf32>
    %295 = arith.addf %239, %294 : vector<48x32xf32>
    %c0_112 = arith.constant 0 : index
    %c0_113 = arith.constant 0 : index
    %296 = vector.load %arg27[%c0_112, %c0_113] : memref<48x32xf32, #tpu.memory_space<vmem>>, vector<48x32xf32>
    tpu.vector_store %arg27[%c0_112, %c0_113], %295 {strides = array<i32>} : memref<48x32xf32, #tpu.memory_space<vmem>>, vector<48x32xf32>,
    %c1_i32 = arith.constant 1 : i32
    %297 = arith.cmpi eq, %arg0, %c1_i32 : i32
    %298 = arith.extui %297 : i1 to i32
    %c0_i32_114 = arith.constant 0 : i32
    %299 = arith.cmpi ne, %298, %c0_i32_114 : i32
    scf.if %299 {
      %300 = tpu.iota {dimensions = array<i32: 1>} : vector<8x128xi32>
      %c9_i32 = arith.constant 9 : i32
      %301 = vector.broadcast %c9_i32 : i32 to vector<8x128xi32>
      %302 = arith.cmpi sge, %300, %301 : vector<8x128xi32>
      %c13_i32 = arith.constant 13 : i32
      %303 = vector.broadcast %c13_i32 : i32 to vector<8x128xi32>
      %304 = arith.cmpi slt, %300, %303 : vector<8x128xi32>
      %305 = arith.andi %302, %304 : vector<8x128xi1>
      %306 = vector.extract_strided_slice %295 {offsets = [8, 0], sizes = [8, 32], strides = [1, 1]} : vector<48x32xf32> to vector<8x32xf32>
      %c0_115 = arith.constant 0 : index
      %c0_116 = arith.constant 0 : index
      %307 = vector.load %arg21[%c0_115, %c0_116] : memref<1x32xf32, #tpu.memory_space<vmem>>, vector<1x32xf32>
      %c0_117 = arith.constant 0 : index
      %c0_118 = arith.constant 0 : index
      %308 = vector.load %arg22[%c0_117, %c0_118] : memref<1x32xf32, #tpu.memory_space<vmem>>, vector<1x32xf32>
      %cst_119 = arith.constant dense<0.000000e+00> : vector<8xf32>
      %309 = vector.multi_reduction <add>, %306, %cst_119 [1] : vector<8x32xf32> to vector<8xf32>
      %310 = vector.shape_cast %309 : vector<8xf32> to vector<8x1xf32>
      %cst_120 = arith.constant 3.200000e+01 : f32
      %311 = vector.broadcast %cst_120 : f32 to vector<8x1xf32>
      %312 = arith.divf %310, %311 : vector<8x1xf32>
      %313 = vector.broadcast %312 : vector<8x1xf32> to vector<8x32xf32>
      %314 = arith.subf %306, %313 : vector<8x32xf32>
      %315 = arith.mulf %314, %314 : vector<8x32xf32>
      %cst_121 = arith.constant dense<0.000000e+00> : vector<8xf32>
      %316 = vector.multi_reduction <add>, %315, %cst_121 [1] : vector<8x32xf32> to vector<8xf32>
      %317 = vector.shape_cast %316 : vector<8xf32> to vector<8x1xf32>
      %cst_122 = arith.constant 3.200000e+01 : f32
      %318 = vector.broadcast %cst_122 : f32 to vector<8x1xf32>
      %319 = arith.divf %317, %318 : vector<8x1xf32>
      %320 = vector.broadcast %312 : vector<8x1xf32> to vector<8x32xf32>
      %321 = arith.subf %306, %320 : vector<8x32xf32>
      %cst_123 = arith.constant 9.99999974E-6 : f32
      %322 = vector.broadcast %cst_123 : f32 to vector<8x1xf32>
      %323 = arith.addf %319, %322 : vector<8x1xf32>
      %324 = math.rsqrt %323 : vector<8x1xf32>
      %325 = vector.broadcast %324 : vector<8x1xf32> to vector<8x32xf32>
      %326 = arith.mulf %321, %325 : vector<8x32xf32>
      %327 = vector.broadcast %307 : vector<1x32xf32> to vector<8x32xf32>
      %328 = arith.mulf %326, %327 : vector<8x32xf32>
      %329 = vector.broadcast %308 : vector<1x32xf32> to vector<8x32xf32>
      %330 = arith.addf %328, %329 : vector<8x32xf32>
      %331 = arith.truncf %330 : vector<8x32xf32> to vector<8x32xbf16>
      %332 = vector.extract_strided_slice %295 {offsets = [16, 0], sizes = [8, 32], strides = [1, 1]} : vector<48x32xf32> to vector<8x32xf32>
      %c0_124 = arith.constant 0 : index
      %c0_125 = arith.constant 0 : index
      %333 = vector.load %arg21[%c0_124, %c0_125] : memref<1x32xf32, #tpu.memory_space<vmem>>, vector<1x32xf32>
      %c0_126 = arith.constant 0 : index
      %c0_127 = arith.constant 0 : index
      %334 = vector.load %arg22[%c0_126, %c0_127] : memref<1x32xf32, #tpu.memory_space<vmem>>, vector<1x32xf32>
      %cst_128 = arith.constant dense<0.000000e+00> : vector<8xf32>
      %335 = vector.multi_reduction <add>, %332, %cst_128 [1] : vector<8x32xf32> to vector<8xf32>
      %336 = vector.shape_cast %335 : vector<8xf32> to vector<8x1xf32>
      %cst_129 = arith.constant 3.200000e+01 : f32
      %337 = vector.broadcast %cst_129 : f32 to vector<8x1xf32>
      %338 = arith.divf %336, %337 : vector<8x1xf32>
      %339 = vector.broadcast %338 : vector<8x1xf32> to vector<8x32xf32>
      %340 = arith.subf %332, %339 : vector<8x32xf32>
      %341 = arith.mulf %340, %340 : vector<8x32xf32>
      %cst_130 = arith.constant dense<0.000000e+00> : vector<8xf32>
      %342 = vector.multi_reduction <add>, %341, %cst_130 [1] : vector<8x32xf32> to vector<8xf32>
      %343 = vector.shape_cast %342 : vector<8xf32> to vector<8x1xf32>
      %cst_131 = arith.constant 3.200000e+01 : f32
      %344 = vector.broadcast %cst_131 : f32 to vector<8x1xf32>
      %345 = arith.divf %343, %344 : vector<8x1xf32>
      %346 = vector.broadcast %338 : vector<8x1xf32> to vector<8x32xf32>
      %347 = arith.subf %332, %346 : vector<8x32xf32>
      %cst_132 = arith.constant 9.99999974E-6 : f32
      %348 = vector.broadcast %cst_132 : f32 to vector<8x1xf32>
      %349 = arith.addf %345, %348 : vector<8x1xf32>
      %350 = math.rsqrt %349 : vector<8x1xf32>
      %351 = vector.broadcast %350 : vector<8x1xf32> to vector<8x32xf32>
      %352 = arith.mulf %347, %351 : vector<8x32xf32>
      %353 = vector.broadcast %333 : vector<1x32xf32> to vector<8x32xf32>
      %354 = arith.mulf %352, %353 : vector<8x32xf32>
      %355 = vector.broadcast %334 : vector<1x32xf32> to vector<8x32xf32>
      %356 = arith.addf %354, %355 : vector<8x32xf32>
      %357 = arith.truncf %356 : vector<8x32xf32> to vector<8x32xbf16>
      %c0_133 = arith.constant 0 : index
      %c0_134 = arith.constant 0 : index
      %358 = vector.load %arg23[%c0_133, %c0_134] : memref<32x128xbf16, #tpu.memory_space<vmem>>, vector<32x128xbf16>
      %cst_135 = arith.constant dense<0.000000e+00> : vector<8x128xf32>
      %359 = tpu.matmul %357, %358, %cst_135 {dimension_numbers = #tpu.dot_dimension_numbers<[1], [0], [0], [1], [0, 0, 1, 1], [], []>} : vector<8x32xbf16>, vector<32x128xbf16>, vector<8x128xf32> -> vector<8x128xf32>
      %c0_136 = arith.constant 0 : index
      %c0_137 = arith.constant 0 : index
      %360 = vector.load %arg24[%c0_136, %c0_137] : memref<32x128xbf16, #tpu.memory_space<vmem>>, vector<32x128xbf16>
      %cst_138 = arith.constant dense<0.000000e+00> : vector<8x128xf32>
      %361 = tpu.matmul %331, %360, %cst_138 {dimension_numbers = #tpu.dot_dimension_numbers<[1], [0], [0], [1], [0, 0, 1, 1], [], []>} : vector<8x32xbf16>, vector<32x128xbf16>, vector<8x128xf32> -> vector<8x128xf32>
      %362 = arith.addf %359, %361 : vector<8x128xf32>
      %c0_139 = arith.constant 0 : index
      %c0_140 = arith.constant 0 : index
      %363 = vector.load %arg25[%c0_139, %c0_140] : memref<1x128xf32, #tpu.memory_space<vmem>>, vector<1x128xf32>
      %364 = vector.broadcast %363 : vector<1x128xf32> to vector<8x128xf32>
      %365 = arith.addf %362, %364 : vector<8x128xf32>
      %366 = math.tanh %365 : vector<8x128xf32>
      %367 = arith.select %305, %366, %365 : vector<8x128xi1>, vector<8x128xf32>
      %c0_141 = arith.constant 0 : index
      %c0_142 = arith.constant 0 : index
      %c0_143 = arith.constant 0 : index
      %368 = vector.load %arg26[%c0_141, %c0_142, %c0_143] : memref<2x8x128xf32, #tpu.memory_space<vmem>>, vector<1x8x128xf32>
      %369 = vector.shape_cast %368 : vector<1x8x128xf32> to vector<8x128xf32>
      %370 = vector.shape_cast %367 : vector<8x128xf32> to vector<1x8x128xf32>
      tpu.vector_store %arg26[%c0_141, %c0_142, %c0_143], %370 {strides = array<i32>} : memref<2x8x128xf32, #tpu.memory_space<vmem>>, vector<1x8x128xf32>,
      %371 = vector.extract_strided_slice %295 {offsets = [32, 0], sizes = [8, 32], strides = [1, 1]} : vector<48x32xf32> to vector<8x32xf32>
      %c0_144 = arith.constant 0 : index
      %c0_145 = arith.constant 0 : index
      %372 = vector.load %arg21[%c0_144, %c0_145] : memref<1x32xf32, #tpu.memory_space<vmem>>, vector<1x32xf32>
      %c0_146 = arith.constant 0 : index
      %c0_147 = arith.constant 0 : index
      %373 = vector.load %arg22[%c0_146, %c0_147] : memref<1x32xf32, #tpu.memory_space<vmem>>, vector<1x32xf32>
      %cst_148 = arith.constant dense<0.000000e+00> : vector<8xf32>
      %374 = vector.multi_reduction <add>, %371, %cst_148 [1] : vector<8x32xf32> to vector<8xf32>
      %375 = vector.shape_cast %374 : vector<8xf32> to vector<8x1xf32>
      %cst_149 = arith.constant 3.200000e+01 : f32
      %376 = vector.broadcast %cst_149 : f32 to vector<8x1xf32>
      %377 = arith.divf %375, %376 : vector<8x1xf32>
      %378 = vector.broadcast %377 : vector<8x1xf32> to vector<8x32xf32>
      %379 = arith.subf %371, %378 : vector<8x32xf32>
      %380 = arith.mulf %379, %379 : vector<8x32xf32>
      %cst_150 = arith.constant dense<0.000000e+00> : vector<8xf32>
      %381 = vector.multi_reduction <add>, %380, %cst_150 [1] : vector<8x32xf32> to vector<8xf32>
      %382 = vector.shape_cast %381 : vector<8xf32> to vector<8x1xf32>
      %cst_151 = arith.constant 3.200000e+01 : f32
      %383 = vector.broadcast %cst_151 : f32 to vector<8x1xf32>
      %384 = arith.divf %382, %383 : vector<8x1xf32>
      %385 = vector.broadcast %377 : vector<8x1xf32> to vector<8x32xf32>
      %386 = arith.subf %371, %385 : vector<8x32xf32>
      %cst_152 = arith.constant 9.99999974E-6 : f32
      %387 = vector.broadcast %cst_152 : f32 to vector<8x1xf32>
      %388 = arith.addf %384, %387 : vector<8x1xf32>
      %389 = math.rsqrt %388 : vector<8x1xf32>
      %390 = vector.broadcast %389 : vector<8x1xf32> to vector<8x32xf32>
      %391 = arith.mulf %386, %390 : vector<8x32xf32>
      %392 = vector.broadcast %372 : vector<1x32xf32> to vector<8x32xf32>
      %393 = arith.mulf %391, %392 : vector<8x32xf32>
      %394 = vector.broadcast %373 : vector<1x32xf32> to vector<8x32xf32>
      %395 = arith.addf %393, %394 : vector<8x32xf32>
      %396 = arith.truncf %395 : vector<8x32xf32> to vector<8x32xbf16>
      %397 = vector.extract_strided_slice %295 {offsets = [40, 0], sizes = [8, 32], strides = [1, 1]} : vector<48x32xf32> to vector<8x32xf32>
      %c0_153 = arith.constant 0 : index
      %c0_154 = arith.constant 0 : index
      %398 = vector.load %arg21[%c0_153, %c0_154] : memref<1x32xf32, #tpu.memory_space<vmem>>, vector<1x32xf32>
      %c0_155 = arith.constant 0 : index
      %c0_156 = arith.constant 0 : index
      %399 = vector.load %arg22[%c0_155, %c0_156] : memref<1x32xf32, #tpu.memory_space<vmem>>, vector<1x32xf32>
      %cst_157 = arith.constant dense<0.000000e+00> : vector<8xf32>
      %400 = vector.multi_reduction <add>, %397, %cst_157 [1] : vector<8x32xf32> to vector<8xf32>
      %401 = vector.shape_cast %400 : vector<8xf32> to vector<8x1xf32>
      %cst_158 = arith.constant 3.200000e+01 : f32
      %402 = vector.broadcast %cst_158 : f32 to vector<8x1xf32>
      %403 = arith.divf %401, %402 : vector<8x1xf32>
      %404 = vector.broadcast %403 : vector<8x1xf32> to vector<8x32xf32>
      %405 = arith.subf %397, %404 : vector<8x32xf32>
      %406 = arith.mulf %405, %405 : vector<8x32xf32>
      %cst_159 = arith.constant dense<0.000000e+00> : vector<8xf32>
      %407 = vector.multi_reduction <add>, %406, %cst_159 [1] : vector<8x32xf32> to vector<8xf32>
      %408 = vector.shape_cast %407 : vector<8xf32> to vector<8x1xf32>
      %cst_160 = arith.constant 3.200000e+01 : f32
      %409 = vector.broadcast %cst_160 : f32 to vector<8x1xf32>
      %410 = arith.divf %408, %409 : vector<8x1xf32>
      %411 = vector.broadcast %403 : vector<8x1xf32> to vector<8x32xf32>
      %412 = arith.subf %397, %411 : vector<8x32xf32>
      %cst_161 = arith.constant 9.99999974E-6 : f32
      %413 = vector.broadcast %cst_161 : f32 to vector<8x1xf32>
      %414 = arith.addf %410, %413 : vector<8x1xf32>
      %415 = math.rsqrt %414 : vector<8x1xf32>
      %416 = vector.broadcast %415 : vector<8x1xf32> to vector<8x32xf32>
      %417 = arith.mulf %412, %416 : vector<8x32xf32>
      %418 = vector.broadcast %398 : vector<1x32xf32> to vector<8x32xf32>
      %419 = arith.mulf %417, %418 : vector<8x32xf32>
      %420 = vector.broadcast %399 : vector<1x32xf32> to vector<8x32xf32>
      %421 = arith.addf %419, %420 : vector<8x32xf32>
      %422 = arith.truncf %421 : vector<8x32xf32> to vector<8x32xbf16>
      %c0_162 = arith.constant 0 : index
      %c0_163 = arith.constant 0 : index
      %423 = vector.load %arg23[%c0_162, %c0_163] : memref<32x128xbf16, #tpu.memory_space<vmem>>, vector<32x128xbf16>
      %cst_164 = arith.constant dense<0.000000e+00> : vector<8x128xf32>
      %424 = tpu.matmul %422, %423, %cst_164 {dimension_numbers = #tpu.dot_dimension_numbers<[1], [0], [0], [1], [0, 0, 1, 1], [], []>} : vector<8x32xbf16>, vector<32x128xbf16>, vector<8x128xf32> -> vector<8x128xf32>
      %c0_165 = arith.constant 0 : index
      %c0_166 = arith.constant 0 : index
      %425 = vector.load %arg24[%c0_165, %c0_166] : memref<32x128xbf16, #tpu.memory_space<vmem>>, vector<32x128xbf16>
      %cst_167 = arith.constant dense<0.000000e+00> : vector<8x128xf32>
      %426 = tpu.matmul %396, %425, %cst_167 {dimension_numbers = #tpu.dot_dimension_numbers<[1], [0], [0], [1], [0, 0, 1, 1], [], []>} : vector<8x32xbf16>, vector<32x128xbf16>, vector<8x128xf32> -> vector<8x128xf32>
      %427 = arith.addf %424, %426 : vector<8x128xf32>
      %c0_168 = arith.constant 0 : index
      %c0_169 = arith.constant 0 : index
      %428 = vector.load %arg25[%c0_168, %c0_169] : memref<1x128xf32, #tpu.memory_space<vmem>>, vector<1x128xf32>
      %429 = vector.broadcast %428 : vector<1x128xf32> to vector<8x128xf32>
      %430 = arith.addf %427, %429 : vector<8x128xf32>
      %431 = math.tanh %430 : vector<8x128xf32>
      %432 = arith.select %305, %431, %430 : vector<8x128xi1>, vector<8x128xf32>
      %c1 = arith.constant 1 : index
      %c0_170 = arith.constant 0 : index
      %c0_171 = arith.constant 0 : index
      %433 = vector.load %arg26[%c1, %c0_170, %c0_171] : memref<2x8x128xf32, #tpu.memory_space<vmem>>, vector<1x8x128xf32>
      %434 = vector.shape_cast %433 : vector<1x8x128xf32> to vector<8x128xf32>
      %435 = vector.shape_cast %432 : vector<8x128xf32> to vector<1x8x128xf32>
      tpu.vector_store %arg26[%c1, %c0_170, %c0_171], %435 {strides = array<i32>} : memref<2x8x128xf32, #tpu.memory_space<vmem>>, vector<1x8x128xf32>,
    } else {
    }
    return
  }
  func.func @transform_0(%arg0: i32) -> (i32, i32, i32) {
    %c0_i32 = arith.constant 0 : i32
    %c0_i32_0 = arith.constant 0 : i32
    %c0_i32_1 = arith.constant 0 : i32
    %c0_i32_2 = arith.constant 0 : i32
    return %c0_i32, %c0_i32_0, %c0_i32_1 : i32, i32, i32
  }
  func.func @transform_1(%arg0: i32) -> (i32, i32, i32) {
    %c0_i32 = arith.constant 0 : i32
    %c0_i32_0 = arith.constant 0 : i32
    %c0_i32_1 = arith.constant 0 : i32
    %c0_i32_2 = arith.constant 0 : i32
    return %c0_i32, %c0_i32_0, %c0_i32_1 : i32, i32, i32
  }
  func.func @transform_2(%arg0: i32) -> (i32, i32) {
    %c0_i32 = arith.constant 0 : i32
    %c0_i32_0 = arith.constant 0 : i32
    %c0_i32_1 = arith.constant 0 : i32
    return %c0_i32, %c0_i32_0 : i32, i32
  }
  func.func @transform_3(%arg0: i32) -> (i32, i32) {
    %c0_i32 = arith.constant 0 : i32
    %c0_i32_0 = arith.constant 0 : i32
    %c0_i32_1 = arith.constant 0 : i32
    return %c0_i32, %c0_i32_0 : i32, i32
  }
  func.func @transform_4(%arg0: i32) -> (i32, i32) {
    %c0_i32 = arith.constant 0 : i32
    %c0_i32_0 = arith.constant 0 : i32
    %c0_i32_1 = arith.constant 0 : i32
    return %c0_i32, %c0_i32_0 : i32, i32
  }
  func.func @transform_5(%arg0: i32) -> (i32, i32) {
    %c0_i32 = arith.constant 0 : i32
    %c0_i32_0 = arith.constant 0 : i32
    %c0_i32_1 = arith.constant 0 : i32
    return %c0_i32, %c0_i32_0 : i32, i32
  }
  func.func @transform_6(%arg0: i32) -> (i32, i32) {
    %c0_i32 = arith.constant 0 : i32
    %c0_i32_0 = arith.constant 0 : i32
    %c0_i32_1 = arith.constant 0 : i32
    return %c0_i32, %c0_i32_0 : i32, i32
  }
  func.func @transform_7(%arg0: i32) -> (i32, i32) {
    %c0_i32 = arith.constant 0 : i32
    %c0_i32_0 = arith.constant 0 : i32
    %c0_i32_1 = arith.constant 0 : i32
    return %c0_i32, %c0_i32_0 : i32, i32
  }
  func.func @transform_8(%arg0: i32) -> (i32, i32, i32) {
    %c0_i32 = arith.constant 0 : i32
    %c0_i32_0 = arith.constant 0 : i32
    %c0_i32_1 = arith.constant 0 : i32
    return %arg0, %c0_i32, %c0_i32_0 : i32, i32, i32
  }
  func.func @transform_9(%arg0: i32) -> (i32, i32, i32) {
    %c0_i32 = arith.constant 0 : i32
    %c0_i32_0 = arith.constant 0 : i32
    %c0_i32_1 = arith.constant 0 : i32
    return %arg0, %c0_i32, %c0_i32_0 : i32, i32, i32
  }
  func.func @transform_10(%arg0: i32) -> (i32, i32, i32) {
    %c0_i32 = arith.constant 0 : i32
    %c0_i32_0 = arith.constant 0 : i32
    %c0_i32_1 = arith.constant 0 : i32
    return %arg0, %c0_i32, %c0_i32_0 : i32, i32, i32
  }
  func.func @transform_11(%arg0: i32) -> (i32, i32, i32) {
    %c0_i32 = arith.constant 0 : i32
    %c0_i32_0 = arith.constant 0 : i32
    %c0_i32_1 = arith.constant 0 : i32
    return %arg0, %c0_i32, %c0_i32_0 : i32, i32, i32
  }
  func.func @transform_12(%arg0: i32) -> (i32, i32, i32) {
    %c0_i32 = arith.constant 0 : i32
    %c0_i32_0 = arith.constant 0 : i32
    %c0_i32_1 = arith.constant 0 : i32
    return %arg0, %c0_i32, %c0_i32_0 : i32, i32, i32
  }
  func.func @transform_13(%arg0: i32) -> (i32, i32, i32) {
    %c0_i32 = arith.constant 0 : i32
    %c0_i32_0 = arith.constant 0 : i32
    %c0_i32_1 = arith.constant 0 : i32
    return %arg0, %c0_i32, %c0_i32_0 : i32, i32, i32
  }
  func.func @transform_14(%arg0: i32) -> (i32, i32, i32) {
    %c0_i32 = arith.constant 0 : i32
    %c0_i32_0 = arith.constant 0 : i32
    %c0_i32_1 = arith.constant 0 : i32
    return %arg0, %c0_i32, %c0_i32_0 : i32, i32, i32
  }
  func.func @transform_15(%arg0: i32) -> (i32, i32, i32) {
    %c0_i32 = arith.constant 0 : i32
    %c0_i32_0 = arith.constant 0 : i32
    %c0_i32_1 = arith.constant 0 : i32
    return %arg0, %c0_i32, %c0_i32_0 : i32, i32, i32
  }
  func.func @transform_16(%arg0: i32) -> (i32, i32, i32) {
    %c0_i32 = arith.constant 0 : i32
    %c0_i32_0 = arith.constant 0 : i32
    %c0_i32_1 = arith.constant 0 : i32
    return %arg0, %c0_i32, %c0_i32_0 : i32, i32, i32
  }
  func.func @transform_17(%arg0: i32) -> (i32, i32, i32) {
    %c0_i32 = arith.constant 0 : i32
    %c0_i32_0 = arith.constant 0 : i32
    %c0_i32_1 = arith.constant 0 : i32
    return %arg0, %c0_i32, %c0_i32_0 : i32, i32, i32
  }
  func.func @transform_18(%arg0: i32) -> (i32, i32, i32) {
    %c0_i32 = arith.constant 0 : i32
    %c0_i32_0 = arith.constant 0 : i32
    %c0_i32_1 = arith.constant 0 : i32
    return %arg0, %c0_i32, %c0_i32_0 : i32, i32, i32
  }
  func.func @transform_19(%arg0: i32) -> (i32, i32, i32) {
    %c0_i32 = arith.constant 0 : i32
    %c0_i32_0 = arith.constant 0 : i32
    %c0_i32_1 = arith.constant 0 : i32
    return %arg0, %c0_i32, %c0_i32_0 : i32, i32, i32
  }
  func.func @transform_20(%arg0: i32) -> (i32, i32) {
    %c0_i32 = arith.constant 0 : i32
    %c0_i32_0 = arith.constant 0 : i32
    %c0_i32_1 = arith.constant 0 : i32
    return %c0_i32, %c0_i32_0 : i32, i32
  }
  func.func @transform_21(%arg0: i32) -> (i32, i32) {
    %c0_i32 = arith.constant 0 : i32
    %c0_i32_0 = arith.constant 0 : i32
    %c0_i32_1 = arith.constant 0 : i32
    return %c0_i32, %c0_i32_0 : i32, i32
  }
  func.func @transform_22(%arg0: i32) -> (i32, i32) {
    %c0_i32 = arith.constant 0 : i32
    %c0_i32_0 = arith.constant 0 : i32
    %c0_i32_1 = arith.constant 0 : i32
    return %c0_i32, %c0_i32_0 : i32, i32
  }
  func.func @transform_23(%arg0: i32) -> (i32, i32) {
    %c0_i32 = arith.constant 0 : i32
    %c0_i32_0 = arith.constant 0 : i32
    %c0_i32_1 = arith.constant 0 : i32
    return %c0_i32, %c0_i32_0 : i32, i32
  }
  func.func @transform_24(%arg0: i32) -> (i32, i32) {
    %c0_i32 = arith.constant 0 : i32
    %c0_i32_0 = arith.constant 0 : i32
    %c0_i32_1 = arith.constant 0 : i32
    return %c0_i32, %c0_i32_0 : i32, i32
  }
  func.func @transform_25(%arg0: i32) -> (i32, i32, i32) {
    %c0_i32 = arith.constant 0 : i32
    %c0_i32_0 = arith.constant 0 : i32
    %c0_i32_1 = arith.constant 0 : i32
    %c0_i32_2 = arith.constant 0 : i32
    return %c0_i32, %c0_i32_0, %c0_i32_1 : i32, i32, i32
  }
}

</mosaic_0001>

<llo_original>
// kernel: decision_transformer_forward.1
$region0: #{decision_transformer_forward.1}
  #allocation0 [shape = 'u32[]', space=smem, size = 0x4, offset = 0x4, fixed_abs, tag = 'smem constant byte address 0x4 - core index']
  #allocation1 [shape = 'u32[144,128]{1,0:T(1,128)}', space=vmem, size = 0x12000, scoped, tag = 'internal scratch']
  #allocation2 [shape = 'f32[48,32]{1,0:T(8,128)}', space=vmem, size = 0x6000, scoped, tag = 'scratch operand']
  #allocation3 [shape = 'bf16[48,32]{1,0:T(8,128)(2,1)}', space=vmem, size = 0x3000, scoped, tag = 'scratch operand']
  %s0 = inlined_call_operand.vmem [shape: f32[2,8,13], index: 0, kind: input, shape index: {}]
  %s1 = inlined_call_operand.vmem [shape: f32[2,8,32], index: 1, kind: input, shape index: {}]
  %s2 = inlined_call_operand.vmem [shape: bf16[13,96], index: 2, kind: input, shape index: {}]
  %s3 = inlined_call_operand.vmem [shape: f32[1,96], index: 3, kind: input, shape index: {}]
  %s4 = inlined_call_operand.vmem [shape: f32[1,32], index: 4, kind: input, shape index: {}]
  %s5 = inlined_call_operand.vmem [shape: f32[1,32], index: 5, kind: input, shape index: {}]
  %s6 = inlined_call_operand.vmem [shape: f32[24,32], index: 6, kind: input, shape index: {}]
  %s7 = inlined_call_operand.vmem [shape: f32[24,24], index: 7, kind: input, shape index: {}]
  %s8 = inlined_call_operand.vmem [shape: f32[2,1,32], index: 8, kind: input, shape index: {}]
  %s9 = inlined_call_operand.vmem [shape: f32[2,1,32], index: 9, kind: input, shape index: {}]
  %s10 = inlined_call_operand.vmem [shape: bf16[2,32,96], index: 10, kind: input, shape index: {}]
  %s11 = inlined_call_operand.vmem [shape: f32[2,1,96], index: 11, kind: input, shape index: {}]
  %s12 = inlined_call_operand.vmem [shape: bf16[2,32,32], index: 12, kind: input, shape index: {}]
  %s13 = inlined_call_operand.vmem [shape: f32[2,1,32], index: 13, kind: input, shape index: {}]
  %s14 = inlined_call_operand.vmem [shape: f32[2,1,32], index: 14, kind: input, shape index: {}]
  %s15 = inlined_call_operand.vmem [shape: f32[2,1,32], index: 15, kind: input, shape index: {}]
  %s16 = inlined_call_operand.vmem [shape: bf16[2,32,128], index: 16, kind: input, shape index: {}]
  %s17 = inlined_call_operand.vmem [shape: f32[2,1,128], index: 17, kind: input, shape index: {}]
  %s18 = inlined_call_operand.vmem [shape: bf16[2,128,32], index: 18, kind: input, shape index: {}]
  %s19 = inlined_call_operand.vmem [shape: f32[2,1,32], index: 19, kind: input, shape index: {}]
  %s20 = inlined_call_operand.vmem [shape: f32[1,32], index: 20, kind: input, shape index: {}]
  %s21 = inlined_call_operand.vmem [shape: f32[1,32], index: 21, kind: input, shape index: {}]
  %s22 = inlined_call_operand.vmem [shape: bf16[32,128], index: 22, kind: input, shape index: {}]
  %s23 = inlined_call_operand.vmem [shape: bf16[32,128], index: 23, kind: input, shape index: {}]
  %s24 = inlined_call_operand.vmem [shape: f32[1,128], index: 24, kind: input, shape index: {}]
  %s25 = inlined_call_operand.vmem [shape: f32[2,8,128], index: 25, kind: output, shape index: {}]
  %s26 = sld [smem:[#allocation0]]
  $region141: #{decision_transformer_forward.1} parent=0
    _
  %s28 = ssub.s32 1, %s26
  %s29 = scalar_select 0, %s28, %s26
  loop: start=0, step=1, limit=4
  $region2: #{decision_transformer_forward.1} parent=0 // loop_pre_header
    _
  $region3: #{decision_transformer_forward.1} parent=0 // loop_header
    %s31 = sphi 0, %s35
    %p32 = scmp.ge.s32.totalorder %s31, 4
    %s39 = sphi 0, %s39
    %s41 = sphi 0, %s39
    %s42 = sphi 0, %s41
    %s56 = sphi 0, %s42
    %s60 = sphi 0, %s60
    %s62 = sphi 0, %s60
    %s63 = sphi 0, %s62
    %s77 = sphi 0, %s63
    %s81 = sphi 0, %s81
    %s83 = sphi 0, %s81
    %s84 = sphi 0, %s83
    %s98 = sphi 0, %s84
    %s102 = sphi 0, %s102
    %s104 = sphi 0, %s102
    %s105 = sphi 0, %s104
    %s119 = sphi 0, %s105
    %s123 = sphi 0, %s123
    %s125 = sphi 0, %s123
    %s126 = sphi 0, %s125
    %s140 = sphi 0, %s126
    %s144 = sphi 0, %s144
    %s146 = sphi 0, %s144
    %s147 = sphi 0, %s146
    %s161 = sphi 0, %s147
    %s165 = sphi 0, %s165
    %s167 = sphi 0, %s165
    %s168 = sphi 0, %s167
    %s182 = sphi 0, %s168
    %s186 = sphi 0, %s186
    %s188 = sphi 0, %s186
    %s189 = sphi 0, %s188
    %s203 = sphi 0, %s189
    %s209 = sphi 0, %s211
    %s212 = sphi 0, %s209
    %s213 = sphi 0, %s212
    %s229 = sphi 0, %s213
    %s235 = sphi 0, %s237
    %s238 = sphi 0, %s235
    %s239 = sphi 0, %s238
    %s255 = sphi 0, %s239
    %s261 = sphi 0, %s263
    %s264 = sphi 0, %s261
    %s265 = sphi 0, %s264
    %s281 = sphi 0, %s265
    %s287 = sphi 0, %s289
    %s290 = sphi 0, %s287
    %s291 = sphi 0, %s290
    %s307 = sphi 0, %s291
    %s313 = sphi 0, %s315
    %s316 = sphi 0, %s313
    %s317 = sphi 0, %s316
    %s333 = sphi 0, %s317
    %s339 = sphi 0, %s341
    %s342 = sphi 0, %s339
    %s343 = sphi 0, %s342
    %s359 = sphi 0, %s343
    %s365 = sphi 0, %s367
    %s368 = sphi 0, %s365
    %s369 = sphi 0, %s368
    %s385 = sphi 0, %s369
    %s391 = sphi 0, %s393
    %s394 = sphi 0, %s391
    %s395 = sphi 0, %s394
    %s411 = sphi 0, %s395
    %s417 = sphi 0, %s419
    %s420 = sphi 0, %s417
    %s421 = sphi 0, %s420
    %s437 = sphi 0, %s421
    %s443 = sphi 0, %s445
    %s446 = sphi 0, %s443
    %s447 = sphi 0, %s446
    %s463 = sphi 0, %s447
    %s469 = sphi 0, %s471
    %s472 = sphi 0, %s469
    %s473 = sphi 0, %s472
    %s489 = sphi 0, %s473
    %s495 = sphi 0, %s497
    %s498 = sphi 0, %s495
    %s499 = sphi 0, %s498
    %s515 = sphi 0, %s499
    %s519 = sphi 0, %s519
    %s521 = sphi 0, %s519
    %s522 = sphi 0, %s521
    %s536 = sphi 0, %s522
    %s540 = sphi 0, %s540
    %s542 = sphi 0, %s540
    %s543 = sphi 0, %s542
    %s557 = sphi 0, %s543
    %s561 = sphi 0, %s561
    %s563 = sphi 0, %s561
    %s564 = sphi 0, %s563
    %s578 = sphi 0, %s564
    %s582 = sphi 0, %s582
    %s584 = sphi 0, %s582
    %s585 = sphi 0, %s584
    %s599 = sphi 0, %s585
    %s603 = sphi 0, %s603
    %s605 = sphi 0, %s603
    %s606 = sphi 0, %s605
    %s620 = sphi 0, %s606
    %s624 = sphi 0, %s624
    %s626 = sphi 0, %s624
    %s627 = sphi 0, %s626
    %s641 = sphi 0, %s627
  $region4: #{decision_transformer_forward.1} parent=0 // loop_header_branch
    %34 = sbr.rel (%p32) target = $region8
  $region5: #{decision_transformer_forward.1} parent=0 // loop_body
    %s36 = ssub.s32 %s31, 1
    %s37 = ssub.s32 %s31, 2
    %s38 = sadd.s32 %s31, 1
    %s40 = sadd.s32 %s39, 1
    %p43 = scmp.eq.s32.totalorder %s31, 1
    %p44 = scmp.ne.s32.totalorder %s39, %s41
    %p45 = scmp.eq.s32.totalorder %s31, 0
    %p46 = por %p44, %p45
    %p47 = scmp.ne.s32.totalorder %s39, %s41
    %p48 = scmp.eq.s32.totalorder %s36, 1
    %p49 = por %p47, %p48
    %p50 = scmp.ne.s32.totalorder %s41, %s42
    %p51 = scmp.eq.s32.totalorder %s36, 0
    %p52 = por %p50, %p51
    %p53 = scmp.ne.s32.totalorder %s41, %s42
    %p54 = scmp.eq.s32.totalorder %s37, 1
    %p55 = por %p53, %p54
    %p57 = scmp.ne.s32.totalorder %s42, %s56
    %p58 = scmp.eq.s32.totalorder %s37, 0
    %p59 = por %p57, %p58
    %s61 = sadd.s32 %s60, 1
    %p64 = scmp.eq.s32.totalorder %s31, 1
    %p65 = scmp.ne.s32.totalorder %s60, %s62
    %p66 = scmp.eq.s32.totalorder %s31, 0
    %p67 = por %p65, %p66
    %p68 = scmp.ne.s32.totalorder %s60, %s62
    %p69 = scmp.eq.s32.totalorder %s36, 1
    %p70 = por %p68, %p69
    %p71 = scmp.ne.s32.totalorder %s62, %s63
    %p72 = scmp.eq.s32.totalorder %s36, 0
    %p73 = por %p71, %p72
    %p74 = scmp.ne.s32.totalorder %s62, %s63
    %p75 = scmp.eq.s32.totalorder %s37, 1
    %p76 = por %p74, %p75
    %p78 = scmp.ne.s32.totalorder %s63, %s77
    %p79 = scmp.eq.s32.totalorder %s37, 0
    %p80 = por %p78, %p79
    %s82 = sadd.s32 %s81, 1
    %p85 = scmp.eq.s32.totalorder %s31, 1
    %p86 = scmp.ne.s32.totalorder %s81, %s83
    %p87 = scmp.eq.s32.totalorder %s31, 0
    %p88 = por %p86, %p87
    %p89 = scmp.ne.s32.totalorder %s81, %s83
    %p90 = scmp.eq.s32.totalorder %s36, 1
    %p91 = por %p89, %p90
    %p92 = scmp.ne.s32.totalorder %s83, %s84
    %p93 = scmp.eq.s32.totalorder %s36, 0
    %p94 = por %p92, %p93
    %p95 = scmp.ne.s32.totalorder %s83, %s84
    %p96 = scmp.eq.s32.totalorder %s37, 1
    %p97 = por %p95, %p96
    %p99 = scmp.ne.s32.totalorder %s84, %s98
    %p100 = scmp.eq.s32.totalorder %s37, 0
    %p101 = por %p99, %p100
    %s103 = sadd.s32 %s102, 1
    %p106 = scmp.eq.s32.totalorder %s31, 1
    %p107 = scmp.ne.s32.totalorder %s102, %s104
    %p108 = scmp.eq.s32.totalorder %s31, 0
    %p109 = por %p107, %p108
    %p110 = scmp.ne.s32.totalorder %s102, %s104
    %p111 = scmp.eq.s32.totalorder %s36, 1
    %p112 = por %p110, %p111
    %p113 = scmp.ne.s32.totalorder %s104, %s105
    %p114 = scmp.eq.s32.totalorder %s36, 0
    %p115 = por %p113, %p114
    %p116 = scmp.ne.s32.totalorder %s104, %s105
    %p117 = scmp.eq.s32.totalorder %s37, 1
    %p118 = por %p116, %p117
    %p120 = scmp.ne.s32.totalorder %s105, %s119
    %p121 = scmp.eq.s32.totalorder %s37, 0
    %p122 = por %p120, %p121
    %s124 = sadd.s32 %s123, 1
    %p127 = scmp.eq.s32.totalorder %s31, 1
    %p128 = scmp.ne.s32.totalorder %s123, %s125
    %p129 = scmp.eq.s32.totalorder %s31, 0
    %p130 = por %p128, %p129
    %p131 = scmp.ne.s32.totalorder %s123, %s125
    %p132 = scmp.eq.s32.totalorder %s36, 1
    %p133 = por %p131, %p132
    %p134 = scmp.ne.s32.totalorder %s125, %s126
    %p135 = scmp.eq.s32.totalorder %s36, 0
    %p136 = por %p134, %p135
    %p137 = scmp.ne.s32.totalorder %s125, %s126
    %p138 = scmp.eq.s32.totalorder %s37, 1
    %p139 = por %p137, %p138
    %p141 = scmp.ne.s32.totalorder %s126, %s140
    %p142 = scmp.eq.s32.totalorder %s37, 0
    %p143 = por %p141, %p142
    %s145 = sadd.s32 %s144, 1
    %p148 = scmp.eq.s32.totalorder %s31, 1
    %p149 = scmp.ne.s32.totalorder %s144, %s146
    %p150 = scmp.eq.s32.totalorder %s31, 0
    %p151 = por %p149, %p150
    %p152 = scmp.ne.s32.totalorder %s144, %s146
    %p153 = scmp.eq.s32.totalorder %s36, 1
    %p154 = por %p152, %p153
    %p155 = scmp.ne.s32.totalorder %s146, %s147
    %p156 = scmp.eq.s32.totalorder %s36, 0
    %p157 = por %p155, %p156
    %p158 = scmp.ne.s32.totalorder %s146, %s147
    %p159 = scmp.eq.s32.totalorder %s37, 1
    %p160 = por %p158, %p159
    %p162 = scmp.ne.s32.totalorder %s147, %s161
    %p163 = scmp.eq.s32.totalorder %s37, 0
    %p164 = por %p162, %p163
    %s166 = sadd.s32 %s165, 1
    %p169 = scmp.eq.s32.totalorder %s31, 1
    %p170 = scmp.ne.s32.totalorder %s165, %s167
    %p171 = scmp.eq.s32.totalorder %s31, 0
    %p172 = por %p170, %p171
    %p173 = scmp.ne.s32.totalorder %s165, %s167
    %p174 = scmp.eq.s32.totalorder %s36, 1
    %p175 = por %p173, %p174
    %p176 = scmp.ne.s32.totalorder %s167, %s168
    %p177 = scmp.eq.s32.totalorder %s36, 0
    %p178 = por %p176, %p177
    %p179 = scmp.ne.s32.totalorder %s167, %s168
    %p180 = scmp.eq.s32.totalorder %s37, 1
    %p181 = por %p179, %p180
    %p183 = scmp.ne.s32.totalorder %s168, %s182
    %p184 = scmp.eq.s32.totalorder %s37, 0
    %p185 = por %p183, %p184
    %s187 = sadd.s32 %s186, 1
    %p190 = scmp.eq.s32.totalorder %s31, 1
    %p191 = scmp.ne.s32.totalorder %s186, %s188
    %p192 = scmp.eq.s32.totalorder %s31, 0
    %p193 = por %p191, %p192
    %p194 = scmp.ne.s32.totalorder %s186, %s188
    %p195 = scmp.eq.s32.totalorder %s36, 1
    %p196 = por %p194, %p195
    %p197 = scmp.ne.s32.totalorder %s188, %s189
    %p198 = scmp.eq.s32.totalorder %s36, 0
    %p199 = por %p197, %p198
    %p200 = scmp.ne.s32.totalorder %s188, %s189
    %p201 = scmp.eq.s32.totalorder %s37, 1
    %p202 = por %p200, %p201
    %p204 = scmp.ne.s32.totalorder %s189, %s203
    %p205 = scmp.eq.s32.totalorder %s37, 0
    %p206 = por %p204, %p205
    %s207 = ssub.s32 %s31, %s38
    %p208 = scmp.eq.s32.totalorder %s207, 0
    %s210 = sadd.s32 %s209, 1
    %s211 = scalar_select %p208, %s209, %s210
    %p214 = pneg %p208
    %p215 = scmp.eq.s32.totalorder %s31, 1
    %p216 = por %p214, %p215
    %p217 = scmp.ne.s32.totalorder %s209, %s212
    %p218 = scmp.eq.s32.totalorder %s31, 0
    %p219 = por %p217, %p218
    %p220 = scmp.ne.s32.totalorder %s209, %s212
    %p221 = scmp.eq.s32.totalorder %s36, 1
    %p222 = por %p220, %p221
    %p223 = scmp.ne.s32.totalorder %s212, %s213
    %p224 = scmp.eq.s32.totalorder %s36, 0
    %p225 = por %p223, %p224
    %p226 = scmp.ne.s32.totalorder %s212, %s213
    %p227 = scmp.eq.s32.totalorder %s37, 1
    %p228 = por %p226, %p227
    %p230 = scmp.ne.s32.totalorder %s213, %s229
    %p231 = scmp.eq.s32.totalorder %s37, 0
    %p232 = por %p230, %p231
    %s233 = ssub.s32 %s31, %s38
    %p234 = scmp.eq.s32.totalorder %s233, 0
    %s236 = sadd.s32 %s235, 1
    %s237 = scalar_select %p234, %s235, %s236
    %p240 = pneg %p234
    %p241 = scmp.eq.s32.totalorder %s31, 1
    %p242 = por %p240, %p241
    %p243 = scmp.ne.s32.totalorder %s235, %s238
    %p244 = scmp.eq.s32.totalorder %s31, 0
    %p245 = por %p243, %p244
    %p246 = scmp.ne.s32.totalorder %s235, %s238
    %p247 = scmp.eq.s32.totalorder %s36, 1
    %p248 = por %p246, %p247
    %p249 = scmp.ne.s32.totalorder %s238, %s239
    %p250 = scmp.eq.s32.totalorder %s36, 0
    %p251 = por %p249, %p250
    %p252 = scmp.ne.s32.totalorder %s238, %s239
    %p253 = scmp.eq.s32.totalorder %s37, 1
    %p254 = por %p252, %p253
    %p256 = scmp.ne.s32.totalorder %s239, %s255
    %p257 = scmp.eq.s32.totalorder %s37, 0
    %p258 = por %p256, %p257
    %s259 = ssub.s32 %s31, %s38
    %p260 = scmp.eq.s32.totalorder %s259, 0
    %s262 = sadd.s32 %s261, 1
    %s263 = scalar_select %p260, %s261, %s262
    %p266 = pneg %p260
    %p267 = scmp.eq.s32.totalorder %s31, 1
    %p268 = por %p266, %p267
    %p269 = scmp.ne.s32.totalorder %s261, %s264
    %p270 = scmp.eq.s32.totalorder %s31, 0
    %p271 = por %p269, %p270
    %p272 = scmp.ne.s32.totalorder %s261, %s264
    %p273 = scmp.eq.s32.totalorder %s36, 1
    %p274 = por %p272, %p273
    %p275 = scmp.ne.s32.totalorder %s264, %s265
    %p276 = scmp.eq.s32.totalorder %s36, 0
    %p277 = por %p275, %p276
    %p278 = scmp.ne.s32.totalorder %s264, %s265
    %p279 = scmp.eq.s32.totalorder %s37, 1
    %p280 = por %p278, %p279
    %p282 = scmp.ne.s32.totalorder %s265, %s281
    %p283 = scmp.eq.s32.totalorder %s37, 0
    %p284 = por %p282, %p283
    %s285 = ssub.s32 %s31, %s38
    %p286 = scmp.eq.s32.totalorder %s285, 0
    %s288 = sadd.s32 %s287, 1
    %s289 = scalar_select %p286, %s287, %s288
    %p292 = pneg %p286
    %p293 = scmp.eq.s32.totalorder %s31, 1
    %p294 = por %p292, %p293
    %p295 = scmp.ne.s32.totalorder %s287, %s290
    %p296 = scmp.eq.s32.totalorder %s31, 0
    %p297 = por %p295, %p296
    %p298 = scmp.ne.s32.totalorder %s287, %s290
    %p299 = scmp.eq.s32.totalorder %s36, 1
    %p300 = por %p298, %p299
    %p301 = scmp.ne.s32.totalorder %s290, %s291
    %p302 = scmp.eq.s32.totalorder %s36, 0
    %p303 = por %p301, %p302
    %p304 = scmp.ne.s32.totalorder %s290, %s291
    %p305 = scmp.eq.s32.totalorder %s37, 1
    %p306 = por %p304, %p305
    %p308 = scmp.ne.s32.totalorder %s291, %s307
    %p309 = scmp.eq.s32.totalorder %s37, 0
    %p310 = por %p308, %p309
    %s311 = ssub.s32 %s31, %s38
    %p312 = scmp.eq.s32.totalorder %s311, 0
    %s314 = sadd.s32 %s313, 1
    %s315 = scalar_select %p312, %s313, %s314
    %p318 = pneg %p312
    %p319 = scmp.eq.s32.totalorder %s31, 1
    %p320 = por %p318, %p319
    %p321 = scmp.ne.s32.totalorder %s313, %s316
    %p322 = scmp.eq.s32.totalorder %s31, 0
    %p323 = por %p321, %p322
    %p324 = scmp.ne.s32.totalorder %s313, %s316
    %p325 = scmp.eq.s32.totalorder %s36, 1
    %p326 = por %p324, %p325
    %p327 = scmp.ne.s32.totalorder %s316, %s317
    %p328 = scmp.eq.s32.totalorder %s36, 0
    %p329 = por %p327, %p328
    %p330 = scmp.ne.s32.totalorder %s316, %s317
    %p331 = scmp.eq.s32.totalorder %s37, 1
    %p332 = por %p330, %p331
    %p334 = scmp.ne.s32.totalorder %s317, %s333
    %p335 = scmp.eq.s32.totalorder %s37, 0
    %p336 = por %p334, %p335
    %s337 = ssub.s32 %s31, %s38
    %p338 = scmp.eq.s32.totalorder %s337, 0
    %s340 = sadd.s32 %s339, 1
    %s341 = scalar_select %p338, %s339, %s340
    %p344 = pneg %p338
    %p345 = scmp.eq.s32.totalorder %s31, 1
    %p346 = por %p344, %p345
    %p347 = scmp.ne.s32.totalorder %s339, %s342
    %p348 = scmp.eq.s32.totalorder %s31, 0
    %p349 = por %p347, %p348
    %p350 = scmp.ne.s32.totalorder %s339, %s342
    %p351 = scmp.eq.s32.totalorder %s36, 1
    %p352 = por %p350, %p351
    %p353 = scmp.ne.s32.totalorder %s342, %s343
    %p354 = scmp.eq.s32.totalorder %s36, 0
    %p355 = por %p353, %p354
    %p356 = scmp.ne.s32.totalorder %s342, %s343
    %p357 = scmp.eq.s32.totalorder %s37, 1
    %p358 = por %p356, %p357
    %p360 = scmp.ne.s32.totalorder %s343, %s359
    %p361 = scmp.eq.s32.totalorder %s37, 0
    %p362 = por %p360, %p361
    %s363 = ssub.s32 %s31, %s38
    %p364 = scmp.eq.s32.totalorder %s363, 0
    %s366 = sadd.s32 %s365, 1
    %s367 = scalar_select %p364, %s365, %s366
    %p370 = pneg %p364
    %p371 = scmp.eq.s32.totalorder %s31, 1
    %p372 = por %p370, %p371
    %p373 = scmp.ne.s32.totalorder %s365, %s368
    %p374 = scmp.eq.s32.totalorder %s31, 0
    %p375 = por %p373, %p374
    %p376 = scmp.ne.s32.totalorder %s365, %s368
    %p377 = scmp.eq.s32.totalorder %s36, 1
    %p378 = por %p376, %p377
    %p379 = scmp.ne.s32.totalorder %s368, %s369
    %p380 = scmp.eq.s32.totalorder %s36, 0
    %p381 = por %p379, %p380
    %p382 = scmp.ne.s32.totalorder %s368, %s369
    %p383 = scmp.eq.s32.totalorder %s37, 1
    %p384 = por %p382, %p383
    %p386 = scmp.ne.s32.totalorder %s369, %s385
    %p387 = scmp.eq.s32.totalorder %s37, 0
    %p388 = por %p386, %p387
    %s389 = ssub.s32 %s31, %s38
    %p390 = scmp.eq.s32.totalorder %s389, 0
    %s392 = sadd.s32 %s391, 1
    %s393 = scalar_select %p390, %s391, %s392
    %p396 = pneg %p390
    %p397 = scmp.eq.s32.totalorder %s31, 1
    %p398 = por %p396, %p397
    %p399 = scmp.ne.s32.totalorder %s391, %s394
    %p400 = scmp.eq.s32.totalorder %s31, 0
    %p401 = por %p399, %p400
    %p402 = scmp.ne.s32.totalorder %s391, %s394
    %p403 = scmp.eq.s32.totalorder %s36, 1
    %p404 = por %p402, %p403
    %p405 = scmp.ne.s32.totalorder %s394, %s395
    %p406 = scmp.eq.s32.totalorder %s36, 0
    %p407 = por %p405, %p406
    %p408 = scmp.ne.s32.totalorder %s394, %s395
    %p409 = scmp.eq.s32.totalorder %s37, 1
    %p410 = por %p408, %p409
    %p412 = scmp.ne.s32.totalorder %s395, %s411
    %p413 = scmp.eq.s32.totalorder %s37, 0
    %p414 = por %p412, %p413
    %s415 = ssub.s32 %s31, %s38
    %p416 = scmp.eq.s32.totalorder %s415, 0
    %s418 = sadd.s32 %s417, 1
    %s419 = scalar_select %p416, %s417, %s418
    %p422 = pneg %p416
    %p423 = scmp.eq.s32.totalorder %s31, 1
    %p424 = por %p422, %p423
    %p425 = scmp.ne.s32.totalorder %s417, %s420
    %p426 = scmp.eq.s32.totalorder %s31, 0
    %p427 = por %p425, %p426
    %p428 = scmp.ne.s32.totalorder %s417, %s420
    %p429 = scmp.eq.s32.totalorder %s36, 1
    %p430 = por %p428, %p429
    %p431 = scmp.ne.s32.totalorder %s420, %s421
    %p432 = scmp.eq.s32.totalorder %s36, 0
    %p433 = por %p431, %p432
    %p434 = scmp.ne.s32.totalorder %s420, %s421
    %p435 = scmp.eq.s32.totalorder %s37, 1
    %p436 = por %p434, %p435
    %p438 = scmp.ne.s32.totalorder %s421, %s437
    %p439 = scmp.eq.s32.totalorder %s37, 0
    %p440 = por %p438, %p439
    %s441 = ssub.s32 %s31, %s38
    %p442 = scmp.eq.s32.totalorder %s441, 0
    %s444 = sadd.s32 %s443, 1
    %s445 = scalar_select %p442, %s443, %s444
    %p448 = pneg %p442
    %p449 = scmp.eq.s32.totalorder %s31, 1
    %p450 = por %p448, %p449
    %p451 = scmp.ne.s32.totalorder %s443, %s446
    %p452 = scmp.eq.s32.totalorder %s31, 0
    %p453 = por %p451, %p452
    %p454 = scmp.ne.s32.totalorder %s443, %s446
    %p455 = scmp.eq.s32.totalorder %s36, 1
    %p456 = por %p454, %p455
    %p457 = scmp.ne.s32.totalorder %s446, %s447
    %p458 = scmp.eq.s32.totalorder %s36, 0
    %p459 = por %p457, %p458
    %p460 = scmp.ne.s32.totalorder %s446, %s447
    %p461 = scmp.eq.s32.totalorder %s37, 1
    %p462 = por %p460, %p461
    %p464 = scmp.ne.s32.totalorder %s447, %s463
    %p465 = scmp.eq.s32.totalorder %s37, 0
    %p466 = por %p464, %p465
    %s467 = ssub.s32 %s31, %s38
    %p468 = scmp.eq.s32.totalorder %s467, 0
    %s470 = sadd.s32 %s469, 1
    %s471 = scalar_select %p468, %s469, %s470
    %p474 = pneg %p468
    %p475 = scmp.eq.s32.totalorder %s31, 1
    %p476 = por %p474, %p475
    %p477 = scmp.ne.s32.totalorder %s469, %s472
    %p478 = scmp.eq.s32.totalorder %s31, 0
    %p479 = por %p477, %p478
    %p480 = scmp.ne.s32.totalorder %s469, %s472
    %p481 = scmp.eq.s32.totalorder %s36, 1
    %p482 = por %p480, %p481
    %p483 = scmp.ne.s32.totalorder %s472, %s473
    %p484 = scmp.eq.s32.totalorder %s36, 0
    %p485 = por %p483, %p484
    %p486 = scmp.ne.s32.totalorder %s472, %s473
    %p487 = scmp.eq.s32.totalorder %s37, 1
    %p488 = por %p486, %p487
    %p490 = scmp.ne.s32.totalorder %s473, %s489
    %p491 = scmp.eq.s32.totalorder %s37, 0
    %p492 = por %p490, %p491
    %s493 = ssub.s32 %s31, %s38
    %p494 = scmp.eq.s32.totalorder %s493, 0
    %s496 = sadd.s32 %s495, 1
    %s497 = scalar_select %p494, %s495, %s496
    %p500 = pneg %p494
    %p501 = scmp.eq.s32.totalorder %s31, 1
    %p502 = por %p500, %p501
    %p503 = scmp.ne.s32.totalorder %s495, %s498
    %p504 = scmp.eq.s32.totalorder %s31, 0
    %p505 = por %p503, %p504
    %p506 = scmp.ne.s32.totalorder %s495, %s498
    %p507 = scmp.eq.s32.totalorder %s36, 1
    %p508 = por %p506, %p507
    %p509 = scmp.ne.s32.totalorder %s498, %s499
    %p510 = scmp.eq.s32.totalorder %s36, 0
    %p511 = por %p509, %p510
    %p512 = scmp.ne.s32.totalorder %s498, %s499
    %p513 = scmp.eq.s32.totalorder %s37, 1
    %p514 = por %p512, %p513
    %p516 = scmp.ne.s32.totalorder %s499, %s515
    %p517 = scmp.eq.s32.totalorder %s37, 0
    %p518 = por %p516, %p517
    %s520 = sadd.s32 %s519, 1
    %p523 = scmp.eq.s32.totalorder %s31, 1
    %p524 = scmp.ne.s32.totalorder %s519, %s521
    %p525 = scmp.eq.s32.totalorder %s31, 0
    %p526 = por %p524, %p525
    %p527 = scmp.ne.s32.totalorder %s519, %s521
    %p528 = scmp.eq.s32.totalorder %s36, 1
    %p529 = por %p527, %p528
    %p530 = scmp.ne.s32.totalorder %s521, %s522
    %p531 = scmp.eq.s32.totalorder %s36, 0
    %p532 = por %p530, %p531
    %p533 = scmp.ne.s32.totalorder %s521, %s522
    %p534 = scmp.eq.s32.totalorder %s37, 1
    %p535 = por %p533, %p534
    %p537 = scmp.ne.s32.totalorder %s522, %s536
    %p538 = scmp.eq.s32.totalorder %s37, 0
    %p539 = por %p537, %p538
    %s541 = sadd.s32 %s540, 1
    %p544 = scmp.eq.s32.totalorder %s31, 1
    %p545 = scmp.ne.s32.totalorder %s540, %s542
    %p546 = scmp.eq.s32.totalorder %s31, 0
    %p547 = por %p545, %p546
    %p548 = scmp.ne.s32.totalorder %s540, %s542
    %p549 = scmp.eq.s32.totalorder %s36, 1
    %p550 = por %p548, %p549
    %p551 = scmp.ne.s32.totalorder %s542, %s543
    %p552 = scmp.eq.s32.totalorder %s36, 0
    %p553 = por %p551, %p552
    %p554 = scmp.ne.s32.totalorder %s542, %s543
    %p555 = scmp.eq.s32.totalorder %s37, 1
    %p556 = por %p554, %p555
    %p558 = scmp.ne.s32.totalorder %s543, %s557
    %p559 = scmp.eq.s32.totalorder %s37, 0
    %p560 = por %p558, %p559
    %s562 = sadd.s32 %s561, 1
    %p565 = scmp.eq.s32.totalorder %s31, 1
    %p566 = scmp.ne.s32.totalorder %s561, %s563
    %p567 = scmp.eq.s32.totalorder %s31, 0
    %p568 = por %p566, %p567
    %p569 = scmp.ne.s32.totalorder %s561, %s563
    %p570 = scmp.eq.s32.totalorder %s36, 1
    %p571 = por %p569, %p570
    %p572 = scmp.ne.s32.totalorder %s563, %s564
    %p573 = scmp.eq.s32.totalorder %s36, 0
    %p574 = por %p572, %p573
    %p575 = scmp.ne.s32.totalorder %s563, %s564
    %p576 = scmp.eq.s32.totalorder %s37, 1
    %p577 = por %p575, %p576
    %p579 = scmp.ne.s32.totalorder %s564, %s578
    %p580 = scmp.eq.s32.totalorder %s37, 0
    %p581 = por %p579, %p580
    %s583 = sadd.s32 %s582, 1
    %p586 = scmp.eq.s32.totalorder %s31, 1
    %p587 = scmp.ne.s32.totalorder %s582, %s584
    %p588 = scmp.eq.s32.totalorder %s31, 0
    %p589 = por %p587, %p588
    %p590 = scmp.ne.s32.totalorder %s582, %s584
    %p591 = scmp.eq.s32.totalorder %s36, 1
    %p592 = por %p590, %p591
    %p593 = scmp.ne.s32.totalorder %s584, %s585
    %p594 = scmp.eq.s32.totalorder %s36, 0
    %p595 = por %p593, %p594
    %p596 = scmp.ne.s32.totalorder %s584, %s585
    %p597 = scmp.eq.s32.totalorder %s37, 1
    %p598 = por %p596, %p597
    %p600 = scmp.ne.s32.totalorder %s585, %s599
    %p601 = scmp.eq.s32.totalorder %s37, 0
    %p602 = por %p600, %p601
    %s604 = sadd.s32 %s603, 1
    %p607 = scmp.eq.s32.totalorder %s31, 1
    %p608 = scmp.ne.s32.totalorder %s603, %s605
    %p609 = scmp.eq.s32.totalorder %s31, 0
    %p610 = por %p608, %p609
    %p611 = scmp.ne.s32.totalorder %s603, %s605
    %p612 = scmp.eq.s32.totalorder %s36, 1
    %p613 = por %p611, %p612
    %p614 = scmp.ne.s32.totalorder %s605, %s606
    %p615 = scmp.eq.s32.totalorder %s36, 0
    %p616 = por %p614, %p615
    %p617 = scmp.ne.s32.totalorder %s605, %s606
    %p618 = scmp.eq.s32.totalorder %s37, 1
    %p619 = por %p617, %p618
    %p621 = scmp.ne.s32.totalorder %s606, %s620
    %p622 = scmp.eq.s32.totalorder %s37, 0
    %p623 = por %p621, %p622
    %s625 = sadd.s32 %s624, 1
    %p628 = scmp.eq.s32.totalorder %s31, 1
    %p629 = scmp.ne.s32.totalorder %s624, %s626
    %p630 = scmp.eq.s32.totalorder %s31, 0
    %p631 = por %p629, %p630
    %p632 = scmp.ne.s32.totalorder %s624, %s626
    %p633 = scmp.eq.s32.totalorder %s36, 1
    %p634 = por %p632, %p633
    %p635 = scmp.ne.s32.totalorder %s626, %s627
    %p636 = scmp.eq.s32.totalorder %s36, 0
    %p637 = por %p635, %p636
    %p638 = scmp.ne.s32.totalorder %s626, %s627
    %p639 = scmp.eq.s32.totalorder %s37, 1
    %p640 = por %p638, %p639
    %p642 = scmp.ne.s32.totalorder %s627, %s641
    %p643 = scmp.eq.s32.totalorder %s37, 0
    %p644 = por %p642, %p643
    %p645 = scmp.le.s32.totalorder 1, %s31
    %p646 = scmp.lt.s32.totalorder %s31, 3
    %p647 = pnand %p645, %p646
    %p648 = pneg %p647
    // Predicated region
    $region9: #{decision_transformer_forward.1} parent=5 // pred_check
      _
    $region10: #{decision_transformer_forward.1} parent=5 // pred_check_branch
      %650 = sbr.rel (%p647) target = $region12
    $region11: #{decision_transformer_forward.1} parent=5 // pred_region
      %s651 = ssub.s32 %s31, 1
      // Predicated region
      $region13: #{decision_transformer_forward.1} parent=11 // pred_check
        %p652 = pneg %p52
      $region14: #{decision_transformer_forward.1} parent=11 // pred_check_branch
        %654 = sbr.rel (%p652) target = $region16
      $region15: #{decision_transformer_forward.1} parent=11 // pred_region
        _
      $region16: #{decision_transformer_forward.1} parent=11 // pred_fallthru
        _
      // Predicated region
      $region17: #{decision_transformer_forward.1} parent=11 // pred_check
        %p655 = pneg %p73
      $region18: #{decision_transformer_forward.1} parent=11 // pred_check_branch
        %657 = sbr.rel (%p655) target = $region20
      $region19: #{decision_transformer_forward.1} parent=11 // pred_region
        _
      $region20: #{decision_transformer_forward.1} parent=11 // pred_fallthru
        _
      // Predicated region
      $region21: #{decision_transformer_forward.1} parent=11 // pred_check
        %p658 = pneg %p94
      $region22: #{decision_transformer_forward.1} parent=11 // pred_check_branch
        %660 = sbr.rel (%p658) target = $region24
      $region23: #{decision_transformer_forward.1} parent=11 // pred_region
        _
      $region24: #{decision_transformer_forward.1} parent=11 // pred_fallthru
        _
      // Predicated region
      $region25: #{decision_transformer_forward.1} parent=11 // pred_check
        %p661 = pneg %p115
      $region26: #{decision_transformer_forward.1} parent=11 // pred_check_branch
        %663 = sbr.rel (%p661) target = $region28
      $region27: #{decision_transformer_forward.1} parent=11 // pred_region
        _
      $region28: #{decision_transformer_forward.1} parent=11 // pred_fallthru
        _
      // Predicated region
      $region29: #{decision_transformer_forward.1} parent=11 // pred_check
        %p664 = pneg %p136
      $region30: #{decision_transformer_forward.1} parent=11 // pred_check_branch
        %666 = sbr.rel (%p664) target = $region32
      $region31: #{decision_transformer_forward.1} parent=11 // pred_region
        _
      $region32: #{decision_transformer_forward.1} parent=11 // pred_fallthru
        _
      // Predicated region
      $region33: #{decision_transformer_forward.1} parent=11 // pred_check
        %p667 = pneg %p157
      $region34: #{decision_transformer_forward.1} parent=11 // pred_check_branch
        %669 = sbr.rel (%p667) target = $region36
      $region35: #{decision_transformer_forward.1} parent=11 // pred_region
        _
      $region36: #{decision_transformer_forward.1} parent=11 // pred_fallthru
        _
      // Predicated region
      $region37: #{decision_transformer_forward.1} parent=11 // pred_check
        %p670 = pneg %p178
      $region38: #{decision_transformer_forward.1} parent=11 // pred_check_branch
        %672 = sbr.rel (%p670) target = $region40
      $region39: #{decision_transformer_forward.1} parent=11 // pred_region
        _
      $region40: #{decision_transformer_forward.1} parent=11 // pred_fallthru
        _
      // Predicated region
      $region41: #{decision_transformer_forward.1} parent=11 // pred_check
        %p673 = pneg %p199
      $region42: #{decision_transformer_forward.1} parent=11 // pred_check_branch
        %675 = sbr.rel (%p673) target = $region44
      $region43: #{decision_transformer_forward.1} parent=11 // pred_region
        _
      $region44: #{decision_transformer_forward.1} parent=11 // pred_fallthru
        _
      // Predicated region
      $region45: #{decision_transformer_forward.1} parent=11 // pred_check
        %p676 = pneg %p532
      $region46: #{decision_transformer_forward.1} parent=11 // pred_check_branch
        %678 = sbr.rel (%p676) target = $region48
      $region47: #{decision_transformer_forward.1} parent=11 // pred_region
        _
      $region48: #{decision_transformer_forward.1} parent=11 // pred_fallthru
        _
      // Predicated region
      $region49: #{decision_transformer_forward.1} parent=11 // pred_check
        %p679 = pneg %p553
      $region50: #{decision_transformer_forward.1} parent=11 // pred_check_branch
        %681 = sbr.rel (%p679) target = $region52
      $region51: #{decision_transformer_forward.1} parent=11 // pred_region
        _
      $region52: #{decision_transformer_forward.1} parent=11 // pred_fallthru
        _
      // Predicated region
      $region53: #{decision_transformer_forward.1} parent=11 // pred_check
        %p682 = pneg %p574
      $region54: #{decision_transformer_forward.1} parent=11 // pred_check_branch
        %684 = sbr.rel (%p682) target = $region56
      $region55: #{decision_transformer_forward.1} parent=11 // pred_region
        _
      $region56: #{decision_transformer_forward.1} parent=11 // pred_fallthru
        _
      // Predicated region
      $region57: #{decision_transformer_forward.1} parent=11 // pred_check
        %p685 = pneg %p595
      $region58: #{decision_transformer_forward.1} parent=11 // pred_check_branch
        %687 = sbr.rel (%p685) target = $region60
      $region59: #{decision_transformer_forward.1} parent=11 // pred_region
        _
      $region60: #{decision_transformer_forward.1} parent=11 // pred_fallthru
        _
      // Predicated region
      $region61: #{decision_transformer_forward.1} parent=11 // pred_check
        %p688 = pneg %p616
      $region62: #{decision_transformer_forward.1} parent=11 // pred_check_branch
        %690 = sbr.rel (%p688) target = $region64
      $region63: #{decision_transformer_forward.1} parent=11 // pred_region
        _
      $region64: #{decision_transformer_forward.1} parent=11 // pred_fallthru
        _
    $region12: #{decision_transformer_forward.1} parent=5 // pred_fallthru
      _
    %p691 = scmp.lt.s32.totalorder %s31, 2
    // Predicated region
    $region65: #{decision_transformer_forward.1} parent=5 // pred_check
      %p692 = pneg %p691
    $region66: #{decision_transformer_forward.1} parent=5 // pred_check_branch
      %694 = sbr.rel (%p692) target = $region68
    $region67: #{decision_transformer_forward.1} parent=5 // pred_region
      // Predicated region
      $region69: #{decision_transformer_forward.1} parent=67 // pred_check
        %p695 = pneg %p219
      $region70: #{decision_transformer_forward.1} parent=67 // pred_check_branch
        %697 = sbr.rel (%p695) target = $region72
      $region71: #{decision_transformer_forward.1} parent=67 // pred_region
        %p698 = scmp.lt.s32.totalorder %s31, 1
        %s699 = scalar_select %p698, %s31, 1
        %s700 = scalar_lea.vmem %s8, %s699
      $region72: #{decision_transformer_forward.1} parent=67 // pred_fallthru
        _
      // Predicated region
      $region73: #{decision_transformer_forward.1} parent=67 // pred_check
        %p701 = pneg %p245
      $region74: #{decision_transformer_forward.1} parent=67 // pred_check_branch
        %703 = sbr.rel (%p701) target = $region76
      $region75: #{decision_transformer_forward.1} parent=67 // pred_region
        %p704 = scmp.lt.s32.totalorder %s31, 1
        %s705 = scalar_select %p704, %s31, 1
        %s706 = scalar_lea.vmem %s9, %s705
      $region76: #{decision_transformer_forward.1} parent=67 // pred_fallthru
        _
      // Predicated region
      $region77: #{decision_transformer_forward.1} parent=67 // pred_check
        %p707 = pneg %p271
      $region78: #{decision_transformer_forward.1} parent=67 // pred_check_branch
        %709 = sbr.rel (%p707) target = $region80
      $region79: #{decision_transformer_forward.1} parent=67 // pred_region
        %p710 = scmp.lt.s32.totalorder %s31, 1
        %s711 = scalar_select %p710, %s31, 1
        %s712 = smul.addr %s711, 4
        %s713 = smul.addr %s712, 4
        %s714 = scalar_lea.vmem %s10, %s713
      $region80: #{decision_transformer_forward.1} parent=67 // pred_fallthru
        _
      // Predicated region
      $region81: #{decision_transformer_forward.1} parent=67 // pred_check
        %p715 = pneg %p297
      $region82: #{decision_transformer_forward.1} parent=67 // pred_check_branch
        %717 = sbr.rel (%p715) target = $region84
      $region83: #{decision_transformer_forward.1} parent=67 // pred_region
        %p718 = scmp.lt.s32.totalorder %s31, 1
        %s719 = scalar_select %p718, %s31, 1
        %s720 = scalar_lea.vmem %s11, %s719
      $region84: #{decision_transformer_forward.1} parent=67 // pred_fallthru
        _
      // Predicated region
      $region85: #{decision_transformer_forward.1} parent=67 // pred_check
        %p721 = pneg %p323
      $region86: #{decision_transformer_forward.1} parent=67 // pred_check_branch
        %723 = sbr.rel (%p721) target = $region88
      $region87: #{decision_transformer_forward.1} parent=67 // pred_region
        %p724 = scmp.lt.s32.totalorder %s31, 1
        %s725 = scalar_select %p724, %s31, 1
        %s726 = smul.addr %s725, 4
        %s727 = smul.addr %s726, 4
        %s728 = scalar_lea.vmem %s12, %s727
      $region88: #{decision_transformer_forward.1} parent=67 // pred_fallthru
        _
      // Predicated region
      $region89: #{decision_transformer_forward.1} parent=67 // pred_check
        %p729 = pneg %p349
      $region90: #{decision_transformer_forward.1} parent=67 // pred_check_branch
        %731 = sbr.rel (%p729) target = $region92
      $region91: #{decision_transformer_forward.1} parent=67 // pred_region
        %p732 = scmp.lt.s32.totalorder %s31, 1
        %s733 = scalar_select %p732, %s31, 1
        %s734 = scalar_lea.vmem %s13, %s733
      $region92: #{decision_transformer_forward.1} parent=67 // pred_fallthru
        _
      // Predicated region
      $region93: #{decision_transformer_forward.1} parent=67 // pred_check
        %p735 = pneg %p375
      $region94: #{decision_transformer_forward.1} parent=67 // pred_check_branch
        %737 = sbr.rel (%p735) target = $region96
      $region95: #{decision_transformer_forward.1} parent=67 // pred_region
        %p738 = scmp.lt.s32.totalorder %s31, 1
        %s739 = scalar_select %p738, %s31, 1
        %s740 = scalar_lea.vmem %s14, %s739
      $region96: #{decision_transformer_forward.1} parent=67 // pred_fallthru
        _
      // Predicated region
      $region97: #{decision_transformer_forward.1} parent=67 // pred_check
        %p741 = pneg %p401
      $region98: #{decision_transformer_forward.1} parent=67 // pred_check_branch
        %743 = sbr.rel (%p741) target = $region100
      $region99: #{decision_transformer_forward.1} parent=67 // pred_region
        %p744 = scmp.lt.s32.totalorder %s31, 1
        %s745 = scalar_select %p744, %s31, 1
        %s746 = scalar_lea.vmem %s15, %s745
      $region100: #{decision_transformer_forward.1} parent=67 // pred_fallthru
        _
      // Predicated region
      $region101: #{decision_transformer_forward.1} parent=67 // pred_check
        %p747 = pneg %p427
      $region102: #{decision_transformer_forward.1} parent=67 // pred_check_branch
        %749 = sbr.rel (%p747) target = $region104
      $region103: #{decision_transformer_forward.1} parent=67 // pred_region
        %p750 = scmp.lt.s32.totalorder %s31, 1
        %s751 = scalar_select %p750, %s31, 1
        %s752 = smul.addr %s751, 4
        %s753 = smul.addr %s752, 4
        %s754 = scalar_lea.vmem %s16, %s753
      $region104: #{decision_transformer_forward.1} parent=67 // pred_fallthru
        _
      // Predicated region
      $region105: #{decision_transformer_forward.1} parent=67 // pred_check
        %p755 = pneg %p453
      $region106: #{decision_transformer_forward.1} parent=67 // pred_check_branch
        %757 = sbr.rel (%p755) target = $region108
      $region107: #{decision_transformer_forward.1} parent=67 // pred_region
        %p758 = scmp.lt.s32.totalorder %s31, 1
        %s759 = scalar_select %p758, %s31, 1
        %s760 = scalar_lea.vmem %s17, %s759
      $region108: #{decision_transformer_forward.1} parent=67 // pred_fallthru
        _
      // Predicated region
      $region109: #{decision_transformer_forward.1} parent=67 // pred_check
        %p761 = pneg %p479
      $region110: #{decision_transformer_forward.1} parent=67 // pred_check_branch
        %763 = sbr.rel (%p761) target = $region112
      $region111: #{decision_transformer_forward.1} parent=67 // pred_region
        %p764 = scmp.lt.s32.totalorder %s31, 1
        %s765 = scalar_select %p764, %s31, 1
        %s766 = smul.addr %s765, 16
        %s767 = smul.addr %s766, 4
        %s768 = scalar_lea.vmem %s18, %s767
      $region112: #{decision_transformer_forward.1} parent=67 // pred_fallthru
        _
      // Predicated region
      $region113: #{decision_transformer_forward.1} parent=67 // pred_check
        %p769 = pneg %p505
      $region114: #{decision_transformer_forward.1} parent=67 // pred_check_branch
        %771 = sbr.rel (%p769) target = $region116
      $region115: #{decision_transformer_forward.1} parent=67 // pred_region
        %p772 = scmp.lt.s32.totalorder %s31, 1
        %s773 = scalar_select %p772, %s31, 1
        %s774 = scalar_lea.vmem %s19, %s773
      $region116: #{decision_transformer_forward.1} parent=67 // pred_fallthru
        _
    $region68: #{decision_transformer_forward.1} parent=5 // pred_fallthru
      _
    %p775 = scmp.le.s32.totalorder 1, %s31
    %p776 = scmp.lt.s32.totalorder %s31, 3
    %p777 = pnand %p775, %p776
    %p778 = pneg %p777
    // Predicated region
    $region117: #{decision_transformer_forward.1} parent=5 // pred_check
      _
    $region118: #{decision_transformer_forward.1} parent=5 // pred_check_branch
      %780 = sbr.rel (%p777) target = $region120
    $region119: #{decision_transformer_forward.1} parent=5 // pred_region
      %s781 = ssub.s32 %s31, 1
      %p782 = pneg %p52
      %p783 = pneg %p49
      %p784 = pneg %p73
      %p785 = pneg %p70
      %p786 = pneg %p94
      %p787 = pneg %p91
      %p788 = pneg %p115
      %p789 = pneg %p112
      %p790 = pneg %p136
      %p791 = pneg %p133
      %p792 = pneg %p157
      %p793 = pneg %p154
      %p794 = pneg %p178
      %p795 = pneg %p175
      %p796 = pneg %p199
      %p797 = pneg %p196
      %p798 = scmp.lt.s32.totalorder %s36, 1
      %s799 = scalar_select %p798, %s36, 1
      %s800 = scalar_lea.vmem %s8, %s799
      %p801 = pneg %p225
      %p802 = pneg %p222
      %p803 = scmp.lt.s32.totalorder %s36, 1
      %s804 = scalar_select %p803, %s36, 1
      %s805 = scalar_lea.vmem %s9, %s804
      %p806 = pneg %p251
      %p807 = pneg %p248
      %p808 = scmp.lt.s32.totalorder %s36, 1
      %s809 = scalar_select %p808, %s36, 1
      %s810 = smul.addr %s809, 4
      %s811 = smul.addr %s810, 4
      %s812 = scalar_lea.vmem %s10, %s811
      %p813 = pneg %p277
      %p814 = pneg %p274
      %p815 = scmp.lt.s32.totalorder %s36, 1
      %s816 = scalar_select %p815, %s36, 1
      %s817 = scalar_lea.vmem %s11, %s816
      %p818 = pneg %p303
      %p819 = pneg %p300
      %p820 = scmp.lt.s32.totalorder %s36, 1
      %s821 = scalar_select %p820, %s36, 1
      %s822 = smul.addr %s821, 4
      %s823 = smul.addr %s822, 4
      %s824 = scalar_lea.vmem %s12, %s823
      %p825 = pneg %p329
      %p826 = pneg %p326
      %p827 = scmp.lt.s32.totalorder %s36, 1
      %s828 = scalar_select %p827, %s36, 1
      %s829 = scalar_lea.vmem %s13, %s828
      %p830 = pneg %p355
      %p831 = pneg %p352
      %p832 = scmp.lt.s32.totalorder %s36, 1
      %s833 = scalar_select %p832, %s36, 1
      %s834 = scalar_lea.vmem %s14, %s833
      %p835 = pneg %p381
      %p836 = pneg %p378
      %p837 = scmp.lt.s32.totalorder %s36, 1
      %s838 = scalar_select %p837, %s36, 1
      %s839 = scalar_lea.vmem %s15, %s838
      %p840 = pneg %p407
      %p841 = pneg %p404
      %p842 = scmp.lt.s32.totalorder %s36, 1
      %s843 = scalar_select %p842, %s36, 1
      %s844 = smul.addr %s843, 4
      %s845 = smul.addr %s844, 4
      %s846 = scalar_lea.vmem %s16, %s845
      %p847 = pneg %p433
      %p848 = pneg %p430
      %p849 = scmp.lt.s32.totalorder %s36, 1
      %s850 = scalar_select %p849, %s36, 1
      %s851 = scalar_lea.vmem %s17, %s850
      %p852 = pneg %p459
      %p853 = pneg %p456
      %p854 = scmp.lt.s32.totalorder %s36, 1
      %s855 = scalar_select %p854, %s36, 1
      %s856 = smul.addr %s855, 16
      %s857 = smul.addr %s856, 4
      %s858 = scalar_lea.vmem %s18, %s857
      %p859 = pneg %p485
      %p860 = pneg %p482
      %p861 = scmp.lt.s32.totalorder %s36, 1
      %s862 = scalar_select %p861, %s36, 1
      %s863 = scalar_lea.vmem %s19, %s862
      %p864 = pneg %p511
      %p865 = pneg %p508
      %p866 = pneg %p532
      %p867 = pneg %p529
      %p868 = pneg %p553
      %p869 = pneg %p550
      %p870 = pneg %p574
      %p871 = pneg %p571
      %p872 = pneg %p595
      %p873 = pneg %p592
      %p874 = pneg %p616
      %p875 = pneg %p613
      %p876 = pneg %p637
      %p877 = pneg %p634
      %p878 = scmp.lt.s32.totalorder %s36, 1
      %s879 = scalar_select %p878, %s36, 1
      %s880 = scalar_lea.vmem %s8, %s879
      %p881 = scmp.lt.s32.totalorder %s36, 1
      %s882 = scalar_select %p881, %s36, 1
      %s883 = scalar_lea.vmem %s9, %s882
      %p884 = scmp.lt.s32.totalorder %s36, 1
      %s885 = scalar_select %p884, %s36, 1
      %s886 = smul.addr %s885, 4
      %s887 = smul.addr %s886, 4
      %s888 = scalar_lea.vmem %s10, %s887
      %p889 = scmp.lt.s32.totalorder %s36, 1
      %s890 = scalar_select %p889, %s36, 1
      %s891 = scalar_lea.vmem %s11, %s890
      %p892 = scmp.lt.s32.totalorder %s36, 1
      %s893 = scalar_select %p892, %s36, 1
      %s894 = smul.addr %s893, 4
      %s895 = smul.addr %s894, 4
      %s896 = scalar_lea.vmem %s12, %s895
      %p897 = scmp.lt.s32.totalorder %s36, 1
      %s898 = scalar_select %p897, %s36, 1
      %s899 = scalar_lea.vmem %s13, %s898
      %p900 = scmp.lt.s32.totalorder %s36, 1
      %s901 = scalar_select %p900, %s36, 1
      %s902 = scalar_lea.vmem %s14, %s901
      %p903 = scmp.lt.s32.totalorder %s36, 1
      %s904 = scalar_select %p903, %s36, 1
      %s905 = scalar_lea.vmem %s15, %s904
      %p906 = scmp.lt.s32.totalorder %s36, 1
      %s907 = scalar_select %p906, %s36, 1
      %s908 = smul.addr %s907, 4
      %s909 = smul.addr %s908, 4
      %s910 = scalar_lea.vmem %s16, %s909
      %p911 = scmp.lt.s32.totalorder %s36, 1
      %s912 = scalar_select %p911, %s36, 1
      %s913 = scalar_lea.vmem %s17, %s912
      %p914 = scmp.lt.s32.totalorder %s36, 1
      %s915 = scalar_select %p914, %s36, 1
      %s916 = smul.addr %s915, 16
      %s917 = smul.addr %s916, 4
      %s918 = scalar_lea.vmem %s18, %s917
      %p919 = scmp.lt.s32.totalorder %s36, 1
      %s920 = scalar_select %p919, %s36, 1
      %s921 = scalar_lea.vmem %s19, %s920
      %p923 = scmp.eq.s32.totalorder %s36, 0
      // Predicated region
      $region121: #{decision_transformer_forward.1} parent=119 // pred_check
        %p924 = pneg %p923
      $region122: #{decision_transformer_forward.1} parent=119 // pred_check_branch
        %926 = sbr.rel (%p924) target = $region124
      $region123: #{decision_transformer_forward.1} parent=119 // pred_region
        %v927 = vld [vmem:[%s0] sm:$0xff]
        %v928 = vpack.c.bf16 %v927, %v927
        %v929 = vld [vmem:[%s2] sm:$0xf]
        %v930 = vld [vmem:[%s2 + $0x4] sm:$0x7]
        %v931 = vld [vmem:[%s3] sm:$0x1]
        %v933 = vlaneseq
        %v934 = vshrl.u32 %v933, 7
        %v935 = vsub.s32 0, %v934
        %v936 = vrot.slane %v931, %v935
        %v940 = vunpack.c.l.b16 %v929
        %v941 = vunpack.c.l.b16 %v930
        %v942 = vpack.c.b16 %v941, %v940
        %vm943 = vcmask 105472
        %v945 = vsel %vm943, %v928, 0
        %vm947 = vcmask 1045504
        %vm948 = vcmask 1046528
        %v949 = vsel %vm947, 4294967295, 65535
        %v950 = vsel %vm948, %v949, 0
        %v952 = vand.u32 %v942, %v950
        %954 = vmatprep.subr.bf16.mxu0 0
        %955 = vmatpush1.bf16.msra.mxu0 0
        %956 = vmatprep.subr.bf16.mxu0 0
        %957 = vmatpush1.bf16.msra.mxu0 0
        %958 = vmatprep.subr.bf16.mxu0 0
        %959 = vmatpush1.bf16.msra.mxu0 0
        %960 = vmatprep.subr.bf16.mxu0 0
        %961 = vmatpush1.bf16.msra.mxu0 0
        %962 = vmatprep.subr.bf16.mxu0 0
        %963 = vmatpush1.bf16.msra.mxu0 0
        %964 = vmatprep.subr.bf16.mxu0 0
        %965 = vmatpush1.bf16.msra.mxu0 0
        %966 = vmatprep.subr.bf16.mxu0 0
        %967 = vmatpush1.bf16.msra.mxu0 0
        %968 = vmatprep.subr.bf16.mxu0 0
        %969 = vmatpush1.bf16.msra.mxu0 %v952
        %970 = vmatprep.subr.bf16.mxu0 0
        %971 = vmatpush2.bf16.msra.mxu0 0
        %972 = vmatprep.subr.bf16.mxu0 0
        %973 = vmatpush2.bf16.msra.mxu0 0
        %974 = vmatprep.subr.bf16.mxu0 0
        %975 = vmatpush2.bf16.msra.mxu0 0
        %976 = vmatprep.subr.bf16.mxu0 0
        %977 = vmatpush2.bf16.msra.mxu0 0
        %978 = vmatprep.subr.bf16.mxu0 0
        %979 = vmatpush2.bf16.msra.mxu0 0
        %980 = vmatprep.subr.bf16.mxu0 0
        %981 = vmatpush2.bf16.msra.mxu0 0
        %982 = vmatprep.subr.bf16.mxu0 0
        %983 = vmatpush2.bf16.msra.mxu0 0
        %984 = vmatprep.subr.bf16.mxu0 0
        %985 = vmatpush2.bf16.msra.mxu0 0
        %986 = vmatprep.mubr.bf16.mxu0 0
        %987 = vmatmul.mubr.bf16.gmra.mxu0 %v945
        %v988 = vpop.f32.mrf.mxu0
        %v989 = vadd.f32 %v936, %v988
        %v990 = vpop.f32.mrf.mxu0
        %v991 = vpop.f32.mrf.mxu0
        %v992 = vpop.f32.mrf.mxu0
        %993 = vdwg.mxu0
        %v994 = vld [vmem:[%s1] sm:$0xff]
        %v995 = vadd.f32 %v989, %v994
        %v996 = vld [vmem:[%s4] sm:$0x1]
        %v997 = vld [vmem:[%s5] sm:$0x1]
        %vm998 = vcmask 261120
        %v999 = vsel %vm998, %v995, 0.0
        %1000 = vadd.xlane.f32.xlu0 %v999
        %v1001 = vpop.xlane.xlu0 %1000
        %v1002 = vrcp.pop 32.0
        %v1003 = vmul.f32 %v1001, %v1002
        %v1004 = vsub.f32 %v995, %v1003
        %v1005 = vmul.f32 %v1004, %v1004
        %v1006 = vsel %vm998, %v1005, 0.0
        %1007 = vadd.xlane.f32.xlu0 %v1006
        %v1008 = vpop.xlane.xlu0 %1007
        %v1009 = vmul.f32 %v1008, %v1002
        %v1010 = vadd.f32 %v1009, 1e-05
        %v1011 = vrsqrt.pop %v1010
        %v1012 = vmul.f32 %v1004, %v1011
        %v1014 = vlaneseq
        %v1015 = vshrl.u32 %v1014, 7
        %v1016 = vsub.s32 0, %v1015
        %v1017 = vrot.slane %v996, %v1016
        %v1019 = vmul.f32 %v1012, %v1017
        %v1021 = vlaneseq
        %v1022 = vshrl.u32 %v1021, 7
        %v1023 = vsub.s32 0, %v1022
        %v1024 = vrot.slane %v997, %v1023
        %v1026 = vadd.f32 %v1019, %v1024
        %v1027 = vld [vmem:[%s6] sm:$0xff]
        %v1028 = vadd.f32 %v1026, %v1027
        %1029 = vst.msk [vmem:[#allocation2] sm:$0xff] %vm998, %v1028
        %1031 = vrot.lane.b32.xlu0 %v994, 32
        %v1032 = vpop.permute.xlu0 %1031
        %v1034 = vadd.f32 %v989, %v1032
        %v1035 = vld [vmem:[%s4] sm:$0x1]
        %v1036 = vld [vmem:[%s5] sm:$0x1]
        %1038 = vrot.lane.b32.xlu0 %v1034, 96
        %v1039 = vpop.permute.xlu0 %1038
        %v1041 = vsel %vm998, %v1039, 0.0
        %1042 = vadd.xlane.f32.xlu0 %v1041
        %v1043 = vpop.xlane.xlu0 %1042
        %v1044 = vmul.f32 %v1043, %v1002
        %v1045 = vsub.f32 %v1034, %v1044
        %v1046 = vmul.f32 %v1045, %v1045
        %1048 = vrot.lane.b32.xlu0 %v1046, 96
        %v1049 = vpop.permute.xlu0 %1048
        %v1051 = vsel %vm998, %v1049, 0.0
        %1052 = vadd.xlane.f32.xlu0 %v1051
        %v1053 = vpop.xlane.xlu0 %1052
        %v1054 = vmul.f32 %v1053, %v1002
        %v1055 = vadd.f32 %v1054, 1e-05
        %v1056 = vrsqrt.pop %v1055
        %v1057 = vmul.f32 %v1045, %v1056
        %v1059 = vlaneseq
        %v1060 = vshrl.u32 %v1059, 7
        %v1061 = vsub.s32 0, %v1060
        %v1062 = vrot.slane %v1035, %v1061
        %1063 = vrot.lane.b32.xlu0 %v1062, 32
        %v1064 = vpop.permute.xlu0 %1063
        %v1066 = vmul.f32 %v1057, %v1064
        %v1068 = vlaneseq
        %v1069 = vshrl.u32 %v1068, 7
        %v1070 = vsub.s32 0, %v1069
        %v1071 = vrot.slane %v1036, %v1070
        %1072 = vrot.lane.b32.xlu0 %v1071, 32
        %v1073 = vpop.permute.xlu0 %1072
        %v1075 = vadd.f32 %v1066, %v1073
        %v1076 = vld [vmem:[%s6 + $0x8] sm:$0xff]
        %1078 = vrot.lane.b32.xlu0 %v1076, 32
        %v1079 = vpop.permute.xlu0 %1078
        %v1081 = vadd.f32 %v1075, %v1079
        %1083 = vrot.lane.b32.xlu0 %v1081, 96
        %v1084 = vpop.permute.xlu0 %1083
        %1086 = vst.msk [vmem:[#allocation2 + $0x8] sm:$0xff] %vm998, %v1084
        %1087 = vrot.lane.b32.xlu0 %v994, 64
        %v1088 = vpop.permute.xlu0 %1087
        %v1090 = vadd.f32 %v989, %v1088
        %v1091 = vld [vmem:[%s4] sm:$0x1]
        %v1092 = vld [vmem:[%s5] sm:$0x1]
        %1094 = vrot.lane.b32.xlu0 %v1090, 64
        %v1095 = vpop.permute.xlu0 %1094
        %v1097 = vsel %vm998, %v1095, 0.0
        %1098 = vadd.xlane.f32.xlu0 %v1097
        %v1099 = vpop.xlane.xlu0 %1098
        %v1100 = vmul.f32 %v1099, %v1002
        %v1101 = vsub.f32 %v1090, %v1100
        %v1102 = vmul.f32 %v1101, %v1101
        %1104 = vrot.lane.b32.xlu0 %v1102, 64
        %v1105 = vpop.permute.xlu0 %1104
        %v1107 = vsel %vm998, %v1105, 0.0
        %1108 = vadd.xlane.f32.xlu0 %v1107
        %v1109 = vpop.xlane.xlu0 %1108
        %v1110 = vmul.f32 %v1109, %v1002
        %v1111 = vadd.f32 %v1110, 1e-05
        %v1112 = vrsqrt.pop %v1111
        %v1113 = vmul.f32 %v1101, %v1112
        %v1115 = vlaneseq
        %v1116 = vshrl.u32 %v1115, 7
        %v1117 = vsub.s32 0, %v1116
        %v1118 = vrot.slane %v1091, %v1117
        %1119 = vrot.lane.b32.xlu0 %v1118, 64
        %v1120 = vpop.permute.xlu0 %1119
        %v1122 = vmul.f32 %v1113, %v1120
        %v1124 = vlaneseq
        %v1125 = vshrl.u32 %v1124, 7
        %v1126 = vsub.s32 0, %v1125
        %v1127 = vrot.slane %v1092, %v1126
        %1128 = vrot.lane.b32.xlu0 %v1127, 64
        %v1129 = vpop.permute.xlu0 %1128
        %v1131 = vadd.f32 %v1122, %v1129
        %v1132 = vld [vmem:[%s6 + $0x10] sm:$0xff]
        %1134 = vrot.lane.b32.xlu0 %v1132, 64
        %v1135 = vpop.permute.xlu0 %1134
        %v1137 = vadd.f32 %v1131, %v1135
        %1139 = vrot.lane.b32.xlu0 %v1137, 64
        %v1140 = vpop.permute.xlu0 %1139
        %1142 = vst.msk [vmem:[#allocation2 + $0x10] sm:$0xff] %vm998, %v1140
        %s1143 = scalar_lea.vmem %s0, 8
        %v1144 = vld [vmem:[%s1143] sm:$0xff]
        %v1145 = vpack.c.bf16 %v1144, %v1144
        %v1146 = vld [vmem:[%s2] sm:$0xf]
        %v1147 = vld [vmem:[%s2 + $0x4] sm:$0x7]
        %v1148 = vld [vmem:[%s3] sm:$0x1]
        %v1150 = vlaneseq
        %v1151 = vshrl.u32 %v1150, 7
        %v1152 = vsub.s32 0, %v1151
        %v1153 = vrot.slane %v1148, %v1152
        %v1157 = vunpack.c.l.b16 %v1146
        %v1158 = vunpack.c.l.b16 %v1147
        %v1159 = vpack.c.b16 %v1158, %v1157
        %v1161 = vsel %vm943, %v1145, 0
        %v1164 = vand.u32 %v1159, %v950
        %1166 = vmatprep.subr.bf16.mxu0 0
        %1167 = vmatpush1.bf16.msra.mxu0 0
        %1168 = vmatprep.subr.bf16.mxu0 0
        %1169 = vmatpush1.bf16.msra.mxu0 0
        %1170 = vmatprep.subr.bf16.mxu0 0
        %1171 = vmatpush1.bf16.msra.mxu0 0
        %1172 = vmatprep.subr.bf16.mxu0 0
        %1173 = vmatpush1.bf16.msra.mxu0 0
        %1174 = vmatprep.subr.bf16.mxu0 0
        %1175 = vmatpush1.bf16.msra.mxu0 0
        %1176 = vmatprep.subr.bf16.mxu0 0
        %1177 = vmatpush1.bf16.msra.mxu0 0
        %1178 = vmatprep.subr.bf16.mxu0 0
        %1179 = vmatpush1.bf16.msra.mxu0 0
        %1180 = vmatprep.subr.bf16.mxu0 0
        %1181 = vmatpush1.bf16.msra.mxu0 %v1164
        %1182 = vmatprep.subr.bf16.mxu0 0
        %1183 = vmatpush2.bf16.msra.mxu0 0
        %1184 = vmatprep.subr.bf16.mxu0 0
        %1185 = vmatpush2.bf16.msra.mxu0 0
        %1186 = vmatprep.subr.bf16.mxu0 0
        %1187 = vmatpush2.bf16.msra.mxu0 0
        %1188 = vmatprep.subr.bf16.mxu0 0
        %1189 = vmatpush2.bf16.msra.mxu0 0
        %1190 = vmatprep.subr.bf16.mxu0 0
        %1191 = vmatpush2.bf16.msra.mxu0 0
        %1192 = vmatprep.subr.bf16.mxu0 0
        %1193 = vmatpush2.bf16.msra.mxu0 0
        %1194 = vmatprep.subr.bf16.mxu0 0
        %1195 = vmatpush2.bf16.msra.mxu0 0
        %1196 = vmatprep.subr.bf16.mxu0 0
        %1197 = vmatpush2.bf16.msra.mxu0 0
        %1198 = vmatprep.mubr.bf16.mxu0 0
        %1199 = vmatmul.mubr.bf16.gmra.mxu0 %v1161
        %v1200 = vpop.f32.mrf.mxu0
        %v1201 = vadd.f32 %v1153, %v1200
        %v1202 = vpop.f32.mrf.mxu0
        %v1203 = vpop.f32.mrf.mxu0
        %v1204 = vpop.f32.mrf.mxu0
        %1205 = vdwg.mxu0
        %s1206 = scalar_lea.vmem %s1, 8
        %v1207 = vld [vmem:[%s1206] sm:$0xff]
        %v1208 = vadd.f32 %v1201, %v1207
        %v1209 = vld [vmem:[%s4] sm:$0x1]
        %v1210 = vld [vmem:[%s5] sm:$0x1]
        %v1211 = vsel %vm998, %v1208, 0.0
        %1212 = vadd.xlane.f32.xlu0 %v1211
        %v1213 = vpop.xlane.xlu0 %1212
        %v1214 = vmul.f32 %v1213, %v1002
        %v1215 = vsub.f32 %v1208, %v1214
        %v1216 = vmul.f32 %v1215, %v1215
        %v1217 = vsel %vm998, %v1216, 0.0
        %1218 = vadd.xlane.f32.xlu0 %v1217
        %v1219 = vpop.xlane.xlu0 %1218
        %v1220 = vmul.f32 %v1219, %v1002
        %v1221 = vadd.f32 %v1220, 1e-05
        %v1222 = vrsqrt.pop %v1221
        %v1223 = vmul.f32 %v1215, %v1222
        %v1225 = vlaneseq
        %v1226 = vshrl.u32 %v1225, 7
        %v1227 = vsub.s32 0, %v1226
        %v1228 = vrot.slane %v1209, %v1227
        %v1230 = vmul.f32 %v1223, %v1228
        %v1232 = vlaneseq
        %v1233 = vshrl.u32 %v1232, 7
        %v1234 = vsub.s32 0, %v1233
        %v1235 = vrot.slane %v1210, %v1234
        %v1237 = vadd.f32 %v1230, %v1235
        %v1238 = vld [vmem:[%s6] sm:$0xff]
        %v1239 = vadd.f32 %v1237, %v1238
        %1240 = vst.msk [vmem:[#allocation2 + $0x18] sm:$0xff] %vm998, %v1239
        %1242 = vrot.lane.b32.xlu0 %v1207, 32
        %v1243 = vpop.permute.xlu0 %1242
        %v1245 = vadd.f32 %v1201, %v1243
        %v1246 = vld [vmem:[%s4] sm:$0x1]
        %v1247 = vld [vmem:[%s5] sm:$0x1]
        %1249 = vrot.lane.b32.xlu0 %v1245, 96
        %v1250 = vpop.permute.xlu0 %1249
        %v1252 = vsel %vm998, %v1250, 0.0
        %1253 = vadd.xlane.f32.xlu0 %v1252
        %v1254 = vpop.xlane.xlu0 %1253
        %v1255 = vmul.f32 %v1254, %v1002
        %v1256 = vsub.f32 %v1245, %v1255
        %v1257 = vmul.f32 %v1256, %v1256
        %1259 = vrot.lane.b32.xlu0 %v1257, 96
        %v1260 = vpop.permute.xlu0 %1259
        %v1262 = vsel %vm998, %v1260, 0.0
        %1263 = vadd.xlane.f32.xlu0 %v1262
        %v1264 = vpop.xlane.xlu0 %1263
        %v1265 = vmul.f32 %v1264, %v1002
        %v1266 = vadd.f32 %v1265, 1e-05
        %v1267 = vrsqrt.pop %v1266
        %v1268 = vmul.f32 %v1256, %v1267
        %v1270 = vlaneseq
        %v1271 = vshrl.u32 %v1270, 7
        %v1272 = vsub.s32 0, %v1271
        %v1273 = vrot.slane %v1246, %v1272
        %1274 = vrot.lane.b32.xlu0 %v1273, 32
        %v1275 = vpop.permute.xlu0 %1274
        %v1277 = vmul.f32 %v1268, %v1275
        %v1279 = vlaneseq
        %v1280 = vshrl.u32 %v1279, 7
        %v1281 = vsub.s32 0, %v1280
        %v1282 = vrot.slane %v1247, %v1281
        %1283 = vrot.lane.b32.xlu0 %v1282, 32
        %v1284 = vpop.permute.xlu0 %1283
        %v1286 = vadd.f32 %v1277, %v1284
        %v1287 = vld [vmem:[%s6 + $0x8] sm:$0xff]
        %1289 = vrot.lane.b32.xlu0 %v1287, 32
        %v1290 = vpop.permute.xlu0 %1289
        %v1292 = vadd.f32 %v1286, %v1290
        %1294 = vrot.lane.b32.xlu0 %v1292, 96
        %v1295 = vpop.permute.xlu0 %1294
        %1297 = vst.msk [vmem:[#allocation2 + $0x20] sm:$0xff] %vm998, %v1295
        %1298 = vrot.lane.b32.xlu0 %v1207, 64
        %v1299 = vpop.permute.xlu0 %1298
        %v1301 = vadd.f32 %v1201, %v1299
        %v1302 = vld [vmem:[%s4] sm:$0x1]
        %v1303 = vld [vmem:[%s5] sm:$0x1]
        %1305 = vrot.lane.b32.xlu0 %v1301, 64
        %v1306 = vpop.permute.xlu0 %1305
        %v1308 = vsel %vm998, %v1306, 0.0
        %1309 = vadd.xlane.f32.xlu0 %v1308
        %v1310 = vpop.xlane.xlu0 %1309
        %v1311 = vmul.f32 %v1310, %v1002
        %v1312 = vsub.f32 %v1301, %v1311
        %v1313 = vmul.f32 %v1312, %v1312
        %1315 = vrot.lane.b32.xlu0 %v1313, 64
        %v1316 = vpop.permute.xlu0 %1315
        %v1318 = vsel %vm998, %v1316, 0.0
        %1319 = vadd.xlane.f32.xlu0 %v1318
        %v1320 = vpop.xlane.xlu0 %1319
        %v1321 = vmul.f32 %v1320, %v1002
        %v1322 = vadd.f32 %v1321, 1e-05
        %v1323 = vrsqrt.pop %v1322
        %v1324 = vmul.f32 %v1312, %v1323
        %v1326 = vlaneseq
        %v1327 = vshrl.u32 %v1326, 7
        %v1328 = vsub.s32 0, %v1327
        %v1329 = vrot.slane %v1302, %v1328
        %1330 = vrot.lane.b32.xlu0 %v1329, 64
        %v1331 = vpop.permute.xlu0 %1330
        %v1333 = vmul.f32 %v1324, %v1331
        %v1335 = vlaneseq
        %v1336 = vshrl.u32 %v1335, 7
        %v1337 = vsub.s32 0, %v1336
        %v1338 = vrot.slane %v1303, %v1337
        %1339 = vrot.lane.b32.xlu0 %v1338, 64
        %v1340 = vpop.permute.xlu0 %1339
        %v1342 = vadd.f32 %v1333, %v1340
        %v1343 = vld [vmem:[%s6 + $0x10] sm:$0xff]
        %1345 = vrot.lane.b32.xlu0 %v1343, 64
        %v1346 = vpop.permute.xlu0 %1345
        %v1348 = vadd.f32 %v1342, %v1346
        %1350 = vrot.lane.b32.xlu0 %v1348, 64
        %v1351 = vpop.permute.xlu0 %1350
        %1353 = vst.msk [vmem:[#allocation2 + $0x28] sm:$0xff] %vm998, %v1351
      $region124: #{decision_transformer_forward.1} parent=119 // pred_fallthru
        _
      %v1354 = vld [vmem:[#allocation2] sm:$0xff]
      %v1355 = vld [vmem:[#allocation2 + $0x8] sm:$0xff]
      %v1356 = vld [vmem:[#allocation2 + $0x10] sm:$0xff]
      %v1357 = vld [vmem:[#allocation2 + $0x18] sm:$0xff]
      %v1358 = vld [vmem:[#allocation2 + $0x20] sm:$0xff]
      %v1359 = vld [vmem:[#allocation2 + $0x28] sm:$0xff]
      %v1360 = vld [vmem:[%s880] sm:$0x1]
      %v1361 = vld [vmem:[%s883] sm:$0x1]
      %vm1362 = vcmask 261120
      %v1363 = vsel %vm1362, %v1354, 0.0
      %1364 = vadd.xlane.f32.xlu0 %v1363
      %v1365 = vpop.xlane.xlu0 %1364
      %v1366 = vsel %vm1362, %v1355, 0.0
      %1367 = vadd.xlane.f32.xlu0 %v1366
      %v1368 = vpop.xlane.xlu0 %1367
      %v1369 = vsel %vm1362, %v1356, 0.0
      %1370 = vadd.xlane.f32.xlu0 %v1369
      %v1371 = vpop.xlane.xlu0 %1370
      %v1372 = vsel %vm1362, %v1357, 0.0
      %1373 = vadd.xlane.f32.xlu0 %v1372
      %v1374 = vpop.xlane.xlu0 %1373
      %v1375 = vsel %vm1362, %v1358, 0.0
      %1376 = vadd.xlane.f32.xlu0 %v1375
      %v1377 = vpop.xlane.xlu0 %1376
      %v1378 = vsel %vm1362, %v1359, 0.0
      %1379 = vadd.xlane.f32.xlu0 %v1378
      %v1380 = vpop.xlane.xlu0 %1379
      %v1381 = vrcp.pop 32.0
      %v1382 = vmul.f32 %v1365, %v1381
      %v1383 = vmul.f32 %v1368, %v1381
      %v1384 = vmul.f32 %v1371, %v1381
      %v1385 = vmul.f32 %v1374, %v1381
      %v1386 = vmul.f32 %v1377, %v1381
      %v1387 = vmul.f32 %v1380, %v1381
      %v1388 = vsub.f32 %v1354, %v1382
      %v1389 = vsub.f32 %v1355, %v1383
      %v1390 = vsub.f32 %v1356, %v1384
      %v1391 = vsub.f32 %v1357, %v1385
      %v1392 = vsub.f32 %v1358, %v1386
      %v1393 = vsub.f32 %v1359, %v1387
      %v1394 = vmul.f32 %v1388, %v1388
      %v1395 = vmul.f32 %v1389, %v1389
      %v1396 = vmul.f32 %v1390, %v1390
      %v1397 = vmul.f32 %v1391, %v1391
      %v1398 = vmul.f32 %v1392, %v1392
      %v1399 = vmul.f32 %v1393, %v1393
      %v1400 = vsel %vm1362, %v1394, 0.0
      %1401 = vadd.xlane.f32.xlu0 %v1400
      %v1402 = vpop.xlane.xlu0 %1401
      %v1403 = vsel %vm1362, %v1395, 0.0
      %1404 = vadd.xlane.f32.xlu0 %v1403
      %v1405 = vpop.xlane.xlu0 %1404
      %v1406 = vsel %vm1362, %v1396, 0.0
      %1407 = vadd.xlane.f32.xlu0 %v1406
      %v1408 = vpop.xlane.xlu0 %1407
      %v1409 = vsel %vm1362, %v1397, 0.0
      %1410 = vadd.xlane.f32.xlu0 %v1409
      %v1411 = vpop.xlane.xlu0 %1410
      %v1412 = vsel %vm1362, %v1398, 0.0
      %1413 = vadd.xlane.f32.xlu0 %v1412
      %v1414 = vpop.xlane.xlu0 %1413
      %v1415 = vsel %vm1362, %v1399, 0.0
      %1416 = vadd.xlane.f32.xlu0 %v1415
      %v1417 = vpop.xlane.xlu0 %1416
      %v1418 = vmul.f32 %v1402, %v1381
      %v1419 = vmul.f32 %v1405, %v1381
      %v1420 = vmul.f32 %v1408, %v1381
      %v1421 = vmul.f32 %v1411, %v1381
      %v1422 = vmul.f32 %v1414, %v1381
      %v1423 = vmul.f32 %v1417, %v1381
      %v1424 = vadd.f32 %v1418, 1e-05
      %v1425 = vadd.f32 %v1419, 1e-05
      %v1426 = vadd.f32 %v1420, 1e-05
      %v1427 = vadd.f32 %v1421, 1e-05
      %v1428 = vadd.f32 %v1422, 1e-05
      %v1429 = vadd.f32 %v1423, 1e-05
      %v1430 = vrsqrt.pop %v1424
      %v1431 = vrsqrt.pop %v1425
      %v1432 = vrsqrt.pop %v1426
      %v1433 = vrsqrt.pop %v1427
      %v1434 = vrsqrt.pop %v1428
      %v1435 = vrsqrt.pop %v1429
      %v1436 = vmul.f32 %v1388, %v1430
      %v1437 = vmul.f32 %v1389, %v1431
      %v1438 = vmul.f32 %v1390, %v1432
      %v1439 = vmul.f32 %v1391, %v1433
      %v1440 = vmul.f32 %v1392, %v1434
      %v1441 = vmul.f32 %v1393, %v1435
      %v1443 = vlaneseq
      %v1444 = vshrl.u32 %v1443, 7
      %v1445 = vsub.s32 0, %v1444
      %v1446 = vrot.slane %v1360, %v1445
      %v1448 = vmul.f32 %v1436, %v1446
      %v1449 = vmul.f32 %v1437, %v1446
      %v1450 = vmul.f32 %v1438, %v1446
      %v1451 = vmul.f32 %v1439, %v1446
      %v1452 = vmul.f32 %v1440, %v1446
      %v1453 = vmul.f32 %v1441, %v1446
      %v1455 = vlaneseq
      %v1456 = vshrl.u32 %v1455, 7
      %v1457 = vsub.s32 0, %v1456
      %v1458 = vrot.slane %v1361, %v1457
      %v1460 = vadd.f32 %v1448, %v1458
      %v1461 = vadd.f32 %v1449, %v1458
      %v1462 = vadd.f32 %v1450, %v1458
      %v1463 = vadd.f32 %v1451, %v1458
      %v1464 = vadd.f32 %v1452, %v1458
      %v1465 = vadd.f32 %v1453, %v1458
      %v1466 = vpack.c.bf16 %v1461, %v1460
      %v1467 = vpack.c.bf16 %v1463, %v1462
      %v1468 = vpack.c.bf16 %v1465, %v1464
      %v1469 = vld [vmem:[%s888] sm:$0xf]
      %v1470 = vld [vmem:[%s888 + $0x4] sm:$0xf]
      %v1471 = vld [vmem:[%s888 + $0x8] sm:$0xf]
      %v1472 = vld [vmem:[%s888 + $0xc] sm:$0xf]
      %v1473 = vld [vmem:[%s891] sm:$0x1]
      %v1475 = vlaneseq
      %v1476 = vshrl.u32 %v1475, 7
      %v1477 = vsub.s32 0, %v1476
      %v1478 = vrot.slane %v1473, %v1477
      %v1484 = vunpack.c.l.b16 %v1469
      %v1485 = vunpack.c.l.b16 %v1470
      %v1486 = vunpack.c.l.b16 %v1471
      %v1487 = vunpack.c.l.b16 %v1472
      %v1488 = vpack.c.b16 %v1485, %v1484
      %v1489 = vpack.c.b16 %v1487, %v1486
      %v1493 = vsel %vm1362, %v1466, 0
      %v1496 = vsel %vm1362, %v1467, 0
      %v1499 = vsel %vm1362, %v1468, 0
      %1501 = vmatprep.subr.bf16.mxu0 0
      %1502 = vmatpush1.bf16.msra.mxu0 0
      %1503 = vmatprep.subr.bf16.mxu0 0
      %1504 = vmatpush1.bf16.msra.mxu0 0
      %1505 = vmatprep.subr.bf16.mxu0 0
      %1506 = vmatpush1.bf16.msra.mxu0 0
      %1507 = vmatprep.subr.bf16.mxu0 0
      %1508 = vmatpush1.bf16.msra.mxu0 0
      %1509 = vmatprep.subr.bf16.mxu0 0
      %1510 = vmatpush1.bf16.msra.mxu0 0
      %1511 = vmatprep.subr.bf16.mxu0 0
      %1512 = vmatpush1.bf16.msra.mxu0 0
      %1513 = vmatprep.subr.bf16.mxu0 0
      %1514 = vmatpush1.bf16.msra.mxu0 %v1489
      %1515 = vmatprep.subr.bf16.mxu0 0
      %1516 = vmatpush1.bf16.msra.mxu0 %v1488
      %1517 = vmatprep.subr.bf16.mxu0 0
      %1518 = vmatpush2.bf16.msra.mxu0 0
      %1519 = vmatprep.subr.bf16.mxu0 0
      %1520 = vmatpush2.bf16.msra.mxu0 0
      %1521 = vmatprep.subr.bf16.mxu0 0
      %1522 = vmatpush2.bf16.msra.mxu0 0
      %1523 = vmatprep.subr.bf16.mxu0 0
      %1524 = vmatpush2.bf16.msra.mxu0 0
      %1525 = vmatprep.subr.bf16.mxu0 0
      %1526 = vmatpush2.bf16.msra.mxu0 0
      %1527 = vmatprep.subr.bf16.mxu0 0
      %1528 = vmatpush2.bf16.msra.mxu0 0
      %1529 = vmatprep.subr.bf16.mxu0 0
      %1530 = vmatpush2.bf16.msra.mxu0 0
      %1531 = vmatprep.subr.bf16.mxu0 0
      %1532 = vmatpush2.bf16.msra.mxu0 0
      %1533 = vmatprep.mubr.bf16.mxu0 0
      %1534 = vmatmul.mubr.bf16.gmra.mxu0 %v1493
      %v1535 = vpop.f32.mrf.mxu0
      %v1536 = vadd.f32 %v1478, %v1535
      %v1537 = vpop.f32.mrf.mxu0
      %v1538 = vpop.f32.mrf.mxu0
      %v1539 = vadd.f32 %v1478, %v1538
      %v1540 = vpop.f32.mrf.mxu0
      %1541 = vmatprep.mubr.bf16.mxu0 0
      %1542 = vmatmul.mubr.bf16.gmra.mxu0 %v1496
      %v1543 = vpop.f32.mrf.mxu0
      %v1544 = vadd.f32 %v1478, %v1543
      %v1545 = vpop.f32.mrf.mxu0
      %v1546 = vpop.f32.mrf.mxu0
      %v1547 = vadd.f32 %v1478, %v1546
      %v1548 = vpop.f32.mrf.mxu0
      %1549 = vmatprep.mubr.bf16.mxu0 0
      %1550 = vmatmul.mubr.bf16.gmra.mxu0 %v1499
      %v1551 = vpop.f32.mrf.mxu0
      %v1552 = vadd.f32 %v1478, %v1551
      %v1553 = vpop.f32.mrf.mxu0
      %v1554 = vpop.f32.mrf.mxu0
      %v1555 = vadd.f32 %v1478, %v1554
      %v1556 = vpop.f32.mrf.mxu0
      %1557 = vdwg.mxu0
      %v1558 = vld [vmem:[%s7] sm:$0xff]
      %v1559 = vld [vmem:[%s7 + $0x8] sm:$0xff]
      %v1560 = vld [vmem:[%s7 + $0x10] sm:$0xff]
      %v1561 = vpack.c.bf16 %v1539, %v1536
      %v1562 = vpack.c.bf16 %v1544, %v1544
      %1565 = vrot.lane.b32.xlu0 %v1561, 96
      %v1566 = vpop.permute.xlu0 %1565
      %1567 = vrot.lane.b32.xlu0 %v1562, 96
      %v1568 = vpop.permute.xlu0 %1567
      %vm1569 = vcmask 64512
      %v1571 = vsel %vm1569, %v1561, 0
      %v1574 = vsel %vm1569, %v1562, 0
      %v1577 = vsel %vm1569, %v1566, 0
      %v1580 = vsel %vm1569, %v1568, 0
      %1582 = vmatprep.subr.bf16.mxu0 0
      %1583 = vmatpush1.bf16.xpose.msra.mxu0 0
      %1584 = vmatprep.subr.bf16.mxu0 0
      %1585 = vmatpush1.bf16.xpose.msra.mxu0 0
      %1586 = vmatprep.subr.bf16.mxu0 0
      %1587 = vmatpush1.bf16.xpose.msra.mxu0 0
      %1588 = vmatprep.subr.bf16.mxu0 0
      %1589 = vmatpush1.bf16.xpose.msra.mxu0 0
      %1590 = vmatprep.subr.bf16.mxu0 0
      %1591 = vmatpush1.bf16.xpose.msra.mxu0 0
      %1592 = vmatprep.subr.bf16.mxu0 0
      %1593 = vmatpush1.bf16.xpose.msra.mxu0 0
      %1594 = vmatprep.subr.bf16.mxu0 0
      %1595 = vmatpush1.bf16.xpose.msra.mxu0 %v1580
      %1596 = vmatprep.subr.bf16.mxu0 0
      %1597 = vmatpush1.bf16.xpose.msra.mxu0 %v1577
      %1598 = vmatprep.subr.bf16.mxu0 0
      %1599 = vmatpush2.bf16.xpose.msra.mxu0 0
      %1600 = vmatprep.subr.bf16.mxu0 0
      %1601 = vmatpush2.bf16.xpose.msra.mxu0 0
      %1602 = vmatprep.subr.bf16.mxu0 0
      %1603 = vmatpush2.bf16.xpose.msra.mxu0 0
      %1604 = vmatprep.subr.bf16.mxu0 0
      %1605 = vmatpush2.bf16.xpose.msra.mxu0 0
      %1606 = vmatprep.subr.bf16.mxu0 0
      %1607 = vmatpush2.bf16.xpose.msra.mxu0 0
      %1608 = vmatprep.subr.bf16.mxu0 0
      %1609 = vmatpush2.bf16.xpose.msra.mxu0 0
      %1610 = vmatprep.subr.bf16.mxu0 0
      %1611 = vmatpush2.bf16.xpose.msra.mxu0 0
      %1612 = vmatprep.subr.bf16.mxu0 0
      %1613 = vmatpush2.bf16.xpose.msra.mxu0 0
      %1614 = vmatprep.mubr.bf16.mxu0 0
      %1615 = vmatmul.mubr.bf16.gmra.mxu0 %v1571
      %v1616 = vpop.f32.mrf.mxu0
      %v1617 = vadd.f32 0.0, %v1616
      %v1618 = vpop.f32.mrf.mxu0
      %v1619 = vpop.f32.mrf.mxu0
      %v1620 = vadd.f32 0.0, %v1619
      %v1621 = vpop.f32.mrf.mxu0
      %1622 = vmatprep.mubr.bf16.mxu0 0
      %1623 = vmatmul.mubr.bf16.gmra.mxu0 %v1574
      %v1624 = vpop.f32.mrf.mxu0
      %v1625 = vadd.f32 0.0, %v1624
      %v1626 = vpop.f32.mrf.mxu0
      %v1627 = vpop.f32.mrf.mxu0
      %v1628 = vpop.f32.mrf.mxu0
      %1629 = vdwg.mxu0
      %v1630 = vmul.f32 %v1617, 0.35355338
      %v1631 = vmul.f32 %v1620, 0.35355338
      %v1632 = vmul.f32 %v1625, 0.35355338
      %v1633 = vadd.f32 %v1630, %v1558
      %v1634 = vadd.f32 %v1631, %v1559
      %v1635 = vadd.f32 %v1632, %v1560
      %vm1636 = vcmask 195584
      %v1637 = vsel %vm1636, %v1633, -inf
      %1638 = vmax.xlane.f32.xlu0 %v1637
      %v1639 = vpop.xlane.xlu0 %1638
      %v1640 = vsel %vm1636, %v1634, -inf
      %1641 = vmax.xlane.f32.xlu0 %v1640
      %v1642 = vpop.xlane.xlu0 %1641
      %v1643 = vsel %vm1636, %v1635, -inf
      %1644 = vmax.xlane.f32.xlu0 %v1643
      %v1645 = vpop.xlane.xlu0 %1644
      %v1646 = vsub.f32 %v1633, %v1639
      %v1647 = vsub.f32 %v1634, %v1642
      %v1648 = vsub.f32 %v1635, %v1645
      %v1649 = vmul.f32 %v1646, 1.442695
      %v1650 = vpow.pop %v1649
      %v1651 = vmul.f32 %v1647, 1.442695
      %v1652 = vpow.pop %v1651
      %v1653 = vmul.f32 %v1648, 1.442695
      %v1654 = vpow.pop %v1653
      %v1655 = vsel %vm1636, %v1650, 0.0
      %1656 = vadd.xlane.f32.xlu0 %v1655
      %v1657 = vpop.xlane.xlu0 %1656
      %v1658 = vsel %vm1636, %v1652, 0.0
      %1659 = vadd.xlane.f32.xlu0 %v1658
      %v1660 = vpop.xlane.xlu0 %1659
      %v1661 = vsel %vm1636, %v1654, 0.0
      %1662 = vadd.xlane.f32.xlu0 %v1661
      %v1663 = vpop.xlane.xlu0 %1662
      %v1664 = vrcp.pop %v1657
      %v1665 = vrcp.pop %v1660
      %v1666 = vrcp.pop %v1663
      %v1667 = vmul.f32 %v1650, %v1664
      %v1668 = vmul.f32 %v1652, %v1665
      %v1669 = vmul.f32 %v1654, %v1666
      %v1670 = vpack.c.bf16 %v1668, %v1667
      %v1671 = vpack.c.bf16 %v1669, %v1669
      %1672 = vrot.lane.b32.xlu0 %v1561, 64
      %v1673 = vpop.permute.xlu0 %1672
      %1674 = vrot.lane.b32.xlu0 %v1562, 64
      %v1675 = vpop.permute.xlu0 %1674
      %v1678 = vsel %vm1636, %v1670, 0
      %v1681 = vsel %vm1636, %v1671, 0
      %vm1683 = vcmask 1043456
      %v1685 = vsel %vm1683, %v1675, 0
      %1687 = vmatprep.subr.bf16.mxu0 0
      %1688 = vmatpush1.bf16.msra.mxu0 0
      %1689 = vmatprep.subr.bf16.mxu0 0
      %1690 = vmatpush1.bf16.msra.mxu0 0
      %1691 = vmatprep.subr.bf16.mxu0 0
      %1692 = vmatpush1.bf16.msra.mxu0 0
      %1693 = vmatprep.subr.bf16.mxu0 0
      %1694 = vmatpush1.bf16.msra.mxu0 0
      %1695 = vmatprep.subr.bf16.mxu0 0
      %1696 = vmatpush1.bf16.msra.mxu0 0
      %1697 = vmatprep.subr.bf16.mxu0 0
      %1698 = vmatpush1.bf16.msra.mxu0 0
      %1699 = vmatprep.subr.bf16.mxu0 0
      %1700 = vmatpush1.bf16.msra.mxu0 %v1685
      %1701 = vmatprep.subr.bf16.mxu0 0
      %1702 = vmatpush1.bf16.msra.mxu0 %v1673
      %1703 = vmatprep.subr.bf16.mxu0 0
      %1704 = vmatpush2.bf16.msra.mxu0 0
      %1705 = vmatprep.subr.bf16.mxu0 0
      %1706 = vmatpush2.bf16.msra.mxu0 0
      %1707 = vmatprep.subr.bf16.mxu0 0
      %1708 = vmatpush2.bf16.msra.mxu0 0
      %1709 = vmatprep.subr.bf16.mxu0 0
      %1710 = vmatpush2.bf16.msra.mxu0 0
      %1711 = vmatprep.subr.bf16.mxu0 0
      %1712 = vmatpush2.bf16.msra.mxu0 0
      %1713 = vmatprep.subr.bf16.mxu0 0
      %1714 = vmatpush2.bf16.msra.mxu0 0
      %1715 = vmatprep.subr.bf16.mxu0 0
      %1716 = vmatpush2.bf16.msra.mxu0 0
      %1717 = vmatprep.subr.bf16.mxu0 0
      %1718 = vmatpush2.bf16.msra.mxu0 0
      %1719 = vmatprep.mubr.bf16.mxu0 0
      %1720 = vmatmul.mubr.bf16.gmra.mxu0 %v1678
      %v1721 = vpop.f32.mrf.mxu0
      %v1722 = vadd.f32 0.0, %v1721
      %v1723 = vpop.f32.mrf.mxu0
      %v1724 = vpop.f32.mrf.mxu0
      %v1725 = vadd.f32 0.0, %v1724
      %v1726 = vpop.f32.mrf.mxu0
      %1727 = vmatprep.mubr.bf16.mxu0 0
      %1728 = vmatmul.mubr.bf16.gmra.mxu0 %v1681
      %v1729 = vpop.f32.mrf.mxu0
      %v1730 = vadd.f32 0.0, %v1729
      %v1731 = vpop.f32.mrf.mxu0
      %v1732 = vpop.f32.mrf.mxu0
      %v1733 = vpop.f32.mrf.mxu0
      %1734 = vdwg.mxu0
      %v1735 = vpack.c.bf16 %v1725, %v1722
      %v1736 = vpack.c.bf16 %v1730, %v1730
      %v1739 = vunpack.c.l.b16 %v1735
      %v1740 = vunpack.c.h.b16 %v1735
      %v1741 = vunpack.c.l.b16 %v1736
      %v1742 = vpack.c.b16 %v1739, %v1739
      %v1743 = vpack.c.b16 %v1740, %v1740
      %v1744 = vpack.c.b16 %v1741, %v1741
      %vm1748 = vcmask 60416
      %1749 = vst.msk [vmem:[#allocation3] sm:$0xf] %vm1748, %v1742
      %1750 = vst.msk [vmem:[#allocation3 + $0x4] sm:$0xf] %vm1748, %v1743
      %1751 = vst.msk [vmem:[#allocation3 + $0x8] sm:$0xf] %vm1748, %v1744
      %1752 = vrot.lane.b32.xlu0 %v1561, 120
      %v1753 = vpop.permute.xlu0 %1752
      %1754 = vrot.lane.b32.xlu0 %v1562, 120
      %v1755 = vpop.permute.xlu0 %1754
      %1756 = vrot.lane.b32.xlu0 %v1561, 88
      %v1757 = vpop.permute.xlu0 %1756
      %1758 = vrot.lane.b32.xlu0 %v1562, 88
      %v1759 = vpop.permute.xlu0 %1758
      %v1761 = vsel %vm1569, %v1753, 0
      %v1764 = vsel %vm1569, %v1755, 0
      %v1767 = vsel %vm1569, %v1757, 0
      %v1770 = vsel %vm1569, %v1759, 0
      %1772 = vmatprep.subr.bf16.mxu0 0
      %1773 = vmatpush1.bf16.xpose.msra.mxu0 0
      %1774 = vmatprep.subr.bf16.mxu0 0
      %1775 = vmatpush1.bf16.xpose.msra.mxu0 0
      %1776 = vmatprep.subr.bf16.mxu0 0
      %1777 = vmatpush1.bf16.xpose.msra.mxu0 0
      %1778 = vmatprep.subr.bf16.mxu0 0
      %1779 = vmatpush1.bf16.xpose.msra.mxu0 0
      %1780 = vmatprep.subr.bf16.mxu0 0
      %1781 = vmatpush1.bf16.xpose.msra.mxu0 0
      %1782 = vmatprep.subr.bf16.mxu0 0
      %1783 = vmatpush1.bf16.xpose.msra.mxu0 0
      %1784 = vmatprep.subr.bf16.mxu0 0
      %1785 = vmatpush1.bf16.xpose.msra.mxu0 %v1770
      %1786 = vmatprep.subr.bf16.mxu0 0
      %1787 = vmatpush1.bf16.xpose.msra.mxu0 %v1767
      %1788 = vmatprep.subr.bf16.mxu0 0
      %1789 = vmatpush2.bf16.xpose.msra.mxu0 0
      %1790 = vmatprep.subr.bf16.mxu0 0
      %1791 = vmatpush2.bf16.xpose.msra.mxu0 0
      %1792 = vmatprep.subr.bf16.mxu0 0
      %1793 = vmatpush2.bf16.xpose.msra.mxu0 0
      %1794 = vmatprep.subr.bf16.mxu0 0
      %1795 = vmatpush2.bf16.xpose.msra.mxu0 0
      %1796 = vmatprep.subr.bf16.mxu0 0
      %1797 = vmatpush2.bf16.xpose.msra.mxu0 0
      %1798 = vmatprep.subr.bf16.mxu0 0
      %1799 = vmatpush2.bf16.xpose.msra.mxu0 0
      %1800 = vmatprep.subr.bf16.mxu0 0
      %1801 = vmatpush2.bf16.xpose.msra.mxu0 0
      %1802 = vmatprep.subr.bf16.mxu0 0
      %1803 = vmatpush2.bf16.xpose.msra.mxu0 0
      %1804 = vmatprep.mubr.bf16.mxu0 0
      %1805 = vmatmul.mubr.bf16.gmra.mxu0 %v1761
      %v1806 = vpop.f32.mrf.mxu0
      %v1807 = vadd.f32 0.0, %v1806
      %v1808 = vpop.f32.mrf.mxu0
      %v1809 = vpop.f32.mrf.mxu0
      %v1810 = vadd.f32 0.0, %v1809
      %v1811 = vpop.f32.mrf.mxu0
      %1812 = vmatprep.mubr.bf16.mxu0 0
      %1813 = vmatmul.mubr.bf16.gmra.mxu0 %v1764
      %v1814 = vpop.f32.mrf.mxu0
      %v1815 = vadd.f32 0.0, %v1814
      %v1816 = vpop.f32.mrf.mxu0
      %v1817 = vpop.f32.mrf.mxu0
      %v1818 = vpop.f32.mrf.mxu0
      %1819 = vdwg.mxu0
      %v1820 = vmul.f32 %v1807, 0.35355338
      %v1821 = vmul.f32 %v1810, 0.35355338
      %v1822 = vmul.f32 %v1815, 0.35355338
      %v1823 = vadd.f32 %v1820, %v1558
      %v1824 = vadd.f32 %v1821, %v1559
      %v1825 = vadd.f32 %v1822, %v1560
      %v1826 = vsel %vm1636, %v1823, -inf
      %1827 = vmax.xlane.f32.xlu0 %v1826
      %v1828 = vpop.xlane.xlu0 %1827
      %v1829 = vsel %vm1636, %v1824, -inf
      %1830 = vmax.xlane.f32.xlu0 %v1829
      %v1831 = vpop.xlane.xlu0 %1830
      %v1832 = vsel %vm1636, %v1825, -inf
      %1833 = vmax.xlane.f32.xlu0 %v1832
      %v1834 = vpop.xlane.xlu0 %1833
      %v1835 = vsub.f32 %v1823, %v1828
      %v1836 = vsub.f32 %v1824, %v1831
      %v1837 = vsub.f32 %v1825, %v1834
      %v1838 = vmul.f32 %v1835, 1.442695
      %v1839 = vpow.pop %v1838
      %v1840 = vmul.f32 %v1836, 1.442695
      %v1841 = vpow.pop %v1840
      %v1842 = vmul.f32 %v1837, 1.442695
      %v1843 = vpow.pop %v1842
      %v1844 = vsel %vm1636, %v1839, 0.0
      %1845 = vadd.xlane.f32.xlu0 %v1844
      %v1846 = vpop.xlane.xlu0 %1845
      %v1847 = vsel %vm1636, %v1841, 0.0
      %1848 = vadd.xlane.f32.xlu0 %v1847
      %v1849 = vpop.xlane.xlu0 %1848
      %v1850 = vsel %vm1636, %v1843, 0.0
      %1851 = vadd.xlane.f32.xlu0 %v1850
      %v1852 = vpop.xlane.xlu0 %1851
      %v1853 = vrcp.pop %v1846
      %v1854 = vrcp.pop %v1849
      %v1855 = vrcp.pop %v1852
      %v1856 = vmul.f32 %v1839, %v1853
      %v1857 = vmul.f32 %v1841, %v1854
      %v1858 = vmul.f32 %v1843, %v1855
      %v1859 = vpack.c.bf16 %v1857, %v1856
      %v1860 = vpack.c.bf16 %v1858, %v1858
      %1861 = vrot.lane.b32.xlu0 %v1561, 56
      %v1862 = vpop.permute.xlu0 %1861
      %1863 = vrot.lane.b32.xlu0 %v1562, 56
      %v1864 = vpop.permute.xlu0 %1863
      %v1867 = vsel %vm1636, %v1859, 0
      %v1870 = vsel %vm1636, %v1860, 0
      %v1873 = vsel %vm1683, %v1864, 0
      %1875 = vmatprep.subr.bf16.mxu0 0
      %1876 = vmatpush1.bf16.msra.mxu0 0
      %1877 = vmatprep.subr.bf16.mxu0 0
      %1878 = vmatpush1.bf16.msra.mxu0 0
      %1879 = vmatprep.subr.bf16.mxu0 0
      %1880 = vmatpush1.bf16.msra.mxu0 0
      %1881 = vmatprep.subr.bf16.mxu0 0
      %1882 = vmatpush1.bf16.msra.mxu0 0
      %1883 = vmatprep.subr.bf16.mxu0 0
      %1884 = vmatpush1.bf16.msra.mxu0 0
      %1885 = vmatprep.subr.bf16.mxu0 0
      %1886 = vmatpush1.bf16.msra.mxu0 0
      %1887 = vmatprep.subr.bf16.mxu0 0
      %1888 = vmatpush1.bf16.msra.mxu0 %v1873
      %1889 = vmatprep.subr.bf16.mxu0 0
      %1890 = vmatpush1.bf16.msra.mxu0 %v1862
      %1891 = vmatprep.subr.bf16.mxu0 0
      %1892 = vmatpush2.bf16.msra.mxu0 0
      %1893 = vmatprep.subr.bf16.mxu0 0
      %1894 = vmatpush2.bf16.msra.mxu0 0
      %1895 = vmatprep.subr.bf16.mxu0 0
      %1896 = vmatpush2.bf16.msra.mxu0 0
      %1897 = vmatprep.subr.bf16.mxu0 0
      %1898 = vmatpush2.bf16.msra.mxu0 0
      %1899 = vmatprep.subr.bf16.mxu0 0
      %1900 = vmatpush2.bf16.msra.mxu0 0
      %1901 = vmatprep.subr.bf16.mxu0 0
      %1902 = vmatpush2.bf16.msra.mxu0 0
      %1903 = vmatprep.subr.bf16.mxu0 0
      %1904 = vmatpush2.bf16.msra.mxu0 0
      %1905 = vmatprep.subr.bf16.mxu0 0
      %1906 = vmatpush2.bf16.msra.mxu0 0
      %1907 = vmatprep.mubr.bf16.mxu0 0
      %1908 = vmatmul.mubr.bf16.gmra.mxu0 %v1867
      %v1909 = vpop.f32.mrf.mxu0
      %v1910 = vadd.f32 0.0, %v1909
      %v1911 = vpop.f32.mrf.mxu0
      %v1912 = vpop.f32.mrf.mxu0
      %v1913 = vadd.f32 0.0, %v1912
      %v1914 = vpop.f32.mrf.mxu0
      %1915 = vmatprep.mubr.bf16.mxu0 0
      %1916 = vmatmul.mubr.bf16.gmra.mxu0 %v1870
      %v1917 = vpop.f32.mrf.mxu0
      %v1918 = vadd.f32 0.0, %v1917
      %v1919 = vpop.f32.mrf.mxu0
      %v1920 = vpop.f32.mrf.mxu0
      %v1921 = vpop.f32.mrf.mxu0
      %1922 = vdwg.mxu0
      %v1923 = vpack.c.bf16 %v1913, %v1910
      %v1924 = vpack.c.bf16 %v1918, %v1918
      %v1927 = vunpack.c.l.b16 %v1923
      %v1928 = vunpack.c.h.b16 %v1923
      %v1929 = vunpack.c.l.b16 %v1924
      %v1930 = vpack.c.b16 %v1927, %v1927
      %v1931 = vpack.c.b16 %v1928, %v1928
      %v1932 = vpack.c.b16 %v1929, %v1929
      %1933 = vrot.lane.b32.xlu0 %v1930, 8
      %v1934 = vpop.permute.xlu0 %1933
      %1935 = vrot.lane.b32.xlu0 %v1931, 8
      %v1936 = vpop.permute.xlu0 %1935
      %1937 = vrot.lane.b32.xlu0 %v1932, 8
      %v1938 = vpop.permute.xlu0 %1937
      %vm1942 = vcmask 126016
      %1943 = vst.msk [vmem:[#allocation3] sm:$0xf] %vm1942, %v1934
      %1944 = vst.msk [vmem:[#allocation3 + $0x4] sm:$0xf] %vm1942, %v1936
      %1945 = vst.msk [vmem:[#allocation3 + $0x8] sm:$0xf] %vm1942, %v1938
      %1946 = vrot.lane.b32.xlu0 %v1561, 112
      %v1947 = vpop.permute.xlu0 %1946
      %1948 = vrot.lane.b32.xlu0 %v1562, 112
      %v1949 = vpop.permute.xlu0 %1948
      %1950 = vrot.lane.b32.xlu0 %v1561, 80
      %v1951 = vpop.permute.xlu0 %1950
      %1952 = vrot.lane.b32.xlu0 %v1562, 80
      %v1953 = vpop.permute.xlu0 %1952
      %v1955 = vsel %vm1569, %v1947, 0
      %v1958 = vsel %vm1569, %v1949, 0
      %v1961 = vsel %vm1569, %v1951, 0
      %v1964 = vsel %vm1569, %v1953, 0
      %1966 = vmatprep.subr.bf16.mxu0 0
      %1967 = vmatpush1.bf16.xpose.msra.mxu0 0
      %1968 = vmatprep.subr.bf16.mxu0 0
      %1969 = vmatpush1.bf16.xpose.msra.mxu0 0
      %1970 = vmatprep.subr.bf16.mxu0 0
      %1971 = vmatpush1.bf16.xpose.msra.mxu0 0
      %1972 = vmatprep.subr.bf16.mxu0 0
      %1973 = vmatpush1.bf16.xpose.msra.mxu0 0
      %1974 = vmatprep.subr.bf16.mxu0 0
      %1975 = vmatpush1.bf16.xpose.msra.mxu0 0
      %1976 = vmatprep.subr.bf16.mxu0 0
      %1977 = vmatpush1.bf16.xpose.msra.mxu0 0
      %1978 = vmatprep.subr.bf16.mxu0 0
      %1979 = vmatpush1.bf16.xpose.msra.mxu0 %v1964
      %1980 = vmatprep.subr.bf16.mxu0 0
      %1981 = vmatpush1.bf16.xpose.msra.mxu0 %v1961
      %1982 = vmatprep.subr.bf16.mxu0 0
      %1983 = vmatpush2.bf16.xpose.msra.mxu0 0
      %1984 = vmatprep.subr.bf16.mxu0 0
      %1985 = vmatpush2.bf16.xpose.msra.mxu0 0
      %1986 = vmatprep.subr.bf16.mxu0 0
      %1987 = vmatpush2.bf16.xpose.msra.mxu0 0
      %1988 = vmatprep.subr.bf16.mxu0 0
      %1989 = vmatpush2.bf16.xpose.msra.mxu0 0
      %1990 = vmatprep.subr.bf16.mxu0 0
      %1991 = vmatpush2.bf16.xpose.msra.mxu0 0
      %1992 = vmatprep.subr.bf16.mxu0 0
      %1993 = vmatpush2.bf16.xpose.msra.mxu0 0
      %1994 = vmatprep.subr.bf16.mxu0 0
      %1995 = vmatpush2.bf16.xpose.msra.mxu0 0
      %1996 = vmatprep.subr.bf16.mxu0 0
      %1997 = vmatpush2.bf16.xpose.msra.mxu0 0
      %1998 = vmatprep.mubr.bf16.mxu0 0
      %1999 = vmatmul.mubr.bf16.gmra.mxu0 %v1955
      %v2000 = vpop.f32.mrf.mxu0
      %v2001 = vadd.f32 0.0, %v2000
      %v2002 = vpop.f32.mrf.mxu0
      %v2003 = vpop.f32.mrf.mxu0
      %v2004 = vadd.f32 0.0, %v2003
      %v2005 = vpop.f32.mrf.mxu0
      %2006 = vmatprep.mubr.bf16.mxu0 0
      %2007 = vmatmul.mubr.bf16.gmra.mxu0 %v1958
      %v2008 = vpop.f32.mrf.mxu0
      %v2009 = vadd.f32 0.0, %v2008
      %v2010 = vpop.f32.mrf.mxu0
      %v2011 = vpop.f32.mrf.mxu0
      %v2012 = vpop.f32.mrf.mxu0
      %2013 = vdwg.mxu0
      %v2014 = vmul.f32 %v2001, 0.35355338
      %v2015 = vmul.f32 %v2004, 0.35355338
      %v2016 = vmul.f32 %v2009, 0.35355338
      %v2017 = vadd.f32 %v2014, %v1558
      %v2018 = vadd.f32 %v2015, %v1559
      %v2019 = vadd.f32 %v2016, %v1560
      %v2020 = vsel %vm1636, %v2017, -inf
      %2021 = vmax.xlane.f32.xlu0 %v2020
      %v2022 = vpop.xlane.xlu0 %2021
      %v2023 = vsel %vm1636, %v2018, -inf
      %2024 = vmax.xlane.f32.xlu0 %v2023
      %v2025 = vpop.xlane.xlu0 %2024
      %v2026 = vsel %vm1636, %v2019, -inf
      %2027 = vmax.xlane.f32.xlu0 %v2026
      %v2028 = vpop.xlane.xlu0 %2027
      %v2029 = vsub.f32 %v2017, %v2022
      %v2030 = vsub.f32 %v2018, %v2025
      %v2031 = vsub.f32 %v2019, %v2028
      %v2032 = vmul.f32 %v2029, 1.442695
      %v2033 = vpow.pop %v2032
      %v2034 = vmul.f32 %v2030, 1.442695
      %v2035 = vpow.pop %v2034
      %v2036 = vmul.f32 %v2031, 1.442695
      %v2037 = vpow.pop %v2036
      %v2038 = vsel %vm1636, %v2033, 0.0
      %2039 = vadd.xlane.f32.xlu0 %v2038
      %v2040 = vpop.xlane.xlu0 %2039
      %v2041 = vsel %vm1636, %v2035, 0.0
      %2042 = vadd.xlane.f32.xlu0 %v2041
      %v2043 = vpop.xlane.xlu0 %2042
      %v2044 = vsel %vm1636, %v2037, 0.0
      %2045 = vadd.xlane.f32.xlu0 %v2044
      %v2046 = vpop.xlane.xlu0 %2045
      %v2047 = vrcp.pop %v2040
      %v2048 = vrcp.pop %v2043
      %v2049 = vrcp.pop %v2046
      %v2050 = vmul.f32 %v2033, %v2047
      %v2051 = vmul.f32 %v2035, %v2048
      %v2052 = vmul.f32 %v2037, %v2049
      %v2053 = vpack.c.bf16 %v2051, %v2050
      %v2054 = vpack.c.bf16 %v2052, %v2052
      %2055 = vrot.lane.b32.xlu0 %v1561, 48
      %v2056 = vpop.permute.xlu0 %2055
      %2057 = vrot.lane.b32.xlu0 %v1562, 48
      %v2058 = vpop.permute.xlu0 %2057
      %v2061 = vsel %vm1636, %v2053, 0
      %v2064 = vsel %vm1636, %v2054, 0
      %v2067 = vsel %vm1683, %v2058, 0
      %2069 = vmatprep.subr.bf16.mxu0 0
      %2070 = vmatpush1.bf16.msra.mxu0 0
      %2071 = vmatprep.subr.bf16.mxu0 0
      %2072 = vmatpush1.bf16.msra.mxu0 0
      %2073 = vmatprep.subr.bf16.mxu0 0
      %2074 = vmatpush1.bf16.msra.mxu0 0
      %2075 = vmatprep.subr.bf16.mxu0 0
      %2076 = vmatpush1.bf16.msra.mxu0 0
      %2077 = vmatprep.subr.bf16.mxu0 0
      %2078 = vmatpush1.bf16.msra.mxu0 0
      %2079 = vmatprep.subr.bf16.mxu0 0
      %2080 = vmatpush1.bf16.msra.mxu0 0
      %2081 = vmatprep.subr.bf16.mxu0 0
      %2082 = vmatpush1.bf16.msra.mxu0 %v2067
      %2083 = vmatprep.subr.bf16.mxu0 0
      %2084 = vmatpush1.bf16.msra.mxu0 %v2056
      %2085 = vmatprep.subr.bf16.mxu0 0
      %2086 = vmatpush2.bf16.msra.mxu0 0
      %2087 = vmatprep.subr.bf16.mxu0 0
      %2088 = vmatpush2.bf16.msra.mxu0 0
      %2089 = vmatprep.subr.bf16.mxu0 0
      %2090 = vmatpush2.bf16.msra.mxu0 0
      %2091 = vmatprep.subr.bf16.mxu0 0
      %2092 = vmatpush2.bf16.msra.mxu0 0
      %2093 = vmatprep.subr.bf16.mxu0 0
      %2094 = vmatpush2.bf16.msra.mxu0 0
      %2095 = vmatprep.subr.bf16.mxu0 0
      %2096 = vmatpush2.bf16.msra.mxu0 0
      %2097 = vmatprep.subr.bf16.mxu0 0
      %2098 = vmatpush2.bf16.msra.mxu0 0
      %2099 = vmatprep.subr.bf16.mxu0 0
      %2100 = vmatpush2.bf16.msra.mxu0 0
      %2101 = vmatprep.mubr.bf16.mxu0 0
      %2102 = vmatmul.mubr.bf16.gmra.mxu0 %v2061
      %v2103 = vpop.f32.mrf.mxu0
      %v2104 = vadd.f32 0.0, %v2103
      %v2105 = vpop.f32.mrf.mxu0
      %v2106 = vpop.f32.mrf.mxu0
      %v2107 = vadd.f32 0.0, %v2106
      %v2108 = vpop.f32.mrf.mxu0
      %2109 = vmatprep.mubr.bf16.mxu0 0
      %2110 = vmatmul.mubr.bf16.gmra.mxu0 %v2064
      %v2111 = vpop.f32.mrf.mxu0
      %v2112 = vadd.f32 0.0, %v2111
      %v2113 = vpop.f32.mrf.mxu0
      %v2114 = vpop.f32.mrf.mxu0
      %v2115 = vpop.f32.mrf.mxu0
      %2116 = vdwg.mxu0
      %v2117 = vpack.c.bf16 %v2107, %v2104
      %v2118 = vpack.c.bf16 %v2112, %v2112
      %v2121 = vunpack.c.l.b16 %v2117
      %v2122 = vunpack.c.h.b16 %v2117
      %v2123 = vunpack.c.l.b16 %v2118
      %v2124 = vpack.c.b16 %v2121, %v2121
      %v2125 = vpack.c.b16 %v2122, %v2122
      %v2126 = vpack.c.b16 %v2123, %v2123
      %2127 = vrot.lane.b32.xlu0 %v2124, 16
      %v2128 = vpop.permute.xlu0 %2127
      %2129 = vrot.lane.b32.xlu0 %v2125, 16
      %v2130 = vpop.permute.xlu0 %2129
      %2131 = vrot.lane.b32.xlu0 %v2126, 16
      %v2132 = vpop.permute.xlu0 %2131
      %vm2136 = vcmask 191616
      %2137 = vst.msk [vmem:[#allocation3] sm:$0xf] %vm2136, %v2128
      %2138 = vst.msk [vmem:[#allocation3 + $0x4] sm:$0xf] %vm2136, %v2130
      %2139 = vst.msk [vmem:[#allocation3 + $0x8] sm:$0xf] %vm2136, %v2132
      %2140 = vrot.lane.b32.xlu0 %v1561, 104
      %v2141 = vpop.permute.xlu0 %2140
      %2142 = vrot.lane.b32.xlu0 %v1562, 104
      %v2143 = vpop.permute.xlu0 %2142
      %2144 = vrot.lane.b32.xlu0 %v1561, 72
      %v2145 = vpop.permute.xlu0 %2144
      %2146 = vrot.lane.b32.xlu0 %v1562, 72
      %v2147 = vpop.permute.xlu0 %2146
      %v2149 = vsel %vm1569, %v2141, 0
      %v2152 = vsel %vm1569, %v2143, 0
      %v2155 = vsel %vm1569, %v2145, 0
      %v2158 = vsel %vm1569, %v2147, 0
      %2160 = vmatprep.subr.bf16.mxu0 0
      %2161 = vmatpush1.bf16.xpose.msra.mxu0 0
      %2162 = vmatprep.subr.bf16.mxu0 0
      %2163 = vmatpush1.bf16.xpose.msra.mxu0 0
      %2164 = vmatprep.subr.bf16.mxu0 0
      %2165 = vmatpush1.bf16.xpose.msra.mxu0 0
      %2166 = vmatprep.subr.bf16.mxu0 0
      %2167 = vmatpush1.bf16.xpose.msra.mxu0 0
      %2168 = vmatprep.subr.bf16.mxu0 0
      %2169 = vmatpush1.bf16.xpose.msra.mxu0 0
      %2170 = vmatprep.subr.bf16.mxu0 0
      %2171 = vmatpush1.bf16.xpose.msra.mxu0 0
      %2172 = vmatprep.subr.bf16.mxu0 0
      %2173 = vmatpush1.bf16.xpose.msra.mxu0 %v2158
      %2174 = vmatprep.subr.bf16.mxu0 0
      %2175 = vmatpush1.bf16.xpose.msra.mxu0 %v2155
      %2176 = vmatprep.subr.bf16.mxu0 0
      %2177 = vmatpush2.bf16.xpose.msra.mxu0 0
      %2178 = vmatprep.subr.bf16.mxu0 0
      %2179 = vmatpush2.bf16.xpose.msra.mxu0 0
      %2180 = vmatprep.subr.bf16.mxu0 0
      %2181 = vmatpush2.bf16.xpose.msra.mxu0 0
      %2182 = vmatprep.subr.bf16.mxu0 0
      %2183 = vmatpush2.bf16.xpose.msra.mxu0 0
      %2184 = vmatprep.subr.bf16.mxu0 0
      %2185 = vmatpush2.bf16.xpose.msra.mxu0 0
      %2186 = vmatprep.subr.bf16.mxu0 0
      %2187 = vmatpush2.bf16.xpose.msra.mxu0 0
      %2188 = vmatprep.subr.bf16.mxu0 0
      %2189 = vmatpush2.bf16.xpose.msra.mxu0 0
      %2190 = vmatprep.subr.bf16.mxu0 0
      %2191 = vmatpush2.bf16.xpose.msra.mxu0 0
      %2192 = vmatprep.mubr.bf16.mxu0 0
      %2193 = vmatmul.mubr.bf16.gmra.mxu0 %v2149
      %v2194 = vpop.f32.mrf.mxu0
      %v2195 = vadd.f32 0.0, %v2194
      %v2196 = vpop.f32.mrf.mxu0
      %v2197 = vpop.f32.mrf.mxu0
      %v2198 = vadd.f32 0.0, %v2197
      %v2199 = vpop.f32.mrf.mxu0
      %2200 = vmatprep.mubr.bf16.mxu0 0
      %2201 = vmatmul.mubr.bf16.gmra.mxu0 %v2152
      %v2202 = vpop.f32.mrf.mxu0
      %v2203 = vadd.f32 0.0, %v2202
      %v2204 = vpop.f32.mrf.mxu0
      %v2205 = vpop.f32.mrf.mxu0
      %v2206 = vpop.f32.mrf.mxu0
      %2207 = vdwg.mxu0
      %v2208 = vmul.f32 %v2195, 0.35355338
      %v2209 = vmul.f32 %v2198, 0.35355338
      %v2210 = vmul.f32 %v2203, 0.35355338
      %v2211 = vadd.f32 %v2208, %v1558
      %v2212 = vadd.f32 %v2209, %v1559
      %v2213 = vadd.f32 %v2210, %v1560
      %v2214 = vsel %vm1636, %v2211, -inf
      %2215 = vmax.xlane.f32.xlu0 %v2214
      %v2216 = vpop.xlane.xlu0 %2215
      %v2217 = vsel %vm1636, %v2212, -inf
      %2218 = vmax.xlane.f32.xlu0 %v2217
      %v2219 = vpop.xlane.xlu0 %2218
      %v2220 = vsel %vm1636, %v2213, -inf
      %2221 = vmax.xlane.f32.xlu0 %v2220
      %v2222 = vpop.xlane.xlu0 %2221
      %v2223 = vsub.f32 %v2211, %v2216
      %v2224 = vsub.f32 %v2212, %v2219
      %v2225 = vsub.f32 %v2213, %v2222
      %v2226 = vmul.f32 %v2223, 1.442695
      %v2227 = vpow.pop %v2226
      %v2228 = vmul.f32 %v2224, 1.442695
      %v2229 = vpow.pop %v2228
      %v2230 = vmul.f32 %v2225, 1.442695
      %v2231 = vpow.pop %v2230
      %v2232 = vsel %vm1636, %v2227, 0.0
      %2233 = vadd.xlane.f32.xlu0 %v2232
      %v2234 = vpop.xlane.xlu0 %2233
      %v2235 = vsel %vm1636, %v2229, 0.0
      %2236 = vadd.xlane.f32.xlu0 %v2235
      %v2237 = vpop.xlane.xlu0 %2236
      %v2238 = vsel %vm1636, %v2231, 0.0
      %2239 = vadd.xlane.f32.xlu0 %v2238
      %v2240 = vpop.xlane.xlu0 %2239
      %v2241 = vrcp.pop %v2234
      %v2242 = vrcp.pop %v2237
      %v2243 = vrcp.pop %v2240
      %v2244 = vmul.f32 %v2227, %v2241
      %v2245 = vmul.f32 %v2229, %v2242
      %v2246 = vmul.f32 %v2231, %v2243
      %v2247 = vpack.c.bf16 %v2245, %v2244
      %v2248 = vpack.c.bf16 %v2246, %v2246
      %2249 = vrot.lane.b32.xlu0 %v1561, 40
      %v2250 = vpop.permute.xlu0 %2249
      %2251 = vrot.lane.b32.xlu0 %v1562, 40
      %v2252 = vpop.permute.xlu0 %2251
      %v2255 = vsel %vm1636, %v2247, 0
      %v2258 = vsel %vm1636, %v2248, 0
      %v2261 = vsel %vm1683, %v2252, 0
      %2263 = vmatprep.subr.bf16.mxu0 0
      %2264 = vmatpush1.bf16.msra.mxu0 0
      %2265 = vmatprep.subr.bf16.mxu0 0
      %2266 = vmatpush1.bf16.msra.mxu0 0
      %2267 = vmatprep.subr.bf16.mxu0 0
      %2268 = vmatpush1.bf16.msra.mxu0 0
      %2269 = vmatprep.subr.bf16.mxu0 0
      %2270 = vmatpush1.bf16.msra.mxu0 0
      %2271 = vmatprep.subr.bf16.mxu0 0
      %2272 = vmatpush1.bf16.msra.mxu0 0
      %2273 = vmatprep.subr.bf16.mxu0 0
      %2274 = vmatpush1.bf16.msra.mxu0 0
      %2275 = vmatprep.subr.bf16.mxu0 0
      %2276 = vmatpush1.bf16.msra.mxu0 %v2261
      %2277 = vmatprep.subr.bf16.mxu0 0
      %2278 = vmatpush1.bf16.msra.mxu0 %v2250
      %2279 = vmatprep.subr.bf16.mxu0 0
      %2280 = vmatpush2.bf16.msra.mxu0 0
      %2281 = vmatprep.subr.bf16.mxu0 0
      %2282 = vmatpush2.bf16.msra.mxu0 0
      %2283 = vmatprep.subr.bf16.mxu0 0
      %2284 = vmatpush2.bf16.msra.mxu0 0
      %2285 = vmatprep.subr.bf16.mxu0 0
      %2286 = vmatpush2.bf16.msra.mxu0 0
      %2287 = vmatprep.subr.bf16.mxu0 0
      %2288 = vmatpush2.bf16.msra.mxu0 0
      %2289 = vmatprep.subr.bf16.mxu0 0
      %2290 = vmatpush2.bf16.msra.mxu0 0
      %2291 = vmatprep.subr.bf16.mxu0 0
      %2292 = vmatpush2.bf16.msra.mxu0 0
      %2293 = vmatprep.subr.bf16.mxu0 0
      %2294 = vmatpush2.bf16.msra.mxu0 0
      %2295 = vmatprep.mubr.bf16.mxu0 0
      %2296 = vmatmul.mubr.bf16.gmra.mxu0 %v2255
      %v2297 = vpop.f32.mrf.mxu0
      %v2298 = vadd.f32 0.0, %v2297
      %v2299 = vpop.f32.mrf.mxu0
      %v2300 = vpop.f32.mrf.mxu0
      %v2301 = vadd.f32 0.0, %v2300
      %v2302 = vpop.f32.mrf.mxu0
      %2303 = vmatprep.mubr.bf16.mxu0 0
      %2304 = vmatmul.mubr.bf16.gmra.mxu0 %v2258
      %v2305 = vpop.f32.mrf.mxu0
      %v2306 = vadd.f32 0.0, %v2305
      %v2307 = vpop.f32.mrf.mxu0
      %v2308 = vpop.f32.mrf.mxu0
      %v2309 = vpop.f32.mrf.mxu0
      %2310 = vdwg.mxu0
      %v2311 = vpack.c.bf16 %v2301, %v2298
      %v2312 = vpack.c.bf16 %v2306, %v2306
      %v2315 = vunpack.c.l.b16 %v2311
      %v2316 = vunpack.c.h.b16 %v2311
      %v2317 = vunpack.c.l.b16 %v2312
      %v2318 = vpack.c.b16 %v2315, %v2315
      %v2319 = vpack.c.b16 %v2316, %v2316
      %v2320 = vpack.c.b16 %v2317, %v2317
      %2321 = vrot.lane.b32.xlu0 %v2318, 24
      %v2322 = vpop.permute.xlu0 %2321
      %2323 = vrot.lane.b32.xlu0 %v2319, 24
      %v2324 = vpop.permute.xlu0 %2323
      %2325 = vrot.lane.b32.xlu0 %v2320, 24
      %v2326 = vpop.permute.xlu0 %2325
      %vm2330 = vcmask 257216
      %2331 = vst.msk [vmem:[#allocation3] sm:$0xf] %vm2330, %v2322
      %2332 = vst.msk [vmem:[#allocation3 + $0x4] sm:$0xf] %vm2330, %v2324
      %2333 = vst.msk [vmem:[#allocation3 + $0x8] sm:$0xf] %vm2330, %v2326
      %v2334 = vpack.c.bf16 %v1552, %v1547
      %v2335 = vpack.c.bf16 %v1555, %v1555
      %2338 = vrot.lane.b32.xlu0 %v2334, 96
      %v2339 = vpop.permute.xlu0 %2338
      %2340 = vrot.lane.b32.xlu0 %v2335, 96
      %v2341 = vpop.permute.xlu0 %2340
      %v2343 = vsel %vm1569, %v2334, 0
      %v2346 = vsel %vm1569, %v2335, 0
      %v2349 = vsel %vm1569, %v2339, 0
      %v2352 = vsel %vm1569, %v2341, 0
      %2354 = vmatprep.subr.bf16.mxu0 0
      %2355 = vmatpush1.bf16.xpose.msra.mxu0 0
      %2356 = vmatprep.subr.bf16.mxu0 0
      %2357 = vmatpush1.bf16.xpose.msra.mxu0 0
      %2358 = vmatprep.subr.bf16.mxu0 0
      %2359 = vmatpush1.bf16.xpose.msra.mxu0 0
      %2360 = vmatprep.subr.bf16.mxu0 0
      %2361 = vmatpush1.bf16.xpose.msra.mxu0 0
      %2362 = vmatprep.subr.bf16.mxu0 0
      %2363 = vmatpush1.bf16.xpose.msra.mxu0 0
      %2364 = vmatprep.subr.bf16.mxu0 0
      %2365 = vmatpush1.bf16.xpose.msra.mxu0 0
      %2366 = vmatprep.subr.bf16.mxu0 0
      %2367 = vmatpush1.bf16.xpose.msra.mxu0 %v2352
      %2368 = vmatprep.subr.bf16.mxu0 0
      %2369 = vmatpush1.bf16.xpose.msra.mxu0 %v2349
      %2370 = vmatprep.subr.bf16.mxu0 0
      %2371 = vmatpush2.bf16.xpose.msra.mxu0 0
      %2372 = vmatprep.subr.bf16.mxu0 0
      %2373 = vmatpush2.bf16.xpose.msra.mxu0 0
      %2374 = vmatprep.subr.bf16.mxu0 0
      %2375 = vmatpush2.bf16.xpose.msra.mxu0 0
      %2376 = vmatprep.subr.bf16.mxu0 0
      %2377 = vmatpush2.bf16.xpose.msra.mxu0 0
      %2378 = vmatprep.subr.bf16.mxu0 0
      %2379 = vmatpush2.bf16.xpose.msra.mxu0 0
      %2380 = vmatprep.subr.bf16.mxu0 0
      %2381 = vmatpush2.bf16.xpose.msra.mxu0 0
      %2382 = vmatprep.subr.bf16.mxu0 0
      %2383 = vmatpush2.bf16.xpose.msra.mxu0 0
      %2384 = vmatprep.subr.bf16.mxu0 0
      %2385 = vmatpush2.bf16.xpose.msra.mxu0 0
      %2386 = vmatprep.mubr.bf16.mxu0 0
      %2387 = vmatmul.mubr.bf16.gmra.mxu0 %v2343
      %v2388 = vpop.f32.mrf.mxu0
      %v2389 = vadd.f32 0.0, %v2388
      %v2390 = vpop.f32.mrf.mxu0
      %v2391 = vpop.f32.mrf.mxu0
      %v2392 = vadd.f32 0.0, %v2391
      %v2393 = vpop.f32.mrf.mxu0
      %2394 = vmatprep.mubr.bf16.mxu0 0
      %2395 = vmatmul.mubr.bf16.gmra.mxu0 %v2346
      %v2396 = vpop.f32.mrf.mxu0
      %v2397 = vadd.f32 0.0, %v2396
      %v2398 = vpop.f32.mrf.mxu0
      %v2399 = vpop.f32.mrf.mxu0
      %v2400 = vpop.f32.mrf.mxu0
      %2401 = vdwg.mxu0
      %v2402 = vmul.f32 %v2389, 0.35355338
      %v2403 = vmul.f32 %v2392, 0.35355338
      %v2404 = vmul.f32 %v2397, 0.35355338
      %v2405 = vadd.f32 %v2402, %v1558
      %v2406 = vadd.f32 %v2403, %v1559
      %v2407 = vadd.f32 %v2404, %v1560
      %v2408 = vsel %vm1636, %v2405, -inf
      %2409 = vmax.xlane.f32.xlu0 %v2408
      %v2410 = vpop.xlane.xlu0 %2409
      %v2411 = vsel %vm1636, %v2406, -inf
      %2412 = vmax.xlane.f32.xlu0 %v2411
      %v2413 = vpop.xlane.xlu0 %2412
      %v2414 = vsel %vm1636, %v2407, -inf
      %2415 = vmax.xlane.f32.xlu0 %v2414
      %v2416 = vpop.xlane.xlu0 %2415
      %v2417 = vsub.f32 %v2405, %v2410
      %v2418 = vsub.f32 %v2406, %v2413
      %v2419 = vsub.f32 %v2407, %v2416
      %v2420 = vmul.f32 %v2417, 1.442695
      %v2421 = vpow.pop %v2420
      %v2422 = vmul.f32 %v2418, 1.442695
      %v2423 = vpow.pop %v2422
      %v2424 = vmul.f32 %v2419, 1.442695
      %v2425 = vpow.pop %v2424
      %v2426 = vsel %vm1636, %v2421, 0.0
      %2427 = vadd.xlane.f32.xlu0 %v2426
      %v2428 = vpop.xlane.xlu0 %2427
      %v2429 = vsel %vm1636, %v2423, 0.0
      %2430 = vadd.xlane.f32.xlu0 %v2429
      %v2431 = vpop.xlane.xlu0 %2430
      %v2432 = vsel %vm1636, %v2425, 0.0
      %2433 = vadd.xlane.f32.xlu0 %v2432
      %v2434 = vpop.xlane.xlu0 %2433
      %v2435 = vrcp.pop %v2428
      %v2436 = vrcp.pop %v2431
      %v2437 = vrcp.pop %v2434
      %v2438 = vmul.f32 %v2421, %v2435
      %v2439 = vmul.f32 %v2423, %v2436
      %v2440 = vmul.f32 %v2425, %v2437
      %v2441 = vpack.c.bf16 %v2439, %v2438
      %v2442 = vpack.c.bf16 %v2440, %v2440
      %2443 = vrot.lane.b32.xlu0 %v2334, 64
      %v2444 = vpop.permute.xlu0 %2443
      %2445 = vrot.lane.b32.xlu0 %v2335, 64
      %v2446 = vpop.permute.xlu0 %2445
      %v2449 = vsel %vm1636, %v2441, 0
      %v2452 = vsel %vm1636, %v2442, 0
      %v2455 = vsel %vm1683, %v2446, 0
      %2457 = vmatprep.subr.bf16.mxu0 0
      %2458 = vmatpush1.bf16.msra.mxu0 0
      %2459 = vmatprep.subr.bf16.mxu0 0
      %2460 = vmatpush1.bf16.msra.mxu0 0
      %2461 = vmatprep.subr.bf16.mxu0 0
      %2462 = vmatpush1.bf16.msra.mxu0 0
      %2463 = vmatprep.subr.bf16.mxu0 0
      %2464 = vmatpush1.bf16.msra.mxu0 0
      %2465 = vmatprep.subr.bf16.mxu0 0
      %2466 = vmatpush1.bf16.msra.mxu0 0
      %2467 = vmatprep.subr.bf16.mxu0 0
      %2468 = vmatpush1.bf16.msra.mxu0 0
      %2469 = vmatprep.subr.bf16.mxu0 0
      %2470 = vmatpush1.bf16.msra.mxu0 %v2455
      %2471 = vmatprep.subr.bf16.mxu0 0
      %2472 = vmatpush1.bf16.msra.mxu0 %v2444
      %2473 = vmatprep.subr.bf16.mxu0 0
      %2474 = vmatpush2.bf16.msra.mxu0 0
      %2475 = vmatprep.subr.bf16.mxu0 0
      %2476 = vmatpush2.bf16.msra.mxu0 0
      %2477 = vmatprep.subr.bf16.mxu0 0
      %2478 = vmatpush2.bf16.msra.mxu0 0
      %2479 = vmatprep.subr.bf16.mxu0 0
      %2480 = vmatpush2.bf16.msra.mxu0 0
      %2481 = vmatprep.subr.bf16.mxu0 0
      %2482 = vmatpush2.bf16.msra.mxu0 0
      %2483 = vmatprep.subr.bf16.mxu0 0
      %2484 = vmatpush2.bf16.msra.mxu0 0
      %2485 = vmatprep.subr.bf16.mxu0 0
      %2486 = vmatpush2.bf16.msra.mxu0 0
      %2487 = vmatprep.subr.bf16.mxu0 0
      %2488 = vmatpush2.bf16.msra.mxu0 0
      %2489 = vmatprep.mubr.bf16.mxu0 0
      %2490 = vmatmul.mubr.bf16.gmra.mxu0 %v2449
      %v2491 = vpop.f32.mrf.mxu0
      %v2492 = vadd.f32 0.0, %v2491
      %v2493 = vpop.f32.mrf.mxu0
      %v2494 = vpop.f32.mrf.mxu0
      %v2495 = vadd.f32 0.0, %v2494
      %v2496 = vpop.f32.mrf.mxu0
      %2497 = vmatprep.mubr.bf16.mxu0 0
      %2498 = vmatmul.mubr.bf16.gmra.mxu0 %v2452
      %v2499 = vpop.f32.mrf.mxu0
      %v2500 = vadd.f32 0.0, %v2499
      %v2501 = vpop.f32.mrf.mxu0
      %v2502 = vpop.f32.mrf.mxu0
      %v2503 = vpop.f32.mrf.mxu0
      %2504 = vdwg.mxu0
      %v2505 = vpack.c.bf16 %v2495, %v2492
      %v2506 = vpack.c.bf16 %v2500, %v2500
      %v2509 = vunpack.c.l.b16 %v2505
      %v2510 = vunpack.c.h.b16 %v2505
      %v2511 = vunpack.c.l.b16 %v2506
      %v2512 = vpack.c.b16 %v2509, %v2509
      %v2513 = vpack.c.b16 %v2510, %v2510
      %v2514 = vpack.c.b16 %v2511, %v2511
      %2518 = vst.msk [vmem:[#allocation3 + $0xc] sm:$0xf] %vm1748, %v2512
      %2519 = vst.msk [vmem:[#allocation3 + $0x10] sm:$0xf] %vm1748, %v2513
      %2520 = vst.msk [vmem:[#allocation3 + $0x14] sm:$0xf] %vm1748, %v2514
      %2521 = vrot.lane.b32.xlu0 %v2334, 120
      %v2522 = vpop.permute.xlu0 %2521
      %2523 = vrot.lane.b32.xlu0 %v2335, 120
      %v2524 = vpop.permute.xlu0 %2523
      %2525 = vrot.lane.b32.xlu0 %v2334, 88
      %v2526 = vpop.permute.xlu0 %2525
      %2527 = vrot.lane.b32.xlu0 %v2335, 88
      %v2528 = vpop.permute.xlu0 %2527
      %v2530 = vsel %vm1569, %v2522, 0
      %v2533 = vsel %vm1569, %v2524, 0
      %v2536 = vsel %vm1569, %v2526, 0
      %v2539 = vsel %vm1569, %v2528, 0
      %2541 = vmatprep.subr.bf16.mxu0 0
      %2542 = vmatpush1.bf16.xpose.msra.mxu0 0
      %2543 = vmatprep.subr.bf16.mxu0 0
      %2544 = vmatpush1.bf16.xpose.msra.mxu0 0
      %2545 = vmatprep.subr.bf16.mxu0 0
      %2546 = vmatpush1.bf16.xpose.msra.mxu0 0
      %2547 = vmatprep.subr.bf16.mxu0 0
      %2548 = vmatpush1.bf16.xpose.msra.mxu0 0
      %2549 = vmatprep.subr.bf16.mxu0 0
      %2550 = vmatpush1.bf16.xpose.msra.mxu0 0
      %2551 = vmatprep.subr.bf16.mxu0 0
      %2552 = vmatpush1.bf16.xpose.msra.mxu0 0
      %2553 = vmatprep.subr.bf16.mxu0 0
      %2554 = vmatpush1.bf16.xpose.msra.mxu0 %v2539
      %2555 = vmatprep.subr.bf16.mxu0 0
      %2556 = vmatpush1.bf16.xpose.msra.mxu0 %v2536
      %2557 = vmatprep.subr.bf16.mxu0 0
      %2558 = vmatpush2.bf16.xpose.msra.mxu0 0
      %2559 = vmatprep.subr.bf16.mxu0 0
      %2560 = vmatpush2.bf16.xpose.msra.mxu0 0
      %2561 = vmatprep.subr.bf16.mxu0 0
      %2562 = vmatpush2.bf16.xpose.msra.mxu0 0
      %2563 = vmatprep.subr.bf16.mxu0 0
      %2564 = vmatpush2.bf16.xpose.msra.mxu0 0
      %2565 = vmatprep.subr.bf16.mxu0 0
      %2566 = vmatpush2.bf16.xpose.msra.mxu0 0
      %2567 = vmatprep.subr.bf16.mxu0 0
      %2568 = vmatpush2.bf16.xpose.msra.mxu0 0
      %2569 = vmatprep.subr.bf16.mxu0 0
      %2570 = vmatpush2.bf16.xpose.msra.mxu0 0
      %2571 = vmatprep.subr.bf16.mxu0 0
      %2572 = vmatpush2.bf16.xpose.msra.mxu0 0
      %2573 = vmatprep.mubr.bf16.mxu0 0
      %2574 = vmatmul.mubr.bf16.gmra.mxu0 %v2530
      %v2575 = vpop.f32.mrf.mxu0
      %v2576 = vadd.f32 0.0, %v2575
      %v2577 = vpop.f32.mrf.mxu0
      %v2578 = vpop.f32.mrf.mxu0
      %v2579 = vadd.f32 0.0, %v2578
      %v2580 = vpop.f32.mrf.mxu0
      %2581 = vmatprep.mubr.bf16.mxu0 0
      %2582 = vmatmul.mubr.bf16.gmra.mxu0 %v2533
      %v2583 = vpop.f32.mrf.mxu0
      %v2584 = vadd.f32 0.0, %v2583
      %v2585 = vpop.f32.mrf.mxu0
      %v2586 = vpop.f32.mrf.mxu0
      %v2587 = vpop.f32.mrf.mxu0
      %2588 = vdwg.mxu0
      %v2589 = vmul.f32 %v2576, 0.35355338
      %v2590 = vmul.f32 %v2579, 0.35355338
      %v2591 = vmul.f32 %v2584, 0.35355338
      %v2592 = vadd.f32 %v2589, %v1558
      %v2593 = vadd.f32 %v2590, %v1559
      %v2594 = vadd.f32 %v2591, %v1560
      %v2595 = vsel %vm1636, %v2592, -inf
      %2596 = vmax.xlane.f32.xlu0 %v2595
      %v2597 = vpop.xlane.xlu0 %2596
      %v2598 = vsel %vm1636, %v2593, -inf
      %2599 = vmax.xlane.f32.xlu0 %v2598
      %v2600 = vpop.xlane.xlu0 %2599
      %v2601 = vsel %vm1636, %v2594, -inf
      %2602 = vmax.xlane.f32.xlu0 %v2601
      %v2603 = vpop.xlane.xlu0 %2602
      %v2604 = vsub.f32 %v2592, %v2597
      %v2605 = vsub.f32 %v2593, %v2600
      %v2606 = vsub.f32 %v2594, %v2603
      %v2607 = vmul.f32 %v2604, 1.442695
      %v2608 = vpow.pop %v2607
      %v2609 = vmul.f32 %v2605, 1.442695
      %v2610 = vpow.pop %v2609
      %v2611 = vmul.f32 %v2606, 1.442695
      %v2612 = vpow.pop %v2611
      %v2613 = vsel %vm1636, %v2608, 0.0
      %2614 = vadd.xlane.f32.xlu0 %v2613
      %v2615 = vpop.xlane.xlu0 %2614
      %v2616 = vsel %vm1636, %v2610, 0.0
      %2617 = vadd.xlane.f32.xlu0 %v2616
      %v2618 = vpop.xlane.xlu0 %2617
      %v2619 = vsel %vm1636, %v2612, 0.0
      %2620 = vadd.xlane.f32.xlu0 %v2619
      %v2621 = vpop.xlane.xlu0 %2620
      %v2622 = vrcp.pop %v2615
      %v2623 = vrcp.pop %v2618
      %v2624 = vrcp.pop %v2621
      %v2625 = vmul.f32 %v2608, %v2622
      %v2626 = vmul.f32 %v2610, %v2623
      %v2627 = vmul.f32 %v2612, %v2624
      %v2628 = vpack.c.bf16 %v2626, %v2625
      %v2629 = vpack.c.bf16 %v2627, %v2627
      %2630 = vrot.lane.b32.xlu0 %v2334, 56
      %v2631 = vpop.permute.xlu0 %2630
      %2632 = vrot.lane.b32.xlu0 %v2335, 56
      %v2633 = vpop.permute.xlu0 %2632
      %v2636 = vsel %vm1636, %v2628, 0
      %v2639 = vsel %vm1636, %v2629, 0
      %v2642 = vsel %vm1683, %v2633, 0
      %2644 = vmatprep.subr.bf16.mxu0 0
      %2645 = vmatpush1.bf16.msra.mxu0 0
      %2646 = vmatprep.subr.bf16.mxu0 0
      %2647 = vmatpush1.bf16.msra.mxu0 0
      %2648 = vmatprep.subr.bf16.mxu0 0
      %2649 = vmatpush1.bf16.msra.mxu0 0
      %2650 = vmatprep.subr.bf16.mxu0 0
      %2651 = vmatpush1.bf16.msra.mxu0 0
      %2652 = vmatprep.subr.bf16.mxu0 0
      %2653 = vmatpush1.bf16.msra.mxu0 0
      %2654 = vmatprep.subr.bf16.mxu0 0
      %2655 = vmatpush1.bf16.msra.mxu0 0
      %2656 = vmatprep.subr.bf16.mxu0 0
      %2657 = vmatpush1.bf16.msra.mxu0 %v2642
      %2658 = vmatprep.subr.bf16.mxu0 0
      %2659 = vmatpush1.bf16.msra.mxu0 %v2631
      %2660 = vmatprep.subr.bf16.mxu0 0
      %2661 = vmatpush2.bf16.msra.mxu0 0
      %2662 = vmatprep.subr.bf16.mxu0 0
      %2663 = vmatpush2.bf16.msra.mxu0 0
      %2664 = vmatprep.subr.bf16.mxu0 0
      %2665 = vmatpush2.bf16.msra.mxu0 0
      %2666 = vmatprep.subr.bf16.mxu0 0
      %2667 = vmatpush2.bf16.msra.mxu0 0
      %2668 = vmatprep.subr.bf16.mxu0 0
      %2669 = vmatpush2.bf16.msra.mxu0 0
      %2670 = vmatprep.subr.bf16.mxu0 0
      %2671 = vmatpush2.bf16.msra.mxu0 0
      %2672 = vmatprep.subr.bf16.mxu0 0
      %2673 = vmatpush2.bf16.msra.mxu0 0
      %2674 = vmatprep.subr.bf16.mxu0 0
      %2675 = vmatpush2.bf16.msra.mxu0 0
      %2676 = vmatprep.mubr.bf16.mxu0 0
      %2677 = vmatmul.mubr.bf16.gmra.mxu0 %v2636
      %v2678 = vpop.f32.mrf.mxu0
      %v2679 = vadd.f32 0.0, %v2678
      %v2680 = vpop.f32.mrf.mxu0
      %v2681 = vpop.f32.mrf.mxu0
      %v2682 = vadd.f32 0.0, %v2681
      %v2683 = vpop.f32.mrf.mxu0
      %2684 = vmatprep.mubr.bf16.mxu0 0
      %2685 = vmatmul.mubr.bf16.gmra.mxu0 %v2639
      %v2686 = vpop.f32.mrf.mxu0
      %v2687 = vadd.f32 0.0, %v2686
      %v2688 = vpop.f32.mrf.mxu0
      %v2689 = vpop.f32.mrf.mxu0
      %v2690 = vpop.f32.mrf.mxu0
      %2691 = vdwg.mxu0
      %v2692 = vpack.c.bf16 %v2682, %v2679
      %v2693 = vpack.c.bf16 %v2687, %v2687
      %v2696 = vunpack.c.l.b16 %v2692
      %v2697 = vunpack.c.h.b16 %v2692
      %v2698 = vunpack.c.l.b16 %v2693
      %v2699 = vpack.c.b16 %v2696, %v2696
      %v2700 = vpack.c.b16 %v2697, %v2697
      %v2701 = vpack.c.b16 %v2698, %v2698
      %2702 = vrot.lane.b32.xlu0 %v2699, 8
      %v2703 = vpop.permute.xlu0 %2702
      %2704 = vrot.lane.b32.xlu0 %v2700, 8
      %v2705 = vpop.permute.xlu0 %2704
      %2706 = vrot.lane.b32.xlu0 %v2701, 8
      %v2707 = vpop.permute.xlu0 %2706
      %2711 = vst.msk [vmem:[#allocation3 + $0xc] sm:$0xf] %vm1942, %v2703
      %2712 = vst.msk [vmem:[#allocation3 + $0x10] sm:$0xf] %vm1942, %v2705
      %2713 = vst.msk [vmem:[#allocation3 + $0x14] sm:$0xf] %vm1942, %v2707
      %2714 = vrot.lane.b32.xlu0 %v2334, 112
      %v2715 = vpop.permute.xlu0 %2714
      %2716 = vrot.lane.b32.xlu0 %v2335, 112
      %v2717 = vpop.permute.xlu0 %2716
      %2718 = vrot.lane.b32.xlu0 %v2334, 80
      %v2719 = vpop.permute.xlu0 %2718
      %2720 = vrot.lane.b32.xlu0 %v2335, 80
      %v2721 = vpop.permute.xlu0 %2720
      %v2723 = vsel %vm1569, %v2715, 0
      %v2726 = vsel %vm1569, %v2717, 0
      %v2729 = vsel %vm1569, %v2719, 0
      %v2732 = vsel %vm1569, %v2721, 0
      %2734 = vmatprep.subr.bf16.mxu0 0
      %2735 = vmatpush1.bf16.xpose.msra.mxu0 0
      %2736 = vmatprep.subr.bf16.mxu0 0
      %2737 = vmatpush1.bf16.xpose.msra.mxu0 0
      %2738 = vmatprep.subr.bf16.mxu0 0
      %2739 = vmatpush1.bf16.xpose.msra.mxu0 0
      %2740 = vmatprep.subr.bf16.mxu0 0
      %2741 = vmatpush1.bf16.xpose.msra.mxu0 0
      %2742 = vmatprep.subr.bf16.mxu0 0
      %2743 = vmatpush1.bf16.xpose.msra.mxu0 0
      %2744 = vmatprep.subr.bf16.mxu0 0
      %2745 = vmatpush1.bf16.xpose.msra.mxu0 0
      %2746 = vmatprep.subr.bf16.mxu0 0
      %2747 = vmatpush1.bf16.xpose.msra.mxu0 %v2732
      %2748 = vmatprep.subr.bf16.mxu0 0
      %2749 = vmatpush1.bf16.xpose.msra.mxu0 %v2729
      %2750 = vmatprep.subr.bf16.mxu0 0
      %2751 = vmatpush2.bf16.xpose.msra.mxu0 0
      %2752 = vmatprep.subr.bf16.mxu0 0
      %2753 = vmatpush2.bf16.xpose.msra.mxu0 0
      %2754 = vmatprep.subr.bf16.mxu0 0
      %2755 = vmatpush2.bf16.xpose.msra.mxu0 0
      %2756 = vmatprep.subr.bf16.mxu0 0
      %2757 = vmatpush2.bf16.xpose.msra.mxu0 0
      %2758 = vmatprep.subr.bf16.mxu0 0
      %2759 = vmatpush2.bf16.xpose.msra.mxu0 0
      %2760 = vmatprep.subr.bf16.mxu0 0
      %2761 = vmatpush2.bf16.xpose.msra.mxu0 0
      %2762 = vmatprep.subr.bf16.mxu0 0
      %2763 = vmatpush2.bf16.xpose.msra.mxu0 0
      %2764 = vmatprep.subr.bf16.mxu0 0
      %2765 = vmatpush2.bf16.xpose.msra.mxu0 0
      %2766 = vmatprep.mubr.bf16.mxu0 0
      %2767 = vmatmul.mubr.bf16.gmra.mxu0 %v2723
      %v2768 = vpop.f32.mrf.mxu0
      %v2769 = vadd.f32 0.0, %v2768
      %v2770 = vpop.f32.mrf.mxu0
      %v2771 = vpop.f32.mrf.mxu0
      %v2772 = vadd.f32 0.0, %v2771
      %v2773 = vpop.f32.mrf.mxu0
      %2774 = vmatprep.mubr.bf16.mxu0 0
      %2775 = vmatmul.mubr.bf16.gmra.mxu0 %v2726
      %v2776 = vpop.f32.mrf.mxu0
      %v2777 = vadd.f32 0.0, %v2776
      %v2778 = vpop.f32.mrf.mxu0
      %v2779 = vpop.f32.mrf.mxu0
      %v2780 = vpop.f32.mrf.mxu0
      %2781 = vdwg.mxu0
      %v2782 = vmul.f32 %v2769, 0.35355338
      %v2783 = vmul.f32 %v2772, 0.35355338
      %v2784 = vmul.f32 %v2777, 0.35355338
      %v2785 = vadd.f32 %v2782, %v1558
      %v2786 = vadd.f32 %v2783, %v1559
      %v2787 = vadd.f32 %v2784, %v1560
      %v2788 = vsel %vm1636, %v2785, -inf
      %2789 = vmax.xlane.f32.xlu0 %v2788
      %v2790 = vpop.xlane.xlu0 %2789
      %v2791 = vsel %vm1636, %v2786, -inf
      %2792 = vmax.xlane.f32.xlu0 %v2791
      %v2793 = vpop.xlane.xlu0 %2792
      %v2794 = vsel %vm1636, %v2787, -inf
      %2795 = vmax.xlane.f32.xlu0 %v2794
      %v2796 = vpop.xlane.xlu0 %2795
      %v2797 = vsub.f32 %v2785, %v2790
      %v2798 = vsub.f32 %v2786, %v2793
      %v2799 = vsub.f32 %v2787, %v2796
      %v2800 = vmul.f32 %v2797, 1.442695
      %v2801 = vpow.pop %v2800
      %v2802 = vmul.f32 %v2798, 1.442695
      %v2803 = vpow.pop %v2802
      %v2804 = vmul.f32 %v2799, 1.442695
      %v2805 = vpow.pop %v2804
      %v2806 = vsel %vm1636, %v2801, 0.0
      %2807 = vadd.xlane.f32.xlu0 %v2806
      %v2808 = vpop.xlane.xlu0 %2807
      %v2809 = vsel %vm1636, %v2803, 0.0
      %2810 = vadd.xlane.f32.xlu0 %v2809
      %v2811 = vpop.xlane.xlu0 %2810
      %v2812 = vsel %vm1636, %v2805, 0.0
      %2813 = vadd.xlane.f32.xlu0 %v2812
      %v2814 = vpop.xlane.xlu0 %2813
      %v2815 = vrcp.pop %v2808
      %v2816 = vrcp.pop %v2811
      %v2817 = vrcp.pop %v2814
      %v2818 = vmul.f32 %v2801, %v2815
      %v2819 = vmul.f32 %v2803, %v2816
      %v2820 = vmul.f32 %v2805, %v2817
      %v2821 = vpack.c.bf16 %v2819, %v2818
      %v2822 = vpack.c.bf16 %v2820, %v2820
      %2823 = vrot.lane.b32.xlu0 %v2334, 48
      %v2824 = vpop.permute.xlu0 %2823
      %2825 = vrot.lane.b32.xlu0 %v2335, 48
      %v2826 = vpop.permute.xlu0 %2825
      %v2829 = vsel %vm1636, %v2821, 0
      %v2832 = vsel %vm1636, %v2822, 0
      %v2835 = vsel %vm1683, %v2826, 0
      %2837 = vmatprep.subr.bf16.mxu0 0
      %2838 = vmatpush1.bf16.msra.mxu0 0
      %2839 = vmatprep.subr.bf16.mxu0 0
      %2840 = vmatpush1.bf16.msra.mxu0 0
      %2841 = vmatprep.subr.bf16.mxu0 0
      %2842 = vmatpush1.bf16.msra.mxu0 0
      %2843 = vmatprep.subr.bf16.mxu0 0
      %2844 = vmatpush1.bf16.msra.mxu0 0
      %2845 = vmatprep.subr.bf16.mxu0 0
      %2846 = vmatpush1.bf16.msra.mxu0 0
      %2847 = vmatprep.subr.bf16.mxu0 0
      %2848 = vmatpush1.bf16.msra.mxu0 0
      %2849 = vmatprep.subr.bf16.mxu0 0
      %2850 = vmatpush1.bf16.msra.mxu0 %v2835
      %2851 = vmatprep.subr.bf16.mxu0 0
      %2852 = vmatpush1.bf16.msra.mxu0 %v2824
      %2853 = vmatprep.subr.bf16.mxu0 0
      %2854 = vmatpush2.bf16.msra.mxu0 0
      %2855 = vmatprep.subr.bf16.mxu0 0
      %2856 = vmatpush2.bf16.msra.mxu0 0
      %2857 = vmatprep.subr.bf16.mxu0 0
      %2858 = vmatpush2.bf16.msra.mxu0 0
      %2859 = vmatprep.subr.bf16.mxu0 0
      %2860 = vmatpush2.bf16.msra.mxu0 0
      %2861 = vmatprep.subr.bf16.mxu0 0
      %2862 = vmatpush2.bf16.msra.mxu0 0
      %2863 = vmatprep.subr.bf16.mxu0 0
      %2864 = vmatpush2.bf16.msra.mxu0 0
      %2865 = vmatprep.subr.bf16.mxu0 0
      %2866 = vmatpush2.bf16.msra.mxu0 0
      %2867 = vmatprep.subr.bf16.mxu0 0
      %2868 = vmatpush2.bf16.msra.mxu0 0
      %2869 = vmatprep.mubr.bf16.mxu0 0
      %2870 = vmatmul.mubr.bf16.gmra.mxu0 %v2829
      %v2871 = vpop.f32.mrf.mxu0
      %v2872 = vadd.f32 0.0, %v2871
      %v2873 = vpop.f32.mrf.mxu0
      %v2874 = vpop.f32.mrf.mxu0
      %v2875 = vadd.f32 0.0, %v2874
      %v2876 = vpop.f32.mrf.mxu0
      %2877 = vmatprep.mubr.bf16.mxu0 0
      %2878 = vmatmul.mubr.bf16.gmra.mxu0 %v2832
      %v2879 = vpop.f32.mrf.mxu0
      %v2880 = vadd.f32 0.0, %v2879
      %v2881 = vpop.f32.mrf.mxu0
      %v2882 = vpop.f32.mrf.mxu0
      %v2883 = vpop.f32.mrf.mxu0
      %2884 = vdwg.mxu0
      %v2885 = vpack.c.bf16 %v2875, %v2872
      %v2886 = vpack.c.bf16 %v2880, %v2880
      %v2889 = vunpack.c.l.b16 %v2885
      %v2890 = vunpack.c.h.b16 %v2885
      %v2891 = vunpack.c.l.b16 %v2886
      %v2892 = vpack.c.b16 %v2889, %v2889
      %v2893 = vpack.c.b16 %v2890, %v2890
      %v2894 = vpack.c.b16 %v2891, %v2891
      %2895 = vrot.lane.b32.xlu0 %v2892, 16
      %v2896 = vpop.permute.xlu0 %2895
      %2897 = vrot.lane.b32.xlu0 %v2893, 16
      %v2898 = vpop.permute.xlu0 %2897
      %2899 = vrot.lane.b32.xlu0 %v2894, 16
      %v2900 = vpop.permute.xlu0 %2899
      %2904 = vst.msk [vmem:[#allocation3 + $0xc] sm:$0xf] %vm2136, %v2896
      %2905 = vst.msk [vmem:[#allocation3 + $0x10] sm:$0xf] %vm2136, %v2898
      %2906 = vst.msk [vmem:[#allocation3 + $0x14] sm:$0xf] %vm2136, %v2900
      %2907 = vrot.lane.b32.xlu0 %v2334, 104
      %v2908 = vpop.permute.xlu0 %2907
      %2909 = vrot.lane.b32.xlu0 %v2335, 104
      %v2910 = vpop.permute.xlu0 %2909
      %2911 = vrot.lane.b32.xlu0 %v2334, 72
      %v2912 = vpop.permute.xlu0 %2911
      %2913 = vrot.lane.b32.xlu0 %v2335, 72
      %v2914 = vpop.permute.xlu0 %2913
      %v2916 = vsel %vm1569, %v2908, 0
      %v2919 = vsel %vm1569, %v2910, 0
      %v2922 = vsel %vm1569, %v2912, 0
      %v2925 = vsel %vm1569, %v2914, 0
      %2927 = vmatprep.subr.bf16.mxu0 0
      %2928 = vmatpush1.bf16.xpose.msra.mxu0 0
      %2929 = vmatprep.subr.bf16.mxu0 0
      %2930 = vmatpush1.bf16.xpose.msra.mxu0 0
      %2931 = vmatprep.subr.bf16.mxu0 0
      %2932 = vmatpush1.bf16.xpose.msra.mxu0 0
      %2933 = vmatprep.subr.bf16.mxu0 0
      %2934 = vmatpush1.bf16.xpose.msra.mxu0 0
      %2935 = vmatprep.subr.bf16.mxu0 0
      %2936 = vmatpush1.bf16.xpose.msra.mxu0 0
      %2937 = vmatprep.subr.bf16.mxu0 0
      %2938 = vmatpush1.bf16.xpose.msra.mxu0 0
      %2939 = vmatprep.subr.bf16.mxu0 0
      %2940 = vmatpush1.bf16.xpose.msra.mxu0 %v2925
      %2941 = vmatprep.subr.bf16.mxu0 0
      %2942 = vmatpush1.bf16.xpose.msra.mxu0 %v2922
      %2943 = vmatprep.subr.bf16.mxu0 0
      %2944 = vmatpush2.bf16.xpose.msra.mxu0 0
      %2945 = vmatprep.subr.bf16.mxu0 0
      %2946 = vmatpush2.bf16.xpose.msra.mxu0 0
      %2947 = vmatprep.subr.bf16.mxu0 0
      %2948 = vmatpush2.bf16.xpose.msra.mxu0 0
      %2949 = vmatprep.subr.bf16.mxu0 0
      %2950 = vmatpush2.bf16.xpose.msra.mxu0 0
      %2951 = vmatprep.subr.bf16.mxu0 0
      %2952 = vmatpush2.bf16.xpose.msra.mxu0 0
      %2953 = vmatprep.subr.bf16.mxu0 0
      %2954 = vmatpush2.bf16.xpose.msra.mxu0 0
      %2955 = vmatprep.subr.bf16.mxu0 0
      %2956 = vmatpush2.bf16.xpose.msra.mxu0 0
      %2957 = vmatprep.subr.bf16.mxu0 0
      %2958 = vmatpush2.bf16.xpose.msra.mxu0 0
      %2959 = vmatprep.mubr.bf16.mxu0 0
      %2960 = vmatmul.mubr.bf16.gmra.mxu0 %v2916
      %v2961 = vpop.f32.mrf.mxu0
      %v2962 = vadd.f32 0.0, %v2961
      %v2963 = vpop.f32.mrf.mxu0
      %v2964 = vpop.f32.mrf.mxu0
      %v2965 = vadd.f32 0.0, %v2964
      %v2966 = vpop.f32.mrf.mxu0
      %2967 = vmatprep.mubr.bf16.mxu0 0
      %2968 = vmatmul.mubr.bf16.gmra.mxu0 %v2919
      %v2969 = vpop.f32.mrf.mxu0
      %v2970 = vadd.f32 0.0, %v2969
      %v2971 = vpop.f32.mrf.mxu0
      %v2972 = vpop.f32.mrf.mxu0
      %v2973 = vpop.f32.mrf.mxu0
      %2974 = vdwg.mxu0
      %v2975 = vmul.f32 %v2962, 0.35355338
      %v2976 = vmul.f32 %v2965, 0.35355338
      %v2977 = vmul.f32 %v2970, 0.35355338
      %v2978 = vadd.f32 %v2975, %v1558
      %v2979 = vadd.f32 %v2976, %v1559
      %v2980 = vadd.f32 %v2977, %v1560
      %v2981 = vsel %vm1636, %v2978, -inf
      %2982 = vmax.xlane.f32.xlu0 %v2981
      %v2983 = vpop.xlane.xlu0 %2982
      %v2984 = vsel %vm1636, %v2979, -inf
      %2985 = vmax.xlane.f32.xlu0 %v2984
      %v2986 = vpop.xlane.xlu0 %2985
      %v2987 = vsel %vm1636, %v2980, -inf
      %2988 = vmax.xlane.f32.xlu0 %v2987
      %v2989 = vpop.xlane.xlu0 %2988
      %v2990 = vsub.f32 %v2978, %v2983
      %v2991 = vsub.f32 %v2979, %v2986
      %v2992 = vsub.f32 %v2980, %v2989
      %v2993 = vmul.f32 %v2990, 1.442695
      %v2994 = vpow.pop %v2993
      %v2995 = vmul.f32 %v2991, 1.442695
      %v2996 = vpow.pop %v2995
      %v2997 = vmul.f32 %v2992, 1.442695
      %v2998 = vpow.pop %v2997
      %v2999 = vsel %vm1636, %v2994, 0.0
      %3000 = vadd.xlane.f32.xlu0 %v2999
      %v3001 = vpop.xlane.xlu0 %3000
      %v3002 = vsel %vm1636, %v2996, 0.0
      %3003 = vadd.xlane.f32.xlu0 %v3002
      %v3004 = vpop.xlane.xlu0 %3003
      %v3005 = vsel %vm1636, %v2998, 0.0
      %3006 = vadd.xlane.f32.xlu0 %v3005
      %v3007 = vpop.xlane.xlu0 %3006
      %v3008 = vrcp.pop %v3001
      %v3009 = vrcp.pop %v3004
      %v3010 = vrcp.pop %v3007
      %v3011 = vmul.f32 %v2994, %v3008
      %v3012 = vmul.f32 %v2996, %v3009
      %v3013 = vmul.f32 %v2998, %v3010
      %v3014 = vpack.c.bf16 %v3012, %v3011
      %v3015 = vpack.c.bf16 %v3013, %v3013
      %3016 = vrot.lane.b32.xlu0 %v2334, 40
      %v3017 = vpop.permute.xlu0 %3016
      %3018 = vrot.lane.b32.xlu0 %v2335, 40
      %v3019 = vpop.permute.xlu0 %3018
      %v3022 = vsel %vm1636, %v3014, 0
      %v3025 = vsel %vm1636, %v3015, 0
      %v3028 = vsel %vm1683, %v3019, 0
      %3030 = vmatprep.subr.bf16.mxu0 0
      %3031 = vmatpush1.bf16.msra.mxu0 0
      %3032 = vmatprep.subr.bf16.mxu0 0
      %3033 = vmatpush1.bf16.msra.mxu0 0
      %3034 = vmatprep.subr.bf16.mxu0 0
      %3035 = vmatpush1.bf16.msra.mxu0 0
      %3036 = vmatprep.subr.bf16.mxu0 0
      %3037 = vmatpush1.bf16.msra.mxu0 0
      %3038 = vmatprep.subr.bf16.mxu0 0
      %3039 = vmatpush1.bf16.msra.mxu0 0
      %3040 = vmatprep.subr.bf16.mxu0 0
      %3041 = vmatpush1.bf16.msra.mxu0 0
      %3042 = vmatprep.subr.bf16.mxu0 0
      %3043 = vmatpush1.bf16.msra.mxu0 %v3028
      %3044 = vmatprep.subr.bf16.mxu0 0
      %3045 = vmatpush1.bf16.msra.mxu0 %v3017
      %3046 = vmatprep.subr.bf16.mxu0 0
      %3047 = vmatpush2.bf16.msra.mxu0 0
      %3048 = vmatprep.subr.bf16.mxu0 0
      %3049 = vmatpush2.bf16.msra.mxu0 0
      %3050 = vmatprep.subr.bf16.mxu0 0
      %3051 = vmatpush2.bf16.msra.mxu0 0
      %3052 = vmatprep.subr.bf16.mxu0 0
      %3053 = vmatpush2.bf16.msra.mxu0 0
      %3054 = vmatprep.subr.bf16.mxu0 0
      %3055 = vmatpush2.bf16.msra.mxu0 0
      %3056 = vmatprep.subr.bf16.mxu0 0
      %3057 = vmatpush2.bf16.msra.mxu0 0
      %3058 = vmatprep.subr.bf16.mxu0 0
      %3059 = vmatpush2.bf16.msra.mxu0 0
      %3060 = vmatprep.subr.bf16.mxu0 0
      %3061 = vmatpush2.bf16.msra.mxu0 0
      %3062 = vmatprep.mubr.bf16.mxu0 0
      %3063 = vmatmul.mubr.bf16.gmra.mxu0 %v3022
      %v3064 = vpop.f32.mrf.mxu0
      %v3065 = vadd.f32 0.0, %v3064
      %v3066 = vpop.f32.mrf.mxu0
      %v3067 = vpop.f32.mrf.mxu0
      %v3068 = vadd.f32 0.0, %v3067
      %v3069 = vpop.f32.mrf.mxu0
      %3070 = vmatprep.mubr.bf16.mxu0 0
      %3071 = vmatmul.mubr.bf16.gmra.mxu0 %v3025
      %v3072 = vpop.f32.mrf.mxu0
      %v3073 = vadd.f32 0.0, %v3072
      %v3074 = vpop.f32.mrf.mxu0
      %v3075 = vpop.f32.mrf.mxu0
      %v3076 = vpop.f32.mrf.mxu0
      %3077 = vdwg.mxu0
      %v3078 = vpack.c.bf16 %v3068, %v3065
      %v3079 = vpack.c.bf16 %v3073, %v3073
      %v3082 = vunpack.c.l.b16 %v3078
      %v3083 = vunpack.c.h.b16 %v3078
      %v3084 = vunpack.c.l.b16 %v3079
      %v3085 = vpack.c.b16 %v3082, %v3082
      %v3086 = vpack.c.b16 %v3083, %v3083
      %v3087 = vpack.c.b16 %v3084, %v3084
      %3088 = vrot.lane.b32.xlu0 %v3085, 24
      %v3089 = vpop.permute.xlu0 %3088
      %3090 = vrot.lane.b32.xlu0 %v3086, 24
      %v3091 = vpop.permute.xlu0 %3090
      %3092 = vrot.lane.b32.xlu0 %v3087, 24
      %v3093 = vpop.permute.xlu0 %3092
      %3097 = vst.msk [vmem:[#allocation3 + $0xc] sm:$0xf] %vm2330, %v3089
      %3098 = vst.msk [vmem:[#allocation3 + $0x10] sm:$0xf] %vm2330, %v3091
      %3099 = vst.msk [vmem:[#allocation3 + $0x14] sm:$0xf] %vm2330, %v3093
      %v3100 = vld [vmem:[#allocation3] sm:$0xf]
      %v3101 = vld [vmem:[#allocation3 + $0x4] sm:$0xf]
      %v3102 = vld [vmem:[#allocation3 + $0x8] sm:$0xf]
      %v3103 = vld [vmem:[#allocation3 + $0xc] sm:$0xf]
      %v3104 = vld [vmem:[#allocation3 + $0x10] sm:$0xf]
      %v3105 = vld [vmem:[#allocation3 + $0x14] sm:$0xf]
      %v3106 = vld [vmem:[%s896] sm:$0xf]
      %v3107 = vld [vmem:[%s896 + $0x4] sm:$0xf]
      %v3108 = vld [vmem:[%s896 + $0x8] sm:$0xf]
      %v3109 = vld [vmem:[%s896 + $0xc] sm:$0xf]
      %v3110 = vld [vmem:[%s899] sm:$0x1]
      %v3112 = vlaneseq
      %v3113 = vshrl.u32 %v3112, 7
      %v3114 = vsub.s32 0, %v3113
      %v3115 = vrot.slane %v3110, %v3114
      %v3123 = vunpack.c.l.b16 %v3100
      %v3124 = vunpack.c.l.b16 %v3101
      %v3125 = vunpack.c.l.b16 %v3102
      %v3126 = vunpack.c.l.b16 %v3103
      %v3127 = vunpack.c.l.b16 %v3104
      %v3128 = vunpack.c.l.b16 %v3105
      %v3129 = vpack.c.b16 %v3124, %v3123
      %v3130 = vpack.c.b16 %v3126, %v3125
      %v3131 = vpack.c.b16 %v3128, %v3127
      %v3136 = vunpack.c.l.b16 %v3106
      %v3137 = vunpack.c.l.b16 %v3107
      %v3138 = vunpack.c.l.b16 %v3108
      %v3139 = vunpack.c.l.b16 %v3109
      %v3140 = vpack.c.b16 %v3137, %v3136
      %v3141 = vpack.c.b16 %v3139, %v3138
      %v3145 = vsel %vm1362, %v3129, 0
      %v3148 = vsel %vm1362, %v3130, 0
      %v3151 = vsel %vm1362, %v3131, 0
      %3153 = vmatprep.subr.bf16.mxu0 0
      %3154 = vmatpush1.bf16.msra.mxu0 0
      %3155 = vmatprep.subr.bf16.mxu0 0
      %3156 = vmatpush1.bf16.msra.mxu0 0
      %3157 = vmatprep.subr.bf16.mxu0 0
      %3158 = vmatpush1.bf16.msra.mxu0 0
      %3159 = vmatprep.subr.bf16.mxu0 0
      %3160 = vmatpush1.bf16.msra.mxu0 0
      %3161 = vmatprep.subr.bf16.mxu0 0
      %3162 = vmatpush1.bf16.msra.mxu0 0
      %3163 = vmatprep.subr.bf16.mxu0 0
      %3164 = vmatpush1.bf16.msra.mxu0 0
      %3165 = vmatprep.subr.bf16.mxu0 0
      %3166 = vmatpush1.bf16.msra.mxu0 %v3141
      %3167 = vmatprep.subr.bf16.mxu0 0
      %3168 = vmatpush1.bf16.msra.mxu0 %v3140
      %3169 = vmatprep.subr.bf16.mxu0 0
      %3170 = vmatpush2.bf16.msra.mxu0 0
      %3171 = vmatprep.subr.bf16.mxu0 0
      %3172 = vmatpush2.bf16.msra.mxu0 0
      %3173 = vmatprep.subr.bf16.mxu0 0
      %3174 = vmatpush2.bf16.msra.mxu0 0
      %3175 = vmatprep.subr.bf16.mxu0 0
      %3176 = vmatpush2.bf16.msra.mxu0 0
      %3177 = vmatprep.subr.bf16.mxu0 0
      %3178 = vmatpush2.bf16.msra.mxu0 0
      %3179 = vmatprep.subr.bf16.mxu0 0
      %3180 = vmatpush2.bf16.msra.mxu0 0
      %3181 = vmatprep.subr.bf16.mxu0 0
      %3182 = vmatpush2.bf16.msra.mxu0 0
      %3183 = vmatprep.subr.bf16.mxu0 0
      %3184 = vmatpush2.bf16.msra.mxu0 0
      %3185 = vmatprep.mubr.bf16.mxu0 0
      %3186 = vmatmul.mubr.bf16.gmra.mxu0 %v3145
      %v3187 = vpop.f32.mrf.mxu0
      %v3188 = vadd.f32 %v3115, %v3187
      %v3189 = vpop.f32.mrf.mxu0
      %v3190 = vpop.f32.mrf.mxu0
      %v3191 = vadd.f32 %v3115, %v3190
      %v3192 = vpop.f32.mrf.mxu0
      %3193 = vmatprep.mubr.bf16.mxu0 0
      %3194 = vmatmul.mubr.bf16.gmra.mxu0 %v3148
      %v3195 = vpop.f32.mrf.mxu0
      %v3196 = vadd.f32 %v3115, %v3195
      %v3197 = vpop.f32.mrf.mxu0
      %v3198 = vpop.f32.mrf.mxu0
      %v3199 = vadd.f32 %v3115, %v3198
      %v3200 = vpop.f32.mrf.mxu0
      %3201 = vmatprep.mubr.bf16.mxu0 0
      %3202 = vmatmul.mubr.bf16.gmra.mxu0 %v3151
      %v3203 = vpop.f32.mrf.mxu0
      %v3204 = vadd.f32 %v3115, %v3203
      %v3205 = vpop.f32.mrf.mxu0
      %v3206 = vpop.f32.mrf.mxu0
      %v3207 = vadd.f32 %v3115, %v3206
      %v3208 = vpop.f32.mrf.mxu0
      %3209 = vdwg.mxu0
      %v3210 = vadd.f32 %v1354, %v3188
      %v3211 = vadd.f32 %v1355, %v3191
      %v3212 = vadd.f32 %v1356, %v3196
      %v3213 = vadd.f32 %v1357, %v3199
      %v3214 = vadd.f32 %v1358, %v3204
      %v3215 = vadd.f32 %v1359, %v3207
      %v3216 = vld [vmem:[%s902] sm:$0x1]
      %v3217 = vld [vmem:[%s905] sm:$0x1]
      %v3218 = vsel %vm1362, %v3210, 0.0
      %3219 = vadd.xlane.f32.xlu0 %v3218
      %v3220 = vpop.xlane.xlu0 %3219
      %v3221 = vsel %vm1362, %v3211, 0.0
      %3222 = vadd.xlane.f32.xlu0 %v3221
      %v3223 = vpop.xlane.xlu0 %3222
      %v3224 = vsel %vm1362, %v3212, 0.0
      %3225 = vadd.xlane.f32.xlu0 %v3224
      %v3226 = vpop.xlane.xlu0 %3225
      %v3227 = vsel %vm1362, %v3213, 0.0
      %3228 = vadd.xlane.f32.xlu0 %v3227
      %v3229 = vpop.xlane.xlu0 %3228
      %v3230 = vsel %vm1362, %v3214, 0.0
      %3231 = vadd.xlane.f32.xlu0 %v3230
      %v3232 = vpop.xlane.xlu0 %3231
      %v3233 = vsel %vm1362, %v3215, 0.0
      %3234 = vadd.xlane.f32.xlu0 %v3233
      %v3235 = vpop.xlane.xlu0 %3234
      %v3236 = vmul.f32 %v3220, %v1381
      %v3237 = vmul.f32 %v3223, %v1381
      %v3238 = vmul.f32 %v3226, %v1381
      %v3239 = vmul.f32 %v3229, %v1381
      %v3240 = vmul.f32 %v3232, %v1381
      %v3241 = vmul.f32 %v3235, %v1381
      %v3242 = vsub.f32 %v3210, %v3236
      %v3243 = vsub.f32 %v3211, %v3237
      %v3244 = vsub.f32 %v3212, %v3238
      %v3245 = vsub.f32 %v3213, %v3239
      %v3246 = vsub.f32 %v3214, %v3240
      %v3247 = vsub.f32 %v3215, %v3241
      %v3248 = vmul.f32 %v3242, %v3242
      %v3249 = vmul.f32 %v3243, %v3243
      %v3250 = vmul.f32 %v3244, %v3244
      %v3251 = vmul.f32 %v3245, %v3245
      %v3252 = vmul.f32 %v3246, %v3246
      %v3253 = vmul.f32 %v3247, %v3247
      %v3254 = vsel %vm1362, %v3248, 0.0
      %3255 = vadd.xlane.f32.xlu0 %v3254
      %v3256 = vpop.xlane.xlu0 %3255
      %v3257 = vsel %vm1362, %v3249, 0.0
      %3258 = vadd.xlane.f32.xlu0 %v3257
      %v3259 = vpop.xlane.xlu0 %3258
      %v3260 = vsel %vm1362, %v3250, 0.0
      %3261 = vadd.xlane.f32.xlu0 %v3260
      %v3262 = vpop.xlane.xlu0 %3261
      %v3263 = vsel %vm1362, %v3251, 0.0
      %3264 = vadd.xlane.f32.xlu0 %v3263
      %v3265 = vpop.xlane.xlu0 %3264
      %v3266 = vsel %vm1362, %v3252, 0.0
      %3267 = vadd.xlane.f32.xlu0 %v3266
      %v3268 = vpop.xlane.xlu0 %3267
      %v3269 = vsel %vm1362, %v3253, 0.0
      %3270 = vadd.xlane.f32.xlu0 %v3269
      %v3271 = vpop.xlane.xlu0 %3270
      %v3272 = vmul.f32 %v3256, %v1381
      %v3273 = vmul.f32 %v3259, %v1381
      %v3274 = vmul.f32 %v3262, %v1381
      %v3275 = vmul.f32 %v3265, %v1381
      %v3276 = vmul.f32 %v3268, %v1381
      %v3277 = vmul.f32 %v3271, %v1381
      %v3278 = vadd.f32 %v3272, 1e-05
      %v3279 = vadd.f32 %v3273, 1e-05
      %v3280 = vadd.f32 %v3274, 1e-05
      %v3281 = vadd.f32 %v3275, 1e-05
      %v3282 = vadd.f32 %v3276, 1e-05
      %v3283 = vadd.f32 %v3277, 1e-05
      %v3284 = vrsqrt.pop %v3278
      %v3285 = vrsqrt.pop %v3279
      %v3286 = vrsqrt.pop %v3280
      %v3287 = vrsqrt.pop %v3281
      %v3288 = vrsqrt.pop %v3282
      %v3289 = vrsqrt.pop %v3283
      %v3290 = vmul.f32 %v3242, %v3284
      %v3291 = vmul.f32 %v3243, %v3285
      %v3292 = vmul.f32 %v3244, %v3286
      %v3293 = vmul.f32 %v3245, %v3287
      %v3294 = vmul.f32 %v3246, %v3288
      %v3295 = vmul.f32 %v3247, %v3289
      %v3297 = vlaneseq
      %v3298 = vshrl.u32 %v3297, 7
      %v3299 = vsub.s32 0, %v3298
      %v3300 = vrot.slane %v3216, %v3299
      %v3302 = vmul.f32 %v3290, %v3300
      %v3303 = vmul.f32 %v3291, %v3300
      %v3304 = vmul.f32 %v3292, %v3300
      %v3305 = vmul.f32 %v3293, %v3300
      %v3306 = vmul.f32 %v3294, %v3300
      %v3307 = vmul.f32 %v3295, %v3300
      %v3309 = vlaneseq
      %v3310 = vshrl.u32 %v3309, 7
      %v3311 = vsub.s32 0, %v3310
      %v3312 = vrot.slane %v3217, %v3311
      %v3314 = vadd.f32 %v3302, %v3312
      %v3315 = vadd.f32 %v3303, %v3312
      %v3316 = vadd.f32 %v3304, %v3312
      %v3317 = vadd.f32 %v3305, %v3312
      %v3318 = vadd.f32 %v3306, %v3312
      %v3319 = vadd.f32 %v3307, %v3312
      %v3320 = vpack.c.bf16 %v3315, %v3314
      %v3321 = vpack.c.bf16 %v3317, %v3316
      %v3322 = vpack.c.bf16 %v3319, %v3318
      %v3323 = vld [vmem:[%s910] sm:$0xf]
      %v3324 = vld [vmem:[%s910 + $0x4] sm:$0xf]
      %v3325 = vld [vmem:[%s910 + $0x8] sm:$0xf]
      %v3326 = vld [vmem:[%s910 + $0xc] sm:$0xf]
      %v3327 = vld [vmem:[%s913] sm:$0x1]
      %v3329 = vlaneseq
      %v3330 = vshrl.u32 %v3329, 7
      %v3331 = vsub.s32 0, %v3330
      %v3332 = vrot.slane %v3327, %v3331
      %v3338 = vunpack.c.l.b16 %v3323
      %v3339 = vunpack.c.l.b16 %v3324
      %v3340 = vunpack.c.l.b16 %v3325
      %v3341 = vunpack.c.l.b16 %v3326
      %v3342 = vpack.c.b16 %v3339, %v3338
      %v3343 = vpack.c.b16 %v3341, %v3340
      %v3347 = vsel %vm1362, %v3320, 0
      %v3350 = vsel %vm1362, %v3321, 0
      %v3353 = vsel %vm1362, %v3322, 0
      %3355 = vmatprep.subr.bf16.mxu0 0
      %3356 = vmatpush1.bf16.msra.mxu0 0
      %3357 = vmatprep.subr.bf16.mxu0 0
      %3358 = vmatpush1.bf16.msra.mxu0 0
      %3359 = vmatprep.subr.bf16.mxu0 0
      %3360 = vmatpush1.bf16.msra.mxu0 0
      %3361 = vmatprep.subr.bf16.mxu0 0
      %3362 = vmatpush1.bf16.msra.mxu0 0
      %3363 = vmatprep.subr.bf16.mxu0 0
      %3364 = vmatpush1.bf16.msra.mxu0 0
      %3365 = vmatprep.subr.bf16.mxu0 0
      %3366 = vmatpush1.bf16.msra.mxu0 0
      %3367 = vmatprep.subr.bf16.mxu0 0
      %3368 = vmatpush1.bf16.msra.mxu0 %v3343
      %3369 = vmatprep.subr.bf16.mxu0 0
      %3370 = vmatpush1.bf16.msra.mxu0 %v3342
      %3371 = vmatprep.subr.bf16.mxu0 0
      %3372 = vmatpush2.bf16.msra.mxu0 0
      %3373 = vmatprep.subr.bf16.mxu0 0
      %3374 = vmatpush2.bf16.msra.mxu0 0
      %3375 = vmatprep.subr.bf16.mxu0 0
      %3376 = vmatpush2.bf16.msra.mxu0 0
      %3377 = vmatprep.subr.bf16.mxu0 0
      %3378 = vmatpush2.bf16.msra.mxu0 0
      %3379 = vmatprep.subr.bf16.mxu0 0
      %3380 = vmatpush2.bf16.msra.mxu0 0
      %3381 = vmatprep.subr.bf16.mxu0 0
      %3382 = vmatpush2.bf16.msra.mxu0 0
      %3383 = vmatprep.subr.bf16.mxu0 0
      %3384 = vmatpush2.bf16.msra.mxu0 0
      %3385 = vmatprep.subr.bf16.mxu0 0
      %3386 = vmatpush2.bf16.msra.mxu0 0
      %3387 = vmatprep.mubr.bf16.mxu0 0
      %3388 = vmatmul.mubr.bf16.gmra.mxu0 %v3347
      %v3389 = vpop.f32.mrf.mxu0
      %v3390 = vadd.f32 %v3332, %v3389
      %v3391 = vpop.f32.mrf.mxu0
      %v3392 = vpop.f32.mrf.mxu0
      %v3393 = vadd.f32 %v3332, %v3392
      %v3394 = vpop.f32.mrf.mxu0
      %3395 = vmatprep.mubr.bf16.mxu0 0
      %3396 = vmatmul.mubr.bf16.gmra.mxu0 %v3350
      %v3397 = vpop.f32.mrf.mxu0
      %v3398 = vadd.f32 %v3332, %v3397
      %v3399 = vpop.f32.mrf.mxu0
      %v3400 = vpop.f32.mrf.mxu0
      %v3401 = vadd.f32 %v3332, %v3400
      %v3402 = vpop.f32.mrf.mxu0
      %3403 = vmatprep.mubr.bf16.mxu0 0
      %3404 = vmatmul.mubr.bf16.gmra.mxu0 %v3353
      %v3405 = vpop.f32.mrf.mxu0
      %v3406 = vadd.f32 %v3332, %v3405
      %v3407 = vpop.f32.mrf.mxu0
      %v3408 = vpop.f32.mrf.mxu0
      %v3409 = vadd.f32 %v3332, %v3408
      %v3410 = vpop.f32.mrf.mxu0
      %3411 = vdwg.mxu0
      %v3412 = vmul.f32 %v3390, %v3390
      %v3413 = vmul.f32 %v3393, %v3393
      %v3414 = vmul.f32 %v3398, %v3398
      %v3415 = vmul.f32 %v3401, %v3401
      %v3416 = vmul.f32 %v3406, %v3406
      %v3417 = vmul.f32 %v3409, %v3409
      %v3418 = vmul.f32 %v3390, %v3412
      %v3419 = vmul.f32 %v3393, %v3413
      %v3420 = vmul.f32 %v3398, %v3414
      %v3421 = vmul.f32 %v3401, %v3415
      %v3422 = vmul.f32 %v3406, %v3416
      %v3423 = vmul.f32 %v3409, %v3417
      %v3424 = vmul.f32 %v3418, 0.044715
      %v3425 = vmul.f32 %v3419, 0.044715
      %v3426 = vmul.f32 %v3420, 0.044715
      %v3427 = vmul.f32 %v3421, 0.044715
      %v3428 = vmul.f32 %v3422, 0.044715
      %v3429 = vmul.f32 %v3423, 0.044715
      %v3430 = vadd.f32 %v3390, %v3424
      %v3431 = vadd.f32 %v3393, %v3425
      %v3432 = vadd.f32 %v3398, %v3426
      %v3433 = vadd.f32 %v3401, %v3427
      %v3434 = vadd.f32 %v3406, %v3428
      %v3435 = vadd.f32 %v3409, %v3429
      %v3436 = vmul.f32 %v3430, 0.7978846
      %v3437 = vmul.f32 %v3431, 0.7978846
      %v3438 = vmul.f32 %v3432, 0.7978846
      %v3439 = vmul.f32 %v3433, 0.7978846
      %v3440 = vmul.f32 %v3434, 0.7978846
      %v3441 = vmul.f32 %v3435, 0.7978846
      %v3442 = vtanh.pop %v3436
      %v3443 = vtanh.pop %v3437
      %v3444 = vtanh.pop %v3438
      %v3445 = vtanh.pop %v3439
      %v3446 = vtanh.pop %v3440
      %v3447 = vtanh.pop %v3441
      %v3448 = vadd.f32 %v3442, 1.0
      %v3449 = vadd.f32 %v3443, 1.0
      %v3450 = vadd.f32 %v3444, 1.0
      %v3451 = vadd.f32 %v3445, 1.0
      %v3452 = vadd.f32 %v3446, 1.0
      %v3453 = vadd.f32 %v3447, 1.0
      %v3454 = vmul.f32 %v3448, 0.5
      %v3455 = vmul.f32 %v3449, 0.5
      %v3456 = vmul.f32 %v3450, 0.5
      %v3457 = vmul.f32 %v3451, 0.5
      %v3458 = vmul.f32 %v3452, 0.5
      %v3459 = vmul.f32 %v3453, 0.5
      %v3460 = vmul.f32 %v3390, %v3454
      %v3461 = vmul.f32 %v3393, %v3455
      %v3462 = vmul.f32 %v3398, %v3456
      %v3463 = vmul.f32 %v3401, %v3457
      %v3464 = vmul.f32 %v3406, %v3458
      %v3465 = vmul.f32 %v3409, %v3459
      %v3466 = vpack.c.bf16 %v3461, %v3460
      %v3467 = vpack.c.bf16 %v3463, %v3462
      %v3468 = vpack.c.bf16 %v3465, %v3464
      %v3469 = vld [vmem:[%s918] sm:$0xf]
      %v3470 = vld [vmem:[%s918 + $0x4] sm:$0xf]
      %v3471 = vld [vmem:[%s918 + $0x8] sm:$0xf]
      %v3472 = vld [vmem:[%s918 + $0xc] sm:$0xf]
      %v3473 = vld [vmem:[%s918 + $0x10] sm:$0xf]
      %v3474 = vld [vmem:[%s918 + $0x14] sm:$0xf]
      %v3475 = vld [vmem:[%s918 + $0x18] sm:$0xf]
      %v3476 = vld [vmem:[%s918 + $0x1c] sm:$0xf]
      %v3477 = vld [vmem:[%s918 + $0x20] sm:$0xf]
      %v3478 = vld [vmem:[%s918 + $0x24] sm:$0xf]
      %v3479 = vld [vmem:[%s918 + $0x28] sm:$0xf]
      %v3480 = vld [vmem:[%s918 + $0x2c] sm:$0xf]
      %v3481 = vld [vmem:[%s918 + $0x30] sm:$0xf]
      %v3482 = vld [vmem:[%s918 + $0x34] sm:$0xf]
      %v3483 = vld [vmem:[%s918 + $0x38] sm:$0xf]
      %v3484 = vld [vmem:[%s918 + $0x3c] sm:$0xf]
      %v3485 = vld [vmem:[%s921] sm:$0x1]
      %v3487 = vlaneseq
      %v3488 = vshrl.u32 %v3487, 7
      %v3489 = vsub.s32 0, %v3488
      %v3490 = vrot.slane %v3485, %v3489
      %v3508 = vunpack.c.l.b16 %v3469
      %v3509 = vunpack.c.l.b16 %v3470
      %v3510 = vunpack.c.l.b16 %v3471
      %v3511 = vunpack.c.l.b16 %v3472
      %v3512 = vunpack.c.l.b16 %v3473
      %v3513 = vunpack.c.l.b16 %v3474
      %v3514 = vunpack.c.l.b16 %v3475
      %v3515 = vunpack.c.l.b16 %v3476
      %v3516 = vunpack.c.l.b16 %v3477
      %v3517 = vunpack.c.l.b16 %v3478
      %v3518 = vunpack.c.l.b16 %v3479
      %v3519 = vunpack.c.l.b16 %v3480
      %v3520 = vunpack.c.l.b16 %v3481
      %v3521 = vunpack.c.l.b16 %v3482
      %v3522 = vunpack.c.l.b16 %v3483
      %v3523 = vunpack.c.l.b16 %v3484
      %v3524 = vpack.c.b16 %v3509, %v3508
      %v3525 = vpack.c.b16 %v3511, %v3510
      %v3526 = vpack.c.b16 %v3513, %v3512
      %v3527 = vpack.c.b16 %v3515, %v3514
      %v3528 = vpack.c.b16 %v3517, %v3516
      %v3529 = vpack.c.b16 %v3519, %v3518
      %v3530 = vpack.c.b16 %v3521, %v3520
      %v3531 = vpack.c.b16 %v3523, %v3522
      %3540 = vmatprep.subr.bf16.mxu0 0
      %3541 = vmatpush1.bf16.msra.mxu0 %v3531
      %3542 = vmatprep.subr.bf16.mxu0 0
      %3543 = vmatpush1.bf16.msra.mxu0 %v3530
      %3544 = vmatprep.subr.bf16.mxu0 0
      %3545 = vmatpush1.bf16.msra.mxu0 %v3529
      %3546 = vmatprep.subr.bf16.mxu0 0
      %3547 = vmatpush1.bf16.msra.mxu0 %v3528
      %3548 = vmatprep.subr.bf16.mxu0 0
      %3549 = vmatpush1.bf16.msra.mxu0 %v3527
      %3550 = vmatprep.subr.bf16.mxu0 0
      %3551 = vmatpush1.bf16.msra.mxu0 %v3526
      %3552 = vmatprep.subr.bf16.mxu0 0
      %3553 = vmatpush1.bf16.msra.mxu0 %v3525
      %3554 = vmatprep.subr.bf16.mxu0 0
      %3555 = vmatpush1.bf16.msra.mxu0 %v3524
      %3556 = vmatprep.subr.bf16.mxu0 0
      %3557 = vmatpush2.bf16.msra.mxu0 0
      %3558 = vmatprep.subr.bf16.mxu0 0
      %3559 = vmatpush2.bf16.msra.mxu0 0
      %3560 = vmatprep.subr.bf16.mxu0 0
      %3561 = vmatpush2.bf16.msra.mxu0 0
      %3562 = vmatprep.subr.bf16.mxu0 0
      %3563 = vmatpush2.bf16.msra.mxu0 0
      %3564 = vmatprep.subr.bf16.mxu0 0
      %3565 = vmatpush2.bf16.msra.mxu0 0
      %3566 = vmatprep.subr.bf16.mxu0 0
      %3567 = vmatpush2.bf16.msra.mxu0 0
      %3568 = vmatprep.subr.bf16.mxu0 0
      %3569 = vmatpush2.bf16.msra.mxu0 0
      %3570 = vmatprep.subr.bf16.mxu0 0
      %3571 = vmatpush2.bf16.msra.mxu0 0
      %3572 = vmatprep.mubr.bf16.mxu0 0
      %3573 = vmatmul.mubr.bf16.gmra.mxu0 %v3466
      %v3574 = vpop.f32.mrf.mxu0
      %v3575 = vadd.f32 %v3490, %v3574
      %v3576 = vpop.f32.mrf.mxu0
      %v3577 = vpop.f32.mrf.mxu0
      %v3578 = vadd.f32 %v3490, %v3577
      %v3579 = vpop.f32.mrf.mxu0
      %3580 = vmatprep.mubr.bf16.mxu0 0
      %3581 = vmatmul.mubr.bf16.gmra.mxu0 %v3467
      %v3582 = vpop.f32.mrf.mxu0
      %v3583 = vadd.f32 %v3490, %v3582
      %v3584 = vpop.f32.mrf.mxu0
      %v3585 = vpop.f32.mrf.mxu0
      %v3586 = vadd.f32 %v3490, %v3585
      %v3587 = vpop.f32.mrf.mxu0
      %3588 = vmatprep.mubr.bf16.mxu0 0
      %3589 = vmatmul.mubr.bf16.gmra.mxu0 %v3468
      %v3590 = vpop.f32.mrf.mxu0
      %v3591 = vadd.f32 %v3490, %v3590
      %v3592 = vpop.f32.mrf.mxu0
      %v3593 = vpop.f32.mrf.mxu0
      %v3594 = vadd.f32 %v3490, %v3593
      %v3595 = vpop.f32.mrf.mxu0
      %3596 = vdwg.mxu0
      %v3597 = vadd.f32 %v3210, %v3575
      %v3598 = vadd.f32 %v3211, %v3578
      %v3599 = vadd.f32 %v3212, %v3583
      %v3600 = vadd.f32 %v3213, %v3586
      %v3601 = vadd.f32 %v3214, %v3591
      %v3602 = vadd.f32 %v3215, %v3594
      %3603 = vst.msk [vmem:[#allocation2] sm:$0xff] %vm1362, %v3597
      %3604 = vst.msk [vmem:[#allocation2 + $0x8] sm:$0xff] %vm1362, %v3598
      %3605 = vst.msk [vmem:[#allocation2 + $0x10] sm:$0xff] %vm1362, %v3599
      %3606 = vst.msk [vmem:[#allocation2 + $0x18] sm:$0xff] %vm1362, %v3600
      %3607 = vst.msk [vmem:[#allocation2 + $0x20] sm:$0xff] %vm1362, %v3601
      %3608 = vst.msk [vmem:[#allocation2 + $0x28] sm:$0xff] %vm1362, %v3602
      %p3609 = scmp.eq.s32.totalorder %s36, 1
      // Predicated region
      $region125: #{decision_transformer_forward.1} parent=119 // pred_check
        %p3610 = pneg %p3609
      $region126: #{decision_transformer_forward.1} parent=119 // pred_check_branch
        %3612 = sbr.rel (%p3610) target = $region128
      $region127: #{decision_transformer_forward.1} parent=119 // pred_region
        %v3613 = vlaneseq
        %v3614 = vand.u32 %v3613, 127
        %vm3615 = vcmp.ge.s32.totalorder %v3614, 9
        %vm3616 = vcmp.lt.s32.totalorder %v3614, 13
        %vm3617 = vmand %vm3615, %vm3616
        %v3618 = vld [vmem:[%s20] sm:$0x1]
        %v3619 = vld [vmem:[%s21] sm:$0x1]
        %v3620 = vsel %vm1362, %v3598, 0.0
        %3621 = vadd.xlane.f32.xlu0 %v3620
        %v3622 = vpop.xlane.xlu0 %3621
        %v3623 = vmul.f32 %v3622, %v1381
        %v3624 = vsub.f32 %v3598, %v3623
        %v3625 = vmul.f32 %v3624, %v3624
        %v3626 = vsel %vm1362, %v3625, 0.0
        %3627 = vadd.xlane.f32.xlu0 %v3626
        %v3628 = vpop.xlane.xlu0 %3627
        %v3629 = vmul.f32 %v3628, %v1381
        %v3630 = vadd.f32 %v3629, 1e-05
        %v3631 = vrsqrt.pop %v3630
        %v3632 = vmul.f32 %v3624, %v3631
        %v3634 = vlaneseq
        %v3635 = vshrl.u32 %v3634, 7
        %v3636 = vsub.s32 0, %v3635
        %v3637 = vrot.slane %v3618, %v3636
        %v3639 = vmul.f32 %v3632, %v3637
        %v3641 = vlaneseq
        %v3642 = vshrl.u32 %v3641, 7
        %v3643 = vsub.s32 0, %v3642
        %v3644 = vrot.slane %v3619, %v3643
        %v3646 = vadd.f32 %v3639, %v3644
        %v3647 = vpack.c.bf16 %v3646, %v3646
        %v3648 = vsel %vm1362, %v3599, 0.0
        %3649 = vadd.xlane.f32.xlu0 %v3648
        %v3650 = vpop.xlane.xlu0 %3649
        %v3651 = vmul.f32 %v3650, %v1381
        %v3652 = vsub.f32 %v3599, %v3651
        %v3653 = vmul.f32 %v3652, %v3652
        %v3654 = vsel %vm1362, %v3653, 0.0
        %3655 = vadd.xlane.f32.xlu0 %v3654
        %v3656 = vpop.xlane.xlu0 %3655
        %v3657 = vmul.f32 %v3656, %v1381
        %v3658 = vadd.f32 %v3657, 1e-05
        %v3659 = vrsqrt.pop %v3658
        %v3660 = vmul.f32 %v3652, %v3659
        %v3661 = vmul.f32 %v3660, %v3637
        %v3662 = vadd.f32 %v3661, %v3644
        %v3663 = vpack.c.bf16 %v3662, %v3662
        %v3664 = vld [vmem:[%s22] sm:$0xf]
        %v3665 = vld [vmem:[%s22 + $0x4] sm:$0xf]
        %v3666 = vld [vmem:[%s22 + $0x8] sm:$0xf]
        %v3667 = vld [vmem:[%s22 + $0xc] sm:$0xf]
        %v3668 = vld [vmem:[%s23] sm:$0xf]
        %v3669 = vld [vmem:[%s23 + $0x4] sm:$0xf]
        %v3670 = vld [vmem:[%s23 + $0x8] sm:$0xf]
        %v3671 = vld [vmem:[%s23 + $0xc] sm:$0xf]
        %v3676 = vunpack.c.l.b16 %v3668
        %v3677 = vunpack.c.l.b16 %v3669
        %v3678 = vunpack.c.l.b16 %v3670
        %v3679 = vunpack.c.l.b16 %v3671
        %v3680 = vpack.c.b16 %v3677, %v3676
        %v3681 = vpack.c.b16 %v3679, %v3678
        %v3685 = vsel %vm1362, %v3647, 0
        %3687 = vmatprep.subr.bf16.mxu0 0
        %3688 = vmatpush1.bf16.msra.mxu0 0
        %3689 = vmatprep.subr.bf16.mxu0 0
        %3690 = vmatpush1.bf16.msra.mxu0 0
        %3691 = vmatprep.subr.bf16.mxu0 0
        %3692 = vmatpush1.bf16.msra.mxu0 0
        %3693 = vmatprep.subr.bf16.mxu0 0
        %3694 = vmatpush1.bf16.msra.mxu0 0
        %3695 = vmatprep.subr.bf16.mxu0 0
        %3696 = vmatpush1.bf16.msra.mxu0 0
        %3697 = vmatprep.subr.bf16.mxu0 0
        %3698 = vmatpush1.bf16.msra.mxu0 0
        %3699 = vmatprep.subr.bf16.mxu0 0
        %3700 = vmatpush1.bf16.msra.mxu0 %v3681
        %3701 = vmatprep.subr.bf16.mxu0 0
        %3702 = vmatpush1.bf16.msra.mxu0 %v3680
        %3703 = vmatprep.subr.bf16.mxu0 0
        %3704 = vmatpush2.bf16.msra.mxu0 0
        %3705 = vmatprep.subr.bf16.mxu0 0
        %3706 = vmatpush2.bf16.msra.mxu0 0
        %3707 = vmatprep.subr.bf16.mxu0 0
        %3708 = vmatpush2.bf16.msra.mxu0 0
        %3709 = vmatprep.subr.bf16.mxu0 0
        %3710 = vmatpush2.bf16.msra.mxu0 0
        %3711 = vmatprep.subr.bf16.mxu0 0
        %3712 = vmatpush2.bf16.msra.mxu0 0
        %3713 = vmatprep.subr.bf16.mxu0 0
        %3714 = vmatpush2.bf16.msra.mxu0 0
        %3715 = vmatprep.subr.bf16.mxu0 0
        %3716 = vmatpush2.bf16.msra.mxu0 0
        %3717 = vmatprep.subr.bf16.mxu0 0
        %3718 = vmatpush2.bf16.msra.mxu0 0
        %3719 = vmatprep.mubr.bf16.mxu0 0
        %3720 = vmatmul.mubr.bf16.gmra.mxu0 %v3685
        %v3721 = vpop.f32.mrf.mxu0
        %v3722 = vadd.f32 0.0, %v3721
        %v3723 = vpop.f32.mrf.mxu0
        %v3724 = vpop.f32.mrf.mxu0
        %v3725 = vpop.f32.mrf.mxu0
        %3726 = vdwg.mxu0
        %v3731 = vunpack.c.l.b16 %v3664
        %v3732 = vunpack.c.l.b16 %v3665
        %v3733 = vunpack.c.l.b16 %v3666
        %v3734 = vunpack.c.l.b16 %v3667
        %v3735 = vpack.c.b16 %v3732, %v3731
        %v3736 = vpack.c.b16 %v3734, %v3733
        %v3740 = vsel %vm1362, %v3663, 0
        %3742 = vmatprep.subr.bf16.mxu0 0
        %3743 = vmatpush1.bf16.msra.mxu0 0
        %3744 = vmatprep.subr.bf16.mxu0 0
        %3745 = vmatpush1.bf16.msra.mxu0 0
        %3746 = vmatprep.subr.bf16.mxu0 0
        %3747 = vmatpush1.bf16.msra.mxu0 0
        %3748 = vmatprep.subr.bf16.mxu0 0
        %3749 = vmatpush1.bf16.msra.mxu0 0
        %3750 = vmatprep.subr.bf16.mxu0 0
        %3751 = vmatpush1.bf16.msra.mxu0 0
        %3752 = vmatprep.subr.bf16.mxu0 0
        %3753 = vmatpush1.bf16.msra.mxu0 0
        %3754 = vmatprep.subr.bf16.mxu0 0
        %3755 = vmatpush1.bf16.msra.mxu0 %v3736
        %3756 = vmatprep.subr.bf16.mxu0 0
        %3757 = vmatpush1.bf16.msra.mxu0 %v3735
        %3758 = vmatprep.subr.bf16.mxu0 0
        %3759 = vmatpush2.bf16.msra.mxu0 0
        %3760 = vmatprep.subr.bf16.mxu0 0
        %3761 = vmatpush2.bf16.msra.mxu0 0
        %3762 = vmatprep.subr.bf16.mxu0 0
        %3763 = vmatpush2.bf16.msra.mxu0 0
        %3764 = vmatprep.subr.bf16.mxu0 0
        %3765 = vmatpush2.bf16.msra.mxu0 0
        %3766 = vmatprep.subr.bf16.mxu0 0
        %3767 = vmatpush2.bf16.msra.mxu0 0
        %3768 = vmatprep.subr.bf16.mxu0 0
        %3769 = vmatpush2.bf16.msra.mxu0 0
        %3770 = vmatprep.subr.bf16.mxu0 0
        %3771 = vmatpush2.bf16.msra.mxu0 0
        %3772 = vmatprep.subr.bf16.mxu0 0
        %3773 = vmatpush2.bf16.msra.mxu0 0
        %3774 = vmatprep.mubr.bf16.mxu0 0
        %3775 = vmatmul.mubr.bf16.gmra.mxu0 %v3740
        %v3776 = vpop.f32.mrf.mxu0
        %v3777 = vadd.f32 %v3722, %v3776
        %v3778 = vpop.f32.mrf.mxu0
        %v3779 = vpop.f32.mrf.mxu0
        %v3780 = vpop.f32.mrf.mxu0
        %3781 = vdwg.mxu0
        %v3782 = vld [vmem:[%s24] sm:$0x1]
        %v3784 = vlaneseq
        %v3785 = vshrl.u32 %v3784, 7
        %v3786 = vsub.s32 0, %v3785
        %v3787 = vrot.slane %v3782, %v3786
        %v3789 = vadd.f32 %v3777, %v3787
        %v3790 = vtanh.pop %v3789
        %v3791 = vsel %vm3617, %v3790, %v3789
        %3792 = vst [vmem:[%s25] sm:$0xff] %v3791
        %v3793 = vld [vmem:[%s20] sm:$0x1]
        %v3794 = vld [vmem:[%s21] sm:$0x1]
        %v3795 = vsel %vm1362, %v3601, 0.0
        %3796 = vadd.xlane.f32.xlu0 %v3795
        %v3797 = vpop.xlane.xlu0 %3796
        %v3798 = vmul.f32 %v3797, %v1381
        %v3799 = vsub.f32 %v3601, %v3798
        %v3800 = vmul.f32 %v3799, %v3799
        %v3801 = vsel %vm1362, %v3800, 0.0
        %3802 = vadd.xlane.f32.xlu0 %v3801
        %v3803 = vpop.xlane.xlu0 %3802
        %v3804 = vmul.f32 %v3803, %v1381
        %v3805 = vadd.f32 %v3804, 1e-05
        %v3806 = vrsqrt.pop %v3805
        %v3807 = vmul.f32 %v3799, %v3806
        %v3809 = vlaneseq
        %v3810 = vshrl.u32 %v3809, 7
        %v3811 = vsub.s32 0, %v3810
        %v3812 = vrot.slane %v3793, %v3811
        %v3814 = vmul.f32 %v3807, %v3812
        %v3816 = vlaneseq
        %v3817 = vshrl.u32 %v3816, 7
        %v3818 = vsub.s32 0, %v3817
        %v3819 = vrot.slane %v3794, %v3818
        %v3821 = vadd.f32 %v3814, %v3819
        %v3822 = vpack.c.bf16 %v3821, %v3821
        %v3823 = vsel %vm1362, %v3602, 0.0
        %3824 = vadd.xlane.f32.xlu0 %v3823
        %v3825 = vpop.xlane.xlu0 %3824
        %v3826 = vmul.f32 %v3825, %v1381
        %v3827 = vsub.f32 %v3602, %v3826
        %v3828 = vmul.f32 %v3827, %v3827
        %v3829 = vsel %vm1362, %v3828, 0.0
        %3830 = vadd.xlane.f32.xlu0 %v3829
        %v3831 = vpop.xlane.xlu0 %3830
        %v3832 = vmul.f32 %v3831, %v1381
        %v3833 = vadd.f32 %v3832, 1e-05
        %v3834 = vrsqrt.pop %v3833
        %v3835 = vmul.f32 %v3827, %v3834
        %v3836 = vmul.f32 %v3835, %v3812
        %v3837 = vadd.f32 %v3836, %v3819
        %v3838 = vpack.c.bf16 %v3837, %v3837
        %v3839 = vld [vmem:[%s22] sm:$0xf]
        %v3840 = vld [vmem:[%s22 + $0x4] sm:$0xf]
        %v3841 = vld [vmem:[%s22 + $0x8] sm:$0xf]
        %v3842 = vld [vmem:[%s22 + $0xc] sm:$0xf]
        %v3843 = vld [vmem:[%s23] sm:$0xf]
        %v3844 = vld [vmem:[%s23 + $0x4] sm:$0xf]
        %v3845 = vld [vmem:[%s23 + $0x8] sm:$0xf]
        %v3846 = vld [vmem:[%s23 + $0xc] sm:$0xf]
        %v3851 = vunpack.c.l.b16 %v3843
        %v3852 = vunpack.c.l.b16 %v3844
        %v3853 = vunpack.c.l.b16 %v3845
        %v3854 = vunpack.c.l.b16 %v3846
        %v3855 = vpack.c.b16 %v3852, %v3851
        %v3856 = vpack.c.b16 %v3854, %v3853
        %v3860 = vsel %vm1362, %v3822, 0
        %3862 = vmatprep.subr.bf16.mxu0 0
        %3863 = vmatpush1.bf16.msra.mxu0 0
        %3864 = vmatprep.subr.bf16.mxu0 0
        %3865 = vmatpush1.bf16.msra.mxu0 0
        %3866 = vmatprep.subr.bf16.mxu0 0
        %3867 = vmatpush1.bf16.msra.mxu0 0
        %3868 = vmatprep.subr.bf16.mxu0 0
        %3869 = vmatpush1.bf16.msra.mxu0 0
        %3870 = vmatprep.subr.bf16.mxu0 0
        %3871 = vmatpush1.bf16.msra.mxu0 0
        %3872 = vmatprep.subr.bf16.mxu0 0
        %3873 = vmatpush1.bf16.msra.mxu0 0
        %3874 = vmatprep.subr.bf16.mxu0 0
        %3875 = vmatpush1.bf16.msra.mxu0 %v3856
        %3876 = vmatprep.subr.bf16.mxu0 0
        %3877 = vmatpush1.bf16.msra.mxu0 %v3855
        %3878 = vmatprep.subr.bf16.mxu0 0
        %3879 = vmatpush2.bf16.msra.mxu0 0
        %3880 = vmatprep.subr.bf16.mxu0 0
        %3881 = vmatpush2.bf16.msra.mxu0 0
        %3882 = vmatprep.subr.bf16.mxu0 0
        %3883 = vmatpush2.bf16.msra.mxu0 0
        %3884 = vmatprep.subr.bf16.mxu0 0
        %3885 = vmatpush2.bf16.msra.mxu0 0
        %3886 = vmatprep.subr.bf16.mxu0 0
        %3887 = vmatpush2.bf16.msra.mxu0 0
        %3888 = vmatprep.subr.bf16.mxu0 0
        %3889 = vmatpush2.bf16.msra.mxu0 0
        %3890 = vmatprep.subr.bf16.mxu0 0
        %3891 = vmatpush2.bf16.msra.mxu0 0
        %3892 = vmatprep.subr.bf16.mxu0 0
        %3893 = vmatpush2.bf16.msra.mxu0 0
        %3894 = vmatprep.mubr.bf16.mxu0 0
        %3895 = vmatmul.mubr.bf16.gmra.mxu0 %v3860
        %v3896 = vpop.f32.mrf.mxu0
        %v3897 = vadd.f32 0.0, %v3896
        %v3898 = vpop.f32.mrf.mxu0
        %v3899 = vpop.f32.mrf.mxu0
        %v3900 = vpop.f32.mrf.mxu0
        %3901 = vdwg.mxu0
        %v3906 = vunpack.c.l.b16 %v3839
        %v3907 = vunpack.c.l.b16 %v3840
        %v3908 = vunpack.c.l.b16 %v3841
        %v3909 = vunpack.c.l.b16 %v3842
        %v3910 = vpack.c.b16 %v3907, %v3906
        %v3911 = vpack.c.b16 %v3909, %v3908
        %v3915 = vsel %vm1362, %v3838, 0
        %3917 = vmatprep.subr.bf16.mxu0 0
        %3918 = vmatpush1.bf16.msra.mxu0 0
        %3919 = vmatprep.subr.bf16.mxu0 0
        %3920 = vmatpush1.bf16.msra.mxu0 0
        %3921 = vmatprep.subr.bf16.mxu0 0
        %3922 = vmatpush1.bf16.msra.mxu0 0
        %3923 = vmatprep.subr.bf16.mxu0 0
        %3924 = vmatpush1.bf16.msra.mxu0 0
        %3925 = vmatprep.subr.bf16.mxu0 0
        %3926 = vmatpush1.bf16.msra.mxu0 0
        %3927 = vmatprep.subr.bf16.mxu0 0
        %3928 = vmatpush1.bf16.msra.mxu0 0
        %3929 = vmatprep.subr.bf16.mxu0 0
        %3930 = vmatpush1.bf16.msra.mxu0 %v3911
        %3931 = vmatprep.subr.bf16.mxu0 0
        %3932 = vmatpush1.bf16.msra.mxu0 %v3910
        %3933 = vmatprep.subr.bf16.mxu0 0
        %3934 = vmatpush2.bf16.msra.mxu0 0
        %3935 = vmatprep.subr.bf16.mxu0 0
        %3936 = vmatpush2.bf16.msra.mxu0 0
        %3937 = vmatprep.subr.bf16.mxu0 0
        %3938 = vmatpush2.bf16.msra.mxu0 0
        %3939 = vmatprep.subr.bf16.mxu0 0
        %3940 = vmatpush2.bf16.msra.mxu0 0
        %3941 = vmatprep.subr.bf16.mxu0 0
        %3942 = vmatpush2.bf16.msra.mxu0 0
        %3943 = vmatprep.subr.bf16.mxu0 0
        %3944 = vmatpush2.bf16.msra.mxu0 0
        %3945 = vmatprep.subr.bf16.mxu0 0
        %3946 = vmatpush2.bf16.msra.mxu0 0
        %3947 = vmatprep.subr.bf16.mxu0 0
        %3948 = vmatpush2.bf16.msra.mxu0 0
        %3949 = vmatprep.mubr.bf16.mxu0 0
        %3950 = vmatmul.mubr.bf16.gmra.mxu0 %v3915
        %v3951 = vpop.f32.mrf.mxu0
        %v3952 = vadd.f32 %v3897, %v3951
        %v3953 = vpop.f32.mrf.mxu0
        %v3954 = vpop.f32.mrf.mxu0
        %v3955 = vpop.f32.mrf.mxu0
        %3956 = vdwg.mxu0
        %v3957 = vld [vmem:[%s24] sm:$0x1]
        %v3959 = vlaneseq
        %v3960 = vshrl.u32 %v3959, 7
        %v3961 = vsub.s32 0, %v3960
        %v3962 = vrot.slane %v3957, %v3961
        %v3964 = vadd.f32 %v3952, %v3962
        %v3965 = vtanh.pop %v3964
        %v3966 = vsel %vm3617, %v3965, %v3964
        %s3967 = scalar_lea.vmem %s25, 8
        %3968 = vst [vmem:[%s3967] sm:$0xff] %v3966
      $region128: #{decision_transformer_forward.1} parent=119 // pred_fallthru
        _
      // Predicated region
      $region129: #{decision_transformer_forward.1} parent=119 // pred_check
        %p3969 = pneg %p634
      $region130: #{decision_transformer_forward.1} parent=119 // pred_check_branch
        %3971 = sbr.rel (%p3969) target = $region132
      $region131: #{decision_transformer_forward.1} parent=119 // pred_region
        _
      $region132: #{decision_transformer_forward.1} parent=119 // pred_fallthru
        _
      // Predicated region
      $region133: #{decision_transformer_forward.1} parent=119 // pred_check
        %p3972 = pneg %p634
      $region134: #{decision_transformer_forward.1} parent=119 // pred_check_branch
        %3974 = sbr.rel (%p3972) target = $region136
      $region135: #{decision_transformer_forward.1} parent=119 // pred_region
        _
      $region136: #{decision_transformer_forward.1} parent=119 // pred_fallthru
        _
    $region120: #{decision_transformer_forward.1} parent=5 // pred_fallthru
      _
    %p3975 = scmp.le.s32.totalorder 2, %s31
    // Predicated region
    $region137: #{decision_transformer_forward.1} parent=5 // pred_check
      %p3976 = pneg %p3975
    $region138: #{decision_transformer_forward.1} parent=5 // pred_check_branch
      %3978 = sbr.rel (%p3976) target = $region140
    $region139: #{decision_transformer_forward.1} parent=5 // pred_region
      %s3979 = ssub.s32 %s31, 2
    $region140: #{decision_transformer_forward.1} parent=5 // pred_fallthru
      _
  $region6: #{decision_transformer_forward.1} parent=0 // loop_footer
    %s35 = sadd.s32 1, %s31
  $region7: #{decision_transformer_forward.1} parent=0 // loop_footer_branch
    %30 = sbr.rel target = $region3
  $region8: #{decision_transformer_forward.1} parent=0 // loop_exit
    _

</llo_original>
